<compile_context>
chip_gen: v6e
topology: v6e:2x2x1
jax: 0.10.0
libtpu: 0.0.40
codegen_flags: <defaults>
</compile_context>

<pallas_src>
import functools
import math

import jax
import jax.numpy as jnp
from jax import lax
from jax.experimental import pallas as pl
from jax.experimental.pallas import tpu as pltpu


def _gelu_tanh(v):
    # TODO(synk): PyTorch nn.GELU() defaults to the exact erf form; the tanh
    # approximation used here differs by <1e-3 absolute.
    c = math.sqrt(2.0 / math.pi)
    return 0.5 * v * (1.0 + jnp.tanh(c * (v + 0.044715 * v * v * v)))


def _layernorm(v, g, b, eps):
    mu = jnp.mean(v, axis=-1, keepdims=True)
    var = jnp.mean(jnp.square(v - mu), axis=-1, keepdims=True)
    return (v - mu) * lax.rsqrt(var + eps) * g + b


# ----------------------------- Pallas kernel ------------------------------- #

def _encoder_block_kernel(
    x_ref, ln1g_ref, ln1b_ref,
    wqkv_ref, bqkv_ref, wo_ref, bo_ref,
    ln2g_ref, ln2b_ref, w1_ref, b1_ref, w2_ref, b2_ref,
    o_ref,
    qkv_heads_s, ohead_s,
    *, n_heads, ln_eps):
    f32 = jnp.float32
    bf16 = jnp.bfloat16

    x = x_ref[0].astype(f32)                       # (S, D)
    S, D = x.shape
    dh = D // n_heads

    # ------------------ attention branch ------------------ #
    xn = _layernorm(x, ln1g_ref[...], ln1b_ref[...], ln_eps)

    # One lane-dense fused QKV projection; bias added in f32.
    qkv = jnp.dot(xn.astype(bf16), wqkv_ref[...],
                  preferred_element_type=f32) + bqkv_ref[...]        # (S, 3D)

    # Stash per-head Q/K/V on the leading (untiled) scratch axis with STATIC
    # lane slices, so the dynamic head loop below only indexes the lead dim.
    for h in range(n_heads):                       # cheap static copies
        lo = h * dh
        qkv_heads_s[h] = qkv[:, lo:lo + dh]                          # Q_h (pre-scaled)
        qkv_heads_s[n_heads + h] = qkv[:, D + lo:D + lo + dh]        # K_h
        qkv_heads_s[2 * n_heads + h] = qkv[:, 2 * D + lo:2 * D + lo + dh]  # V_h

    # Bounded head loop: (S,S) logits / probs live for only one head at a time.
    @pl.loop(0, n_heads)
    def _(h):
        q = qkv_heads_s[h].astype(bf16)            # (S, dh)
        k = qkv_heads_s[n_heads + h].astype(bf16)
        v = qkv_heads_s[2 * n_heads + h].astype(bf16)
        logits = lax.dot_general(q, k, (((1,), (1,)), ((), ())),
                                 preferred_element_type=f32)         # (S, S)
        m = jnp.max(logits, axis=-1, keepdims=True)
        p = jnp.exp(logits - m)
        p = p * pl.reciprocal(jnp.sum(p, axis=-1, keepdims=True), approx=True)
        ohead_s[h] = jnp.dot(p.astype(bf16), v, preferred_element_type=f32)

    # Concat heads (static offsets) then ONE (S,D)@(D,D) out-projection matmul.
    attn_cat = jnp.concatenate(
        [ohead_s[h] for h in range(n_heads)], axis=-1).astype(bf16)  # (S, D)
    attn = jnp.dot(attn_cat, wo_ref[...], preferred_element_type=f32) + bo_ref[...]
    x = x + attn

    # --------------------- MLP branch ---------------------- #
    xn2 = _layernorm(x, ln2g_ref[...], ln2b_ref[...], ln_eps)
    h1 = jnp.dot(xn2.astype(bf16), w1_ref[...],
                 preferred_element_type=f32) + b1_ref[...]
    h1 = _gelu_tanh(h1)
    h2 = jnp.dot(h1.astype(bf16), w2_ref[...],
                 preferred_element_type=f32) + b2_ref[...]

    o_ref[0] = (x + h2).astype(o_ref.dtype)


# ------------------------------ wrapper ------------------------------------ #

def vit_encoder_block(x, params, *, n_heads, ln_eps):
    B, S, D = x.shape
    M = params["w1"].shape[1]
    assert D % n_heads == 0
    dh = D // n_heads
    # TODO(synk): S is assumed to need no padding; real ViT S=197 would need a
    # key-column mask before softmax if padded to a sublane/lane multiple.
    bf16 = jnp.bfloat16
    f32 = jnp.float32
    scale = 1.0 / math.sqrt(dh)

    # Fused QKV weight/bias (scale folded into the Q third) + bf16 MXU operands.
    wqkv = jnp.concatenate(
        [params["wq"] * scale, params["wk"], params["wv"]], axis=1).astype(bf16)   # (D, 3D)
    bqkv = jnp.concatenate(
        [params["bq"] * scale, params["bk"], params["bv"]]).reshape(1, 3 * D).astype(f32)
    wo = params["wo"].astype(bf16)                                                  # (D, D)
    bo = params["bo"].reshape(1, D).astype(f32)
    w1 = params["w1"].astype(bf16)
    b1 = params["b1"].reshape(1, M).astype(f32)
    w2 = params["w2"].astype(bf16)
    b2 = params["b2"].reshape(1, D).astype(f32)
    ln1g = params["ln1_g"].reshape(1, D).astype(f32)
    ln1b = params["ln1_b"].reshape(1, D).astype(f32)
    ln2g = params["ln2_g"].reshape(1, D).astype(f32)
    ln2b = params["ln2_b"].reshape(1, D).astype(f32)

    # Per-generation VMEM budget (~75% of physical per-core capacity).
    try:
        vmem_cap = int(getattr(pltpu.get_tpu_info(), "vmem_capacity_bytes",
                               64 * 1024 * 1024))
    except Exception:
        vmem_cap = 64 * 1024 * 1024
    vmem_limit = max(32 * 1024 * 1024,
                     min(int(0.75 * vmem_cap), 96 * 1024 * 1024))

    flops = 2 * B * S * D * (4 * D + 2 * S + 2 * M)
    transcendentals = B * (n_heads * S * S + S * M + 2 * S)
    bytes_accessed = (2 * B * S * D * 4                    # x in + out (f32)
                      + (4 * D * D + 2 * D * M) * 2        # bf16 weights
                      + (6 * D + M) * 4)                   # f32 biases + LN params

    kernel = functools.partial(_encoder_block_kernel, n_heads=n_heads, ln_eps=ln_eps)

    def build(single_buffer_weights):
        def rep(shape):                            # grid-invariant whole-array block
            nd = len(shape)
            idx = lambda b, _nd=nd: (0,) * _nd
            if single_buffer_weights:
                return pl.BlockSpec(shape, idx, pipeline_mode=pl.Buffered(1))
            return pl.BlockSpec(shape, idx)

        return pl.pallas_call(
            kernel,
            out_shape=jax.ShapeDtypeStruct((B, S, D), x.dtype),
            grid=(B,),
            in_specs=[
                pl.BlockSpec((1, S, D), lambda b: (b, 0, 0)),   # x
                rep((1, D)), rep((1, D)),                       # ln1 gamma / beta
                rep((D, 3 * D)), rep((1, 3 * D)),               # wqkv, bqkv
                rep((D, D)), rep((1, D)),                       # wo, bo
                rep((1, D)), rep((1, D)),                       # ln2 gamma / beta
                rep((D, M)), rep((1, M)),                       # w1, b1
                rep((M, D)), rep((1, D)),                       # w2, b2
            ],
            out_specs=pl.BlockSpec((1, S, D), lambda b: (b, 0, 0)),
            scratch_shapes=[
                pltpu.VMEM((3 * n_heads, S, dh), jnp.float32),  # per-head Q/K/V
                pltpu.VMEM((n_heads, S, dh), jnp.float32),      # per-head attn out
            ],
            compiler_params=pltpu.CompilerParams(
                dimension_semantics=("parallel",),              # batch -> megacore
                vmem_limit_bytes=vmem_limit),
            cost_estimate=pl.CostEstimate(
                flops=flops, transcendentals=transcendentals,
                bytes_accessed=bytes_accessed),
        )

    operands = (x, ln1g, ln1b, wqkv, bqkv, wo, bo, ln2g, ln2b, w1, b1, w2, b2)
    try:
        out = build(True)(*operands)               # single-buffered weights
        return jax.block_until_ready(out)
    except Exception:
        # Fallback for Pallas versions without BlockSpec pipeline_mode support.
        return build(False)(*operands)


# --------------------------- params + reference ----------------------------- #

def init_params(key, D, M):
    ks = iter(jax.random.split(key, 16))

    def w(shape, s=0.1):
        return s * jax.random.normal(next(ks), shape, jnp.float32)

    return {
        "ln1_g": 1.0 + 0.05 * jax.random.normal(next(ks), (D,), jnp.float32),
        "ln1_b": w((D,)),
        "wq": w((D, D)), "bq": w((D,)),
        "wk": w((D, D)), "bk": w((D,)),
        "wv": w((D, D)), "bv": w((D,)),
        "wo": w((D, D)), "bo": w((D,)),
        "ln2_g": 1.0 + 0.05 * jax.random.normal(next(ks), (D,), jnp.float32),
        "ln2_b": w((D,)),
        "w1": w((D, M)), "b1": w((M,)),
        "w2": w((M, D)), "b2": w((D,)),
    }


def reference(x, params, n_heads, ln_eps):
    """Pure-JAX f32 reference of the encoder block forward."""
    B, S, D = x.shape
    dh = D // n_heads

    def ln(v, g, b):
        mu = v.mean(-1, keepdims=True)
        var = jnp.square(v - mu).mean(-1, keepdims=True)
        return (v - mu) / jnp.sqrt(var + ln_eps) * g + b

    xn = ln(x, params["ln1_g"], params["ln1_b"])
    q = (xn @ params["wq"] + params["bq"]).reshape(B, S, n_heads, dh)
    k = (xn @ params["wk"] + params["bk"]).reshape(B, S, n_heads, dh)
    v = (xn @ params["wv"] + params["bv"]).reshape(B, S, n_heads, dh)
    logits = jnp.einsum("bqhd,bkhd->bhqk", q, k) / math.sqrt(dh)
    p = jax.nn.softmax(logits, axis=-1)
    o = jnp.einsum("bhqk,bkhd->bqhd", p, v).reshape(B, S, D)
    x = x + o @ params["wo"] + params["bo"]
    xn = ln(x, params["ln2_g"], params["ln2_b"])
    h = _gelu_tanh(xn @ params["w1"] + params["b1"])
    return x + h @ params["w2"] + params["b2"]


if __name__ == "__main__":
    key = jax.random.PRNGKey(0)
    kx, kp = jax.random.split(key)

    # Small shapes: batch=2, seq=8, hidden=32, heads=4, mlp=64.
    B, S, D, H, M = 2, 8, 32, 4, 64
    LN_EPS = 1e-6

    x = jax.random.normal(kx, (B, S, D), jnp.float32)
    params = init_params(kp, D, M)

    out = jax.block_until_ready(vit_encoder_block(x, params, n_heads=H, ln_eps=LN_EPS))
    ref = reference(x, params, H, LN_EPS)

    assert out.shape == (B, S, D), out.shape
    err = float(jnp.max(jnp.abs(out - ref)))
    # bf16 MXU operands with f32 accumulation vs full-f32 reference.
    assert err < 3e-2, err
    print("KERNEL_OK")
</pallas_src>

<mosaic_0001>
module attributes {stable_mosaic.version = 11 : i64} {
  func.func @_encoder_block_kernel(%arg0: i32, %arg1: memref<1x8x32xf32, #tpu.memory_space<vmem>>, %arg2: memref<1x32xf32, #tpu.memory_space<vmem>>, %arg3: memref<1x32xf32, #tpu.memory_space<vmem>>, %arg4: memref<32x96xbf16, #tpu.memory_space<vmem>>, %arg5: memref<1x96xf32, #tpu.memory_space<vmem>>, %arg6: memref<32x32xbf16, #tpu.memory_space<vmem>>, %arg7: memref<1x32xf32, #tpu.memory_space<vmem>>, %arg8: memref<1x32xf32, #tpu.memory_space<vmem>>, %arg9: memref<1x32xf32, #tpu.memory_space<vmem>>, %arg10: memref<32x64xbf16, #tpu.memory_space<vmem>>, %arg11: memref<1x64xf32, #tpu.memory_space<vmem>>, %arg12: memref<64x32xbf16, #tpu.memory_space<vmem>>, %arg13: memref<1x32xf32, #tpu.memory_space<vmem>>, %arg14: memref<1x8x32xf32, #tpu.memory_space<vmem>>, %arg15: memref<12x8x8xf32, #tpu.memory_space<vmem>>, %arg16: memref<4x8x8xf32, #tpu.memory_space<vmem>>) attributes {dimension_semantics = [#tpu.dimension_semantics<parallel>], iteration_bounds = array<i64: 2>, scalar_prefetch = 0 : i64, scratch_operands = 2 : i64, tpu.core_type = #tpu.core_type<tc>, window_params = [{transform_indices = @transform_0, window_bounds = array<i64: 1, 8, 32>}, {pipeline_mode = #tpu.pipeline_mode<synchronous>, transform_indices = @transform_1, window_bounds = array<i64: 1, 32>}, {pipeline_mode = #tpu.pipeline_mode<synchronous>, transform_indices = @transform_2, window_bounds = array<i64: 1, 32>}, {pipeline_mode = #tpu.pipeline_mode<synchronous>, transform_indices = @transform_3, window_bounds = array<i64: 32, 96>}, {pipeline_mode = #tpu.pipeline_mode<synchronous>, transform_indices = @transform_4, window_bounds = array<i64: 1, 96>}, {pipeline_mode = #tpu.pipeline_mode<synchronous>, transform_indices = @transform_5, window_bounds = array<i64: 32, 32>}, {pipeline_mode = #tpu.pipeline_mode<synchronous>, transform_indices = @transform_6, window_bounds = array<i64: 1, 32>}, {pipeline_mode = #tpu.pipeline_mode<synchronous>, transform_indices = @transform_7, window_bounds = array<i64: 1, 32>}, {pipeline_mode = #tpu.pipeline_mode<synchronous>, transform_indices = @transform_8, window_bounds = array<i64: 1, 32>}, {pipeline_mode = #tpu.pipeline_mode<synchronous>, transform_indices = @transform_9, window_bounds = array<i64: 32, 64>}, {pipeline_mode = #tpu.pipeline_mode<synchronous>, transform_indices = @transform_10, window_bounds = array<i64: 1, 64>}, {pipeline_mode = #tpu.pipeline_mode<synchronous>, transform_indices = @transform_11, window_bounds = array<i64: 64, 32>}, {pipeline_mode = #tpu.pipeline_mode<synchronous>, transform_indices = @transform_12, window_bounds = array<i64: 1, 32>}, {transform_indices = @transform_13, window_bounds = array<i64: 1, 8, 32>}]} {
    %c0 = arith.constant 0 : index
    %c0_0 = arith.constant 0 : index
    %c0_1 = arith.constant 0 : index
    %0 = vector.load %arg1[%c0, %c0_0, %c0_1] : memref<1x8x32xf32, #tpu.memory_space<vmem>>, vector<1x8x32xf32>
    %1 = vector.shape_cast %0 : vector<1x8x32xf32> to vector<8x32xf32>
    %c0_2 = arith.constant 0 : index
    %c0_3 = arith.constant 0 : index
    %2 = vector.load %arg2[%c0_2, %c0_3] : memref<1x32xf32, #tpu.memory_space<vmem>>, vector<1x32xf32>
    %c0_4 = arith.constant 0 : index
    %c0_5 = arith.constant 0 : index
    %3 = vector.load %arg3[%c0_4, %c0_5] : memref<1x32xf32, #tpu.memory_space<vmem>>, vector<1x32xf32>
    %cst = arith.constant dense<0.000000e+00> : vector<8xf32>
    %4 = vector.multi_reduction <add>, %1, %cst [1] : vector<8x32xf32> to vector<8xf32>
    %5 = vector.shape_cast %4 : vector<8xf32> to vector<8x1xf32>
    %cst_6 = arith.constant 3.200000e+01 : f32
    %6 = vector.broadcast %cst_6 : f32 to vector<8x1xf32>
    %7 = arith.divf %5, %6 : vector<8x1xf32>
    %8 = vector.broadcast %7 : vector<8x1xf32> to vector<8x32xf32>
    %9 = arith.subf %1, %8 : vector<8x32xf32>
    %10 = arith.mulf %9, %9 : vector<8x32xf32>
    %cst_7 = arith.constant dense<0.000000e+00> : vector<8xf32>
    %11 = vector.multi_reduction <add>, %10, %cst_7 [1] : vector<8x32xf32> to vector<8xf32>
    %12 = vector.shape_cast %11 : vector<8xf32> to vector<8x1xf32>
    %cst_8 = arith.constant 3.200000e+01 : f32
    %13 = vector.broadcast %cst_8 : f32 to vector<8x1xf32>
    %14 = arith.divf %12, %13 : vector<8x1xf32>
    %15 = vector.broadcast %7 : vector<8x1xf32> to vector<8x32xf32>
    %16 = arith.subf %1, %15 : vector<8x32xf32>
    %cst_9 = arith.constant 9.99999997E-7 : f32
    %17 = vector.broadcast %cst_9 : f32 to vector<8x1xf32>
    %18 = arith.addf %14, %17 : vector<8x1xf32>
    %19 = math.rsqrt %18 : vector<8x1xf32>
    %20 = vector.broadcast %19 : vector<8x1xf32> to vector<8x32xf32>
    %21 = arith.mulf %16, %20 : vector<8x32xf32>
    %22 = vector.broadcast %2 : vector<1x32xf32> to vector<8x32xf32>
    %23 = arith.mulf %21, %22 : vector<8x32xf32>
    %24 = vector.broadcast %3 : vector<1x32xf32> to vector<8x32xf32>
    %25 = arith.addf %23, %24 : vector<8x32xf32>
    %26 = arith.truncf %25 : vector<8x32xf32> to vector<8x32xbf16>
    %c0_10 = arith.constant 0 : index
    %c0_11 = arith.constant 0 : index
    %27 = vector.load %arg4[%c0_10, %c0_11] : memref<32x96xbf16, #tpu.memory_space<vmem>>, vector<32x96xbf16>
    %cst_12 = arith.constant dense<0.000000e+00> : vector<8x96xf32>
    %28 = tpu.matmul %26, %27, %cst_12 {dimension_numbers = #tpu.dot_dimension_numbers<[1], [0], [0], [1], [0, 0, 1, 1], [], []>} : vector<8x32xbf16>, vector<32x96xbf16>, vector<8x96xf32> -> vector<8x96xf32>
    %c0_13 = arith.constant 0 : index
    %c0_14 = arith.constant 0 : index
    %29 = vector.load %arg5[%c0_13, %c0_14] : memref<1x96xf32, #tpu.memory_space<vmem>>, vector<1x96xf32>
    %30 = vector.broadcast %29 : vector<1x96xf32> to vector<8x96xf32>
    %31 = arith.addf %28, %30 : vector<8x96xf32>
    %32 = vector.extract_strided_slice %31 {offsets = [0, 0], sizes = [8, 8], strides = [1, 1]} : vector<8x96xf32> to vector<8x8xf32>
    %c0_15 = arith.constant 0 : index
    %c0_16 = arith.constant 0 : index
    %c0_17 = arith.constant 0 : index
    %33 = vector.load %arg15[%c0_15, %c0_16, %c0_17] : memref<12x8x8xf32, #tpu.memory_space<vmem>>, vector<1x8x8xf32>
    %34 = vector.shape_cast %33 : vector<1x8x8xf32> to vector<8x8xf32>
    %35 = vector.shape_cast %32 : vector<8x8xf32> to vector<1x8x8xf32>
    tpu.vector_store %arg15[%c0_15, %c0_16, %c0_17], %35 {strides = array<i32>} : memref<12x8x8xf32, #tpu.memory_space<vmem>>, vector<1x8x8xf32>,
    %36 = vector.extract_strided_slice %31 {offsets = [0, 32], sizes = [8, 8], strides = [1, 1]} : vector<8x96xf32> to vector<8x8xf32>
    %c4 = arith.constant 4 : index
    %c0_18 = arith.constant 0 : index
    %c0_19 = arith.constant 0 : index
    %37 = vector.load %arg15[%c4, %c0_18, %c0_19] : memref<12x8x8xf32, #tpu.memory_space<vmem>>, vector<1x8x8xf32>
    %38 = vector.shape_cast %37 : vector<1x8x8xf32> to vector<8x8xf32>
    %39 = vector.shape_cast %36 : vector<8x8xf32> to vector<1x8x8xf32>
    tpu.vector_store %arg15[%c4, %c0_18, %c0_19], %39 {strides = array<i32>} : memref<12x8x8xf32, #tpu.memory_space<vmem>>, vector<1x8x8xf32>,
    %40 = vector.extract_strided_slice %31 {offsets = [0, 64], sizes = [8, 8], strides = [1, 1]} : vector<8x96xf32> to vector<8x8xf32>
    %c8 = arith.constant 8 : index
    %c0_20 = arith.constant 0 : index
    %c0_21 = arith.constant 0 : index
    %41 = vector.load %arg15[%c8, %c0_20, %c0_21] : memref<12x8x8xf32, #tpu.memory_space<vmem>>, vector<1x8x8xf32>
    %42 = vector.shape_cast %41 : vector<1x8x8xf32> to vector<8x8xf32>
    %43 = vector.shape_cast %40 : vector<8x8xf32> to vector<1x8x8xf32>
    tpu.vector_store %arg15[%c8, %c0_20, %c0_21], %43 {strides = array<i32>} : memref<12x8x8xf32, #tpu.memory_space<vmem>>, vector<1x8x8xf32>,
    %44 = vector.extract_strided_slice %31 {offsets = [0, 8], sizes = [8, 8], strides = [1, 1]} : vector<8x96xf32> to vector<8x8xf32>
    %c1 = arith.constant 1 : index
    %c0_22 = arith.constant 0 : index
    %c0_23 = arith.constant 0 : index
    %45 = vector.load %arg15[%c1, %c0_22, %c0_23] : memref<12x8x8xf32, #tpu.memory_space<vmem>>, vector<1x8x8xf32>
    %46 = vector.shape_cast %45 : vector<1x8x8xf32> to vector<8x8xf32>
    %47 = vector.shape_cast %44 : vector<8x8xf32> to vector<1x8x8xf32>
    tpu.vector_store %arg15[%c1, %c0_22, %c0_23], %47 {strides = array<i32>} : memref<12x8x8xf32, #tpu.memory_space<vmem>>, vector<1x8x8xf32>,
    %48 = vector.extract_strided_slice %31 {offsets = [0, 40], sizes = [8, 8], strides = [1, 1]} : vector<8x96xf32> to vector<8x8xf32>
    %c5 = arith.constant 5 : index
    %c0_24 = arith.constant 0 : index
    %c0_25 = arith.constant 0 : index
    %49 = vector.load %arg15[%c5, %c0_24, %c0_25] : memref<12x8x8xf32, #tpu.memory_space<vmem>>, vector<1x8x8xf32>
    %50 = vector.shape_cast %49 : vector<1x8x8xf32> to vector<8x8xf32>
    %51 = vector.shape_cast %48 : vector<8x8xf32> to vector<1x8x8xf32>
    tpu.vector_store %arg15[%c5, %c0_24, %c0_25], %51 {strides = array<i32>} : memref<12x8x8xf32, #tpu.memory_space<vmem>>, vector<1x8x8xf32>,
    %52 = vector.extract_strided_slice %31 {offsets = [0, 72], sizes = [8, 8], strides = [1, 1]} : vector<8x96xf32> to vector<8x8xf32>
    %c9 = arith.constant 9 : index
    %c0_26 = arith.constant 0 : index
    %c0_27 = arith.constant 0 : index
    %53 = vector.load %arg15[%c9, %c0_26, %c0_27] : memref<12x8x8xf32, #tpu.memory_space<vmem>>, vector<1x8x8xf32>
    %54 = vector.shape_cast %53 : vector<1x8x8xf32> to vector<8x8xf32>
    %55 = vector.shape_cast %52 : vector<8x8xf32> to vector<1x8x8xf32>
    tpu.vector_store %arg15[%c9, %c0_26, %c0_27], %55 {strides = array<i32>} : memref<12x8x8xf32, #tpu.memory_space<vmem>>, vector<1x8x8xf32>,
    %56 = vector.extract_strided_slice %31 {offsets = [0, 16], sizes = [8, 8], strides = [1, 1]} : vector<8x96xf32> to vector<8x8xf32>
    %c2 = arith.constant 2 : index
    %c0_28 = arith.constant 0 : index
    %c0_29 = arith.constant 0 : index
    %57 = vector.load %arg15[%c2, %c0_28, %c0_29] : memref<12x8x8xf32, #tpu.memory_space<vmem>>, vector<1x8x8xf32>
    %58 = vector.shape_cast %57 : vector<1x8x8xf32> to vector<8x8xf32>
    %59 = vector.shape_cast %56 : vector<8x8xf32> to vector<1x8x8xf32>
    tpu.vector_store %arg15[%c2, %c0_28, %c0_29], %59 {strides = array<i32>} : memref<12x8x8xf32, #tpu.memory_space<vmem>>, vector<1x8x8xf32>,
    %60 = vector.extract_strided_slice %31 {offsets = [0, 48], sizes = [8, 8], strides = [1, 1]} : vector<8x96xf32> to vector<8x8xf32>
    %c6 = arith.constant 6 : index
    %c0_30 = arith.constant 0 : index
    %c0_31 = arith.constant 0 : index
    %61 = vector.load %arg15[%c6, %c0_30, %c0_31] : memref<12x8x8xf32, #tpu.memory_space<vmem>>, vector<1x8x8xf32>
    %62 = vector.shape_cast %61 : vector<1x8x8xf32> to vector<8x8xf32>
    %63 = vector.shape_cast %60 : vector<8x8xf32> to vector<1x8x8xf32>
    tpu.vector_store %arg15[%c6, %c0_30, %c0_31], %63 {strides = array<i32>} : memref<12x8x8xf32, #tpu.memory_space<vmem>>, vector<1x8x8xf32>,
    %64 = vector.extract_strided_slice %31 {offsets = [0, 80], sizes = [8, 8], strides = [1, 1]} : vector<8x96xf32> to vector<8x8xf32>
    %c10 = arith.constant 10 : index
    %c0_32 = arith.constant 0 : index
    %c0_33 = arith.constant 0 : index
    %65 = vector.load %arg15[%c10, %c0_32, %c0_33] : memref<12x8x8xf32, #tpu.memory_space<vmem>>, vector<1x8x8xf32>
    %66 = vector.shape_cast %65 : vector<1x8x8xf32> to vector<8x8xf32>
    %67 = vector.shape_cast %64 : vector<8x8xf32> to vector<1x8x8xf32>
    tpu.vector_store %arg15[%c10, %c0_32, %c0_33], %67 {strides = array<i32>} : memref<12x8x8xf32, #tpu.memory_space<vmem>>, vector<1x8x8xf32>,
    %68 = vector.extract_strided_slice %31 {offsets = [0, 24], sizes = [8, 8], strides = [1, 1]} : vector<8x96xf32> to vector<8x8xf32>
    %c3 = arith.constant 3 : index
    %c0_34 = arith.constant 0 : index
    %c0_35 = arith.constant 0 : index
    %69 = vector.load %arg15[%c3, %c0_34, %c0_35] : memref<12x8x8xf32, #tpu.memory_space<vmem>>, vector<1x8x8xf32>
    %70 = vector.shape_cast %69 : vector<1x8x8xf32> to vector<8x8xf32>
    %71 = vector.shape_cast %68 : vector<8x8xf32> to vector<1x8x8xf32>
    tpu.vector_store %arg15[%c3, %c0_34, %c0_35], %71 {strides = array<i32>} : memref<12x8x8xf32, #tpu.memory_space<vmem>>, vector<1x8x8xf32>,
    %72 = vector.extract_strided_slice %31 {offsets = [0, 56], sizes = [8, 8], strides = [1, 1]} : vector<8x96xf32> to vector<8x8xf32>
    %c7 = arith.constant 7 : index
    %c0_36 = arith.constant 0 : index
    %c0_37 = arith.constant 0 : index
    %73 = vector.load %arg15[%c7, %c0_36, %c0_37] : memref<12x8x8xf32, #tpu.memory_space<vmem>>, vector<1x8x8xf32>
    %74 = vector.shape_cast %73 : vector<1x8x8xf32> to vector<8x8xf32>
    %75 = vector.shape_cast %72 : vector<8x8xf32> to vector<1x8x8xf32>
    tpu.vector_store %arg15[%c7, %c0_36, %c0_37], %75 {strides = array<i32>} : memref<12x8x8xf32, #tpu.memory_space<vmem>>, vector<1x8x8xf32>,
    %76 = vector.extract_strided_slice %31 {offsets = [0, 88], sizes = [8, 8], strides = [1, 1]} : vector<8x96xf32> to vector<8x8xf32>
    %c11 = arith.constant 11 : index
    %c0_38 = arith.constant 0 : index
    %c0_39 = arith.constant 0 : index
    %77 = vector.load %arg15[%c11, %c0_38, %c0_39] : memref<12x8x8xf32, #tpu.memory_space<vmem>>, vector<1x8x8xf32>
    %78 = vector.shape_cast %77 : vector<1x8x8xf32> to vector<8x8xf32>
    %79 = vector.shape_cast %76 : vector<8x8xf32> to vector<1x8x8xf32>
    tpu.vector_store %arg15[%c11, %c0_38, %c0_39], %79 {strides = array<i32>} : memref<12x8x8xf32, #tpu.memory_space<vmem>>, vector<1x8x8xf32>,
    %c0_i32 = arith.constant 0 : i32
    %c4_i32 = arith.constant 4 : i32
    %80 = arith.addi %c0_i32, %c4_i32 : i32
    %c1_i32 = arith.constant 1 : i32
    scf.for %arg17 = %c0_i32 to %80 step %c1_i32  : i32 {
      %c1_i32_84 = arith.constant 1 : i32
      %150 = arith.muli %arg17, %c1_i32_84 : i32
      %c0_i32_85 = arith.constant 0 : i32
      %151 = arith.addi %c0_i32_85, %150 : i32
      %152 = arith.index_cast %151 : i32 to index
      %c0_86 = arith.constant 0 : index
      %c0_87 = arith.constant 0 : index
      %153 = vector.load %arg15[%152, %c0_86, %c0_87] : memref<12x8x8xf32, #tpu.memory_space<vmem>>, vector<1x8x8xf32>
      %154 = vector.shape_cast %153 : vector<1x8x8xf32> to vector<8x8xf32>
      %155 = arith.truncf %154 : vector<8x8xf32> to vector<8x8xbf16>
      %c4_i32_88 = arith.constant 4 : i32
      %156 = arith.addi %c4_i32_88, %151 : i32
      %157 = arith.index_cast %156 : i32 to index
      %c0_89 = arith.constant 0 : index
      %c0_90 = arith.constant 0 : index
      %158 = vector.load %arg15[%157, %c0_89, %c0_90] : memref<12x8x8xf32, #tpu.memory_space<vmem>>, vector<1x8x8xf32>
      %159 = vector.shape_cast %158 : vector<1x8x8xf32> to vector<8x8xf32>
      %160 = arith.truncf %159 : vector<8x8xf32> to vector<8x8xbf16>
      %c8_i32 = arith.constant 8 : i32
      %161 = arith.addi %c8_i32, %151 : i32
      %162 = arith.index_cast %161 : i32 to index
      %c0_91 = arith.constant 0 : index
      %c0_92 = arith.constant 0 : index
      %163 = vector.load %arg15[%162, %c0_91, %c0_92] : memref<12x8x8xf32, #tpu.memory_space<vmem>>, vector<1x8x8xf32>
      %164 = vector.shape_cast %163 : vector<1x8x8xf32> to vector<8x8xf32>
      %165 = arith.truncf %164 : vector<8x8xf32> to vector<8x8xbf16>
      %cst_93 = arith.constant dense<0.000000e+00> : vector<8x8xf32>
      %166 = tpu.matmul %155, %160, %cst_93 {dimension_numbers = #tpu.dot_dimension_numbers<[1], [1], [0], [0], [0, 0, 1, 0], [], []>} : vector<8x8xbf16>, vector<8x8xbf16>, vector<8x8xf32> -> vector<8x8xf32>
      %cst_94 = arith.constant dense<0xFF800000> : vector<8xf32>
      %167 = vector.multi_reduction <maximumf>, %166, %cst_94 [1] : vector<8x8xf32> to vector<8xf32>
      %168 = vector.shape_cast %167 : vector<8xf32> to vector<8x1xf32>
      %169 = vector.broadcast %168 : vector<8x1xf32> to vector<8x8xf32>
      %170 = arith.subf %166, %169 : vector<8x8xf32>
      %171 = math.exp %170 : vector<8x8xf32>
      %cst_95 = arith.constant dense<0.000000e+00> : vector<8xf32>
      %172 = vector.multi_reduction <add>, %171, %cst_95 [1] : vector<8x8xf32> to vector<8xf32>
      %173 = vector.shape_cast %172 : vector<8xf32> to vector<8x1xf32>
      %174 = tpu.reciprocal %173 {approx = true} : vector<8x1xf32> -> vector<8x1xf32>
      %175 = vector.broadcast %174 : vector<8x1xf32> to vector<8x8xf32>
      %176 = arith.mulf %171, %175 : vector<8x8xf32>
      %177 = arith.truncf %176 : vector<8x8xf32> to vector<8x8xbf16>
      %cst_96 = arith.constant dense<0.000000e+00> : vector<8x8xf32>
      %178 = tpu.matmul %177, %165, %cst_96 {dimension_numbers = #tpu.dot_dimension_numbers<[1], [0], [0], [1], [0, 0, 1, 1], [], []>} : vector<8x8xbf16>, vector<8x8xbf16>, vector<8x8xf32> -> vector<8x8xf32>
      %179 = arith.index_cast %151 : i32 to index
      %c0_97 = arith.constant 0 : index
      %c0_98 = arith.constant 0 : index
      %180 = vector.load %arg16[%179, %c0_97, %c0_98] : memref<4x8x8xf32, #tpu.memory_space<vmem>>, vector<1x8x8xf32>
      %181 = vector.shape_cast %180 : vector<1x8x8xf32> to vector<8x8xf32>
      %182 = vector.shape_cast %178 : vector<8x8xf32> to vector<1x8x8xf32>
      tpu.vector_store %arg16[%179, %c0_97, %c0_98], %182 {strides = array<i32>} : memref<4x8x8xf32, #tpu.memory_space<vmem>>, vector<1x8x8xf32>,
    }
    %c4_i32_40 = arith.constant 4 : i32
    %c0_41 = arith.constant 0 : index
    %c0_42 = arith.constant 0 : index
    %c0_43 = arith.constant 0 : index
    %81 = vector.load %arg16[%c0_41, %c0_42, %c0_43] : memref<4x8x8xf32, #tpu.memory_space<vmem>>, vector<1x8x8xf32>
    %82 = vector.shape_cast %81 : vector<1x8x8xf32> to vector<8x8xf32>
    %c1_44 = arith.constant 1 : index
    %c0_45 = arith.constant 0 : index
    %c0_46 = arith.constant 0 : index
    %83 = vector.load %arg16[%c1_44, %c0_45, %c0_46] : memref<4x8x8xf32, #tpu.memory_space<vmem>>, vector<1x8x8xf32>
    %84 = vector.shape_cast %83 : vector<1x8x8xf32> to vector<8x8xf32>
    %c2_47 = arith.constant 2 : index
    %c0_48 = arith.constant 0 : index
    %c0_49 = arith.constant 0 : index
    %85 = vector.load %arg16[%c2_47, %c0_48, %c0_49] : memref<4x8x8xf32, #tpu.memory_space<vmem>>, vector<1x8x8xf32>
    %86 = vector.shape_cast %85 : vector<1x8x8xf32> to vector<8x8xf32>
    %c3_50 = arith.constant 3 : index
    %c0_51 = arith.constant 0 : index
    %c0_52 = arith.constant 0 : index
    %87 = vector.load %arg16[%c3_50, %c0_51, %c0_52] : memref<4x8x8xf32, #tpu.memory_space<vmem>>, vector<1x8x8xf32>
    %88 = vector.shape_cast %87 : vector<1x8x8xf32> to vector<8x8xf32>
    %89 = tpu.concatenate %82, %84, %86, %88 in 1 : vector<8x8xf32>, vector<8x8xf32>, vector<8x8xf32>, vector<8x8xf32> -> vector<8x32xf32>
    %90 = arith.truncf %89 : vector<8x32xf32> to vector<8x32xbf16>
    %c0_53 = arith.constant 0 : index
    %c0_54 = arith.constant 0 : index
    %91 = vector.load %arg6[%c0_53, %c0_54] : memref<32x32xbf16, #tpu.memory_space<vmem>>, vector<32x32xbf16>
    %cst_55 = arith.constant dense<0.000000e+00> : vector<8x32xf32>
    %92 = tpu.matmul %90, %91, %cst_55 {dimension_numbers = #tpu.dot_dimension_numbers<[1], [0], [0], [1], [0, 0, 1, 1], [], []>} : vector<8x32xbf16>, vector<32x32xbf16>, vector<8x32xf32> -> vector<8x32xf32>
    %c0_56 = arith.constant 0 : index
    %c0_57 = arith.constant 0 : index
    %93 = vector.load %arg7[%c0_56, %c0_57] : memref<1x32xf32, #tpu.memory_space<vmem>>, vector<1x32xf32>
    %94 = vector.broadcast %93 : vector<1x32xf32> to vector<8x32xf32>
    %95 = arith.addf %92, %94 : vector<8x32xf32>
    %96 = arith.addf %1, %95 : vector<8x32xf32>
    %c0_58 = arith.constant 0 : index
    %c0_59 = arith.constant 0 : index
    %97 = vector.load %arg8[%c0_58, %c0_59] : memref<1x32xf32, #tpu.memory_space<vmem>>, vector<1x32xf32>
    %c0_60 = arith.constant 0 : index
    %c0_61 = arith.constant 0 : index
    %98 = vector.load %arg9[%c0_60, %c0_61] : memref<1x32xf32, #tpu.memory_space<vmem>>, vector<1x32xf32>
    %cst_62 = arith.constant dense<0.000000e+00> : vector<8xf32>
    %99 = vector.multi_reduction <add>, %96, %cst_62 [1] : vector<8x32xf32> to vector<8xf32>
    %100 = vector.shape_cast %99 : vector<8xf32> to vector<8x1xf32>
    %cst_63 = arith.constant 3.200000e+01 : f32
    %101 = vector.broadcast %cst_63 : f32 to vector<8x1xf32>
    %102 = arith.divf %100, %101 : vector<8x1xf32>
    %103 = vector.broadcast %102 : vector<8x1xf32> to vector<8x32xf32>
    %104 = arith.subf %96, %103 : vector<8x32xf32>
    %105 = arith.mulf %104, %104 : vector<8x32xf32>
    %cst_64 = arith.constant dense<0.000000e+00> : vector<8xf32>
    %106 = vector.multi_reduction <add>, %105, %cst_64 [1] : vector<8x32xf32> to vector<8xf32>
    %107 = vector.shape_cast %106 : vector<8xf32> to vector<8x1xf32>
    %cst_65 = arith.constant 3.200000e+01 : f32
    %108 = vector.broadcast %cst_65 : f32 to vector<8x1xf32>
    %109 = arith.divf %107, %108 : vector<8x1xf32>
    %110 = vector.broadcast %102 : vector<8x1xf32> to vector<8x32xf32>
    %111 = arith.subf %96, %110 : vector<8x32xf32>
    %cst_66 = arith.constant 9.99999997E-7 : f32
    %112 = vector.broadcast %cst_66 : f32 to vector<8x1xf32>
    %113 = arith.addf %109, %112 : vector<8x1xf32>
    %114 = math.rsqrt %113 : vector<8x1xf32>
    %115 = vector.broadcast %114 : vector<8x1xf32> to vector<8x32xf32>
    %116 = arith.mulf %111, %115 : vector<8x32xf32>
    %117 = vector.broadcast %97 : vector<1x32xf32> to vector<8x32xf32>
    %118 = arith.mulf %116, %117 : vector<8x32xf32>
    %119 = vector.broadcast %98 : vector<1x32xf32> to vector<8x32xf32>
    %120 = arith.addf %118, %119 : vector<8x32xf32>
    %121 = arith.truncf %120 : vector<8x32xf32> to vector<8x32xbf16>
    %c0_67 = arith.constant 0 : index
    %c0_68 = arith.constant 0 : index
    %122 = vector.load %arg10[%c0_67, %c0_68] : memref<32x64xbf16, #tpu.memory_space<vmem>>, vector<32x64xbf16>
    %cst_69 = arith.constant dense<0.000000e+00> : vector<8x64xf32>
    %123 = tpu.matmul %121, %122, %cst_69 {dimension_numbers = #tpu.dot_dimension_numbers<[1], [0], [0], [1], [0, 0, 1, 1], [], []>} : vector<8x32xbf16>, vector<32x64xbf16>, vector<8x64xf32> -> vector<8x64xf32>
    %c0_70 = arith.constant 0 : index
    %c0_71 = arith.constant 0 : index
    %124 = vector.load %arg11[%c0_70, %c0_71] : memref<1x64xf32, #tpu.memory_space<vmem>>, vector<1x64xf32>
    %125 = vector.broadcast %124 : vector<1x64xf32> to vector<8x64xf32>
    %126 = arith.addf %123, %125 : vector<8x64xf32>
    %cst_72 = arith.constant 5.000000e-01 : f32
    %127 = vector.broadcast %cst_72 : f32 to vector<8x64xf32>
    %128 = arith.mulf %127, %126 : vector<8x64xf32>
    %cst_73 = arith.constant 4.471500e-02 : f32
    %129 = vector.broadcast %cst_73 : f32 to vector<8x64xf32>
    %130 = arith.mulf %129, %126 : vector<8x64xf32>
    %131 = arith.mulf %130, %126 : vector<8x64xf32>
    %132 = arith.mulf %131, %126 : vector<8x64xf32>
    %133 = arith.addf %126, %132 : vector<8x64xf32>
    %cst_74 = arith.constant 0.797884583 : f32
    %134 = vector.broadcast %cst_74 : f32 to vector<8x64xf32>
    %135 = arith.mulf %134, %133 : vector<8x64xf32>
    %136 = math.tanh %135 : vector<8x64xf32>
    %cst_75 = arith.constant 1.000000e+00 : f32
    %137 = vector.broadcast %cst_75 : f32 to vector<8x64xf32>
    %138 = arith.addf %137, %136 : vector<8x64xf32>
    %139 = arith.mulf %128, %138 : vector<8x64xf32>
    %140 = arith.truncf %139 : vector<8x64xf32> to vector<8x64xbf16>
    %c0_76 = arith.constant 0 : index
    %c0_77 = arith.constant 0 : index
    %141 = vector.load %arg12[%c0_76, %c0_77] : memref<64x32xbf16, #tpu.memory_space<vmem>>, vector<64x32xbf16>
    %cst_78 = arith.constant dense<0.000000e+00> : vector<8x32xf32>
    %142 = tpu.matmul %140, %141, %cst_78 {dimension_numbers = #tpu.dot_dimension_numbers<[1], [0], [0], [1], [0, 0, 1, 1], [], []>} : vector<8x64xbf16>, vector<64x32xbf16>, vector<8x32xf32> -> vector<8x32xf32>
    %c0_79 = arith.constant 0 : index
    %c0_80 = arith.constant 0 : index
    %143 = vector.load %arg13[%c0_79, %c0_80] : memref<1x32xf32, #tpu.memory_space<vmem>>, vector<1x32xf32>
    %144 = vector.broadcast %143 : vector<1x32xf32> to vector<8x32xf32>
    %145 = arith.addf %142, %144 : vector<8x32xf32>
    %146 = arith.addf %96, %145 : vector<8x32xf32>
    %c0_81 = arith.constant 0 : index
    %c0_82 = arith.constant 0 : index
    %c0_83 = arith.constant 0 : index
    %147 = vector.load %arg14[%c0_81, %c0_82, %c0_83] : memref<1x8x32xf32, #tpu.memory_space<vmem>>, vector<1x8x32xf32>
    %148 = vector.shape_cast %147 : vector<1x8x32xf32> to vector<8x32xf32>
    %149 = vector.shape_cast %146 : vector<8x32xf32> to vector<1x8x32xf32>
    tpu.vector_store %arg14[%c0_81, %c0_82, %c0_83], %149 {strides = array<i32>} : memref<1x8x32xf32, #tpu.memory_space<vmem>>, vector<1x8x32xf32>,
    return
  }
  func.func @transform_0(%arg0: i32) -> (i32, i32, i32) {
    %c0_i32 = arith.constant 0 : i32
    %c0_i32_0 = arith.constant 0 : i32
    %c0_i32_1 = arith.constant 0 : i32
    return %arg0, %c0_i32, %c0_i32_0 : i32, i32, i32
  }
  func.func @transform_1(%arg0: i32) -> (i32, i32) {
    %c0_i32 = arith.constant 0 : i32
    %c0_i32_0 = arith.constant 0 : i32
    %c0_i32_1 = arith.constant 0 : i32
    return %c0_i32, %c0_i32_0 : i32, i32
  }
  func.func @transform_2(%arg0: i32) -> (i32, i32) {
    %c0_i32 = arith.constant 0 : i32
    %c0_i32_0 = arith.constant 0 : i32
    %c0_i32_1 = arith.constant 0 : i32
    return %c0_i32, %c0_i32_0 : i32, i32
  }
  func.func @transform_3(%arg0: i32) -> (i32, i32) {
    %c0_i32 = arith.constant 0 : i32
    %c0_i32_0 = arith.constant 0 : i32
    %c0_i32_1 = arith.constant 0 : i32
    return %c0_i32, %c0_i32_0 : i32, i32
  }
  func.func @transform_4(%arg0: i32) -> (i32, i32) {
    %c0_i32 = arith.constant 0 : i32
    %c0_i32_0 = arith.constant 0 : i32
    %c0_i32_1 = arith.constant 0 : i32
    return %c0_i32, %c0_i32_0 : i32, i32
  }
  func.func @transform_5(%arg0: i32) -> (i32, i32) {
    %c0_i32 = arith.constant 0 : i32
    %c0_i32_0 = arith.constant 0 : i32
    %c0_i32_1 = arith.constant 0 : i32
    return %c0_i32, %c0_i32_0 : i32, i32
  }
  func.func @transform_6(%arg0: i32) -> (i32, i32) {
    %c0_i32 = arith.constant 0 : i32
    %c0_i32_0 = arith.constant 0 : i32
    %c0_i32_1 = arith.constant 0 : i32
    return %c0_i32, %c0_i32_0 : i32, i32
  }
  func.func @transform_7(%arg0: i32) -> (i32, i32) {
    %c0_i32 = arith.constant 0 : i32
    %c0_i32_0 = arith.constant 0 : i32
    %c0_i32_1 = arith.constant 0 : i32
    return %c0_i32, %c0_i32_0 : i32, i32
  }
  func.func @transform_8(%arg0: i32) -> (i32, i32) {
    %c0_i32 = arith.constant 0 : i32
    %c0_i32_0 = arith.constant 0 : i32
    %c0_i32_1 = arith.constant 0 : i32
    return %c0_i32, %c0_i32_0 : i32, i32
  }
  func.func @transform_9(%arg0: i32) -> (i32, i32) {
    %c0_i32 = arith.constant 0 : i32
    %c0_i32_0 = arith.constant 0 : i32
    %c0_i32_1 = arith.constant 0 : i32
    return %c0_i32, %c0_i32_0 : i32, i32
  }
  func.func @transform_10(%arg0: i32) -> (i32, i32) {
    %c0_i32 = arith.constant 0 : i32
    %c0_i32_0 = arith.constant 0 : i32
    %c0_i32_1 = arith.constant 0 : i32
    return %c0_i32, %c0_i32_0 : i32, i32
  }
  func.func @transform_11(%arg0: i32) -> (i32, i32) {
    %c0_i32 = arith.constant 0 : i32
    %c0_i32_0 = arith.constant 0 : i32
    %c0_i32_1 = arith.constant 0 : i32
    return %c0_i32, %c0_i32_0 : i32, i32
  }
  func.func @transform_12(%arg0: i32) -> (i32, i32) {
    %c0_i32 = arith.constant 0 : i32
    %c0_i32_0 = arith.constant 0 : i32
    %c0_i32_1 = arith.constant 0 : i32
    return %c0_i32, %c0_i32_0 : i32, i32
  }
  func.func @transform_13(%arg0: i32) -> (i32, i32, i32) {
    %c0_i32 = arith.constant 0 : i32
    %c0_i32_0 = arith.constant 0 : i32
    %c0_i32_1 = arith.constant 0 : i32
    return %arg0, %c0_i32, %c0_i32_0 : i32, i32, i32
  }
}

module attributes {stable_mosaic.version = 11 : i64} {
  func.func @_encoder_block_kernel(%arg0: i32, %arg1: memref<1x8x32xf32, #tpu.memory_space<vmem>>, %arg2: memref<1x32xf32, #tpu.memory_space<vmem>>, %arg3: memref<1x32xf32, #tpu.memory_space<vmem>>, %arg4: memref<32x96xbf16, #tpu.memory_space<vmem>>, %arg5: memref<1x96xf32, #tpu.memory_space<vmem>>, %arg6: memref<32x32xbf16, #tpu.memory_space<vmem>>, %arg7: memref<1x32xf32, #tpu.memory_space<vmem>>, %arg8: memref<1x32xf32, #tpu.memory_space<vmem>>, %arg9: memref<1x32xf32, #tpu.memory_space<vmem>>, %arg10: memref<32x64xbf16, #tpu.memory_space<vmem>>, %arg11: memref<1x64xf32, #tpu.memory_space<vmem>>, %arg12: memref<64x32xbf16, #tpu.memory_space<vmem>>, %arg13: memref<1x32xf32, #tpu.memory_space<vmem>>, %arg14: memref<1x8x32xf32, #tpu.memory_space<vmem>>, %arg15: memref<12x8x8xf32, #tpu.memory_space<vmem>>, %arg16: memref<4x8x8xf32, #tpu.memory_space<vmem>>) attributes {dimension_semantics = [#tpu.dimension_semantics<parallel>], iteration_bounds = array<i64: 2>, scalar_prefetch = 0 : i64, scratch_operands = 2 : i64, tpu.core_type = #tpu.core_type<tc>, window_params = [{transform_indices = @transform_0, window_bounds = array<i64: 1, 8, 32>}, {pipeline_mode = #tpu.pipeline_mode<synchronous>, transform_indices = @transform_1, window_bounds = array<i64: 1, 32>}, {pipeline_mode = #tpu.pipeline_mode<synchronous>, transform_indices = @transform_2, window_bounds = array<i64: 1, 32>}, {pipeline_mode = #tpu.pipeline_mode<synchronous>, transform_indices = @transform_3, window_bounds = array<i64: 32, 96>}, {pipeline_mode = #tpu.pipeline_mode<synchronous>, transform_indices = @transform_4, window_bounds = array<i64: 1, 96>}, {pipeline_mode = #tpu.pipeline_mode<synchronous>, transform_indices = @transform_5, window_bounds = array<i64: 32, 32>}, {pipeline_mode = #tpu.pipeline_mode<synchronous>, transform_indices = @transform_6, window_bounds = array<i64: 1, 32>}, {pipeline_mode = #tpu.pipeline_mode<synchronous>, transform_indices = @transform_7, window_bounds = array<i64: 1, 32>}, {pipeline_mode = #tpu.pipeline_mode<synchronous>, transform_indices = @transform_8, window_bounds = array<i64: 1, 32>}, {pipeline_mode = #tpu.pipeline_mode<synchronous>, transform_indices = @transform_9, window_bounds = array<i64: 32, 64>}, {pipeline_mode = #tpu.pipeline_mode<synchronous>, transform_indices = @transform_10, window_bounds = array<i64: 1, 64>}, {pipeline_mode = #tpu.pipeline_mode<synchronous>, transform_indices = @transform_11, window_bounds = array<i64: 64, 32>}, {pipeline_mode = #tpu.pipeline_mode<synchronous>, transform_indices = @transform_12, window_bounds = array<i64: 1, 32>}, {transform_indices = @transform_13, window_bounds = array<i64: 1, 8, 32>}]} {
    %c0 = arith.constant 0 : index
    %c0_0 = arith.constant 0 : index
    %c0_1 = arith.constant 0 : index
    %0 = vector.load %arg1[%c0, %c0_0, %c0_1] : memref<1x8x32xf32, #tpu.memory_space<vmem>>, vector<1x8x32xf32>
    %1 = vector.shape_cast %0 : vector<1x8x32xf32> to vector<8x32xf32>
    %c0_2 = arith.constant 0 : index
    %c0_3 = arith.constant 0 : index
    %2 = vector.load %arg2[%c0_2, %c0_3] : memref<1x32xf32, #tpu.memory_space<vmem>>, vector<1x32xf32>
    %c0_4 = arith.constant 0 : index
    %c0_5 = arith.constant 0 : index
    %3 = vector.load %arg3[%c0_4, %c0_5] : memref<1x32xf32, #tpu.memory_space<vmem>>, vector<1x32xf32>
    %cst = arith.constant dense<0.000000e+00> : vector<8xf32>
    %4 = vector.multi_reduction <add>, %1, %cst [1] : vector<8x32xf32> to vector<8xf32>
    %5 = vector.shape_cast %4 : vector<8xf32> to vector<8x1xf32>
    %cst_6 = arith.constant 3.200000e+01 : f32
    %6 = vector.broadcast %cst_6 : f32 to vector<8x1xf32>
    %7 = arith.divf %5, %6 : vector<8x1xf32>
    %8 = vector.broadcast %7 : vector<8x1xf32> to vector<8x32xf32>
    %9 = arith.subf %1, %8 : vector<8x32xf32>
    %10 = arith.mulf %9, %9 : vector<8x32xf32>
    %cst_7 = arith.constant dense<0.000000e+00> : vector<8xf32>
    %11 = vector.multi_reduction <add>, %10, %cst_7 [1] : vector<8x32xf32> to vector<8xf32>
    %12 = vector.shape_cast %11 : vector<8xf32> to vector<8x1xf32>
    %cst_8 = arith.constant 3.200000e+01 : f32
    %13 = vector.broadcast %cst_8 : f32 to vector<8x1xf32>
    %14 = arith.divf %12, %13 : vector<8x1xf32>
    %15 = vector.broadcast %7 : vector<8x1xf32> to vector<8x32xf32>
    %16 = arith.subf %1, %15 : vector<8x32xf32>
    %cst_9 = arith.constant 9.99999997E-7 : f32
    %17 = vector.broadcast %cst_9 : f32 to vector<8x1xf32>
    %18 = arith.addf %14, %17 : vector<8x1xf32>
    %19 = math.rsqrt %18 : vector<8x1xf32>
    %20 = vector.broadcast %19 : vector<8x1xf32> to vector<8x32xf32>
    %21 = arith.mulf %16, %20 : vector<8x32xf32>
    %22 = vector.broadcast %2 : vector<1x32xf32> to vector<8x32xf32>
    %23 = arith.mulf %21, %22 : vector<8x32xf32>
    %24 = vector.broadcast %3 : vector<1x32xf32> to vector<8x32xf32>
    %25 = arith.addf %23, %24 : vector<8x32xf32>
    %26 = arith.truncf %25 : vector<8x32xf32> to vector<8x32xbf16>
    %c0_10 = arith.constant 0 : index
    %c0_11 = arith.constant 0 : index
    %27 = vector.load %arg4[%c0_10, %c0_11] : memref<32x96xbf16, #tpu.memory_space<vmem>>, vector<32x96xbf16>
    %cst_12 = arith.constant dense<0.000000e+00> : vector<8x96xf32>
    %28 = tpu.matmul %26, %27, %cst_12 {dimension_numbers = #tpu.dot_dimension_numbers<[1], [0], [0], [1], [0, 0, 1, 1], [], []>} : vector<8x32xbf16>, vector<32x96xbf16>, vector<8x96xf32> -> vector<8x96xf32>
    %c0_13 = arith.constant 0 : index
    %c0_14 = arith.constant 0 : index
    %29 = vector.load %arg5[%c0_13, %c0_14] : memref<1x96xf32, #tpu.memory_space<vmem>>, vector<1x96xf32>
    %30 = vector.broadcast %29 : vector<1x96xf32> to vector<8x96xf32>
    %31 = arith.addf %28, %30 : vector<8x96xf32>
    %32 = vector.extract_strided_slice %31 {offsets = [0, 0], sizes = [8, 8], strides = [1, 1]} : vector<8x96xf32> to vector<8x8xf32>
    %c0_15 = arith.constant 0 : index
    %c0_16 = arith.constant 0 : index
    %c0_17 = arith.constant 0 : index
    %33 = vector.load %arg15[%c0_15, %c0_16, %c0_17] : memref<12x8x8xf32, #tpu.memory_space<vmem>>, vector<1x8x8xf32>
    %34 = vector.shape_cast %33 : vector<1x8x8xf32> to vector<8x8xf32>
    %35 = vector.shape_cast %32 : vector<8x8xf32> to vector<1x8x8xf32>
    tpu.vector_store %arg15[%c0_15, %c0_16, %c0_17], %35 {strides = array<i32>} : memref<12x8x8xf32, #tpu.memory_space<vmem>>, vector<1x8x8xf32>,
    %36 = vector.extract_strided_slice %31 {offsets = [0, 32], sizes = [8, 8], strides = [1, 1]} : vector<8x96xf32> to vector<8x8xf32>
    %c4 = arith.constant 4 : index
    %c0_18 = arith.constant 0 : index
    %c0_19 = arith.constant 0 : index
    %37 = vector.load %arg15[%c4, %c0_18, %c0_19] : memref<12x8x8xf32, #tpu.memory_space<vmem>>, vector<1x8x8xf32>
    %38 = vector.shape_cast %37 : vector<1x8x8xf32> to vector<8x8xf32>
    %39 = vector.shape_cast %36 : vector<8x8xf32> to vector<1x8x8xf32>
    tpu.vector_store %arg15[%c4, %c0_18, %c0_19], %39 {strides = array<i32>} : memref<12x8x8xf32, #tpu.memory_space<vmem>>, vector<1x8x8xf32>,
    %40 = vector.extract_strided_slice %31 {offsets = [0, 64], sizes = [8, 8], strides = [1, 1]} : vector<8x96xf32> to vector<8x8xf32>
    %c8 = arith.constant 8 : index
    %c0_20 = arith.constant 0 : index
    %c0_21 = arith.constant 0 : index
    %41 = vector.load %arg15[%c8, %c0_20, %c0_21] : memref<12x8x8xf32, #tpu.memory_space<vmem>>, vector<1x8x8xf32>
    %42 = vector.shape_cast %41 : vector<1x8x8xf32> to vector<8x8xf32>
    %43 = vector.shape_cast %40 : vector<8x8xf32> to vector<1x8x8xf32>
    tpu.vector_store %arg15[%c8, %c0_20, %c0_21], %43 {strides = array<i32>} : memref<12x8x8xf32, #tpu.memory_space<vmem>>, vector<1x8x8xf32>,
    %44 = vector.extract_strided_slice %31 {offsets = [0, 8], sizes = [8, 8], strides = [1, 1]} : vector<8x96xf32> to vector<8x8xf32>
    %c1 = arith.constant 1 : index
    %c0_22 = arith.constant 0 : index
    %c0_23 = arith.constant 0 : index
    %45 = vector.load %arg15[%c1, %c0_22, %c0_23] : memref<12x8x8xf32, #tpu.memory_space<vmem>>, vector<1x8x8xf32>
    %46 = vector.shape_cast %45 : vector<1x8x8xf32> to vector<8x8xf32>
    %47 = vector.shape_cast %44 : vector<8x8xf32> to vector<1x8x8xf32>
    tpu.vector_store %arg15[%c1, %c0_22, %c0_23], %47 {strides = array<i32>} : memref<12x8x8xf32, #tpu.memory_space<vmem>>, vector<1x8x8xf32>,
    %48 = vector.extract_strided_slice %31 {offsets = [0, 40], sizes = [8, 8], strides = [1, 1]} : vector<8x96xf32> to vector<8x8xf32>
    %c5 = arith.constant 5 : index
    %c0_24 = arith.constant 0 : index
    %c0_25 = arith.constant 0 : index
    %49 = vector.load %arg15[%c5, %c0_24, %c0_25] : memref<12x8x8xf32, #tpu.memory_space<vmem>>, vector<1x8x8xf32>
    %50 = vector.shape_cast %49 : vector<1x8x8xf32> to vector<8x8xf32>
    %51 = vector.shape_cast %48 : vector<8x8xf32> to vector<1x8x8xf32>
    tpu.vector_store %arg15[%c5, %c0_24, %c0_25], %51 {strides = array<i32>} : memref<12x8x8xf32, #tpu.memory_space<vmem>>, vector<1x8x8xf32>,
    %52 = vector.extract_strided_slice %31 {offsets = [0, 72], sizes = [8, 8], strides = [1, 1]} : vector<8x96xf32> to vector<8x8xf32>
    %c9 = arith.constant 9 : index
    %c0_26 = arith.constant 0 : index
    %c0_27 = arith.constant 0 : index
    %53 = vector.load %arg15[%c9, %c0_26, %c0_27] : memref<12x8x8xf32, #tpu.memory_space<vmem>>, vector<1x8x8xf32>
    %54 = vector.shape_cast %53 : vector<1x8x8xf32> to vector<8x8xf32>
    %55 = vector.shape_cast %52 : vector<8x8xf32> to vector<1x8x8xf32>
    tpu.vector_store %arg15[%c9, %c0_26, %c0_27], %55 {strides = array<i32>} : memref<12x8x8xf32, #tpu.memory_space<vmem>>, vector<1x8x8xf32>,
    %56 = vector.extract_strided_slice %31 {offsets = [0, 16], sizes = [8, 8], strides = [1, 1]} : vector<8x96xf32> to vector<8x8xf32>
    %c2 = arith.constant 2 : index
    %c0_28 = arith.constant 0 : index
    %c0_29 = arith.constant 0 : index
    %57 = vector.load %arg15[%c2, %c0_28, %c0_29] : memref<12x8x8xf32, #tpu.memory_space<vmem>>, vector<1x8x8xf32>
    %58 = vector.shape_cast %57 : vector<1x8x8xf32> to vector<8x8xf32>
    %59 = vector.shape_cast %56 : vector<8x8xf32> to vector<1x8x8xf32>
    tpu.vector_store %arg15[%c2, %c0_28, %c0_29], %59 {strides = array<i32>} : memref<12x8x8xf32, #tpu.memory_space<vmem>>, vector<1x8x8xf32>,
    %60 = vector.extract_strided_slice %31 {offsets = [0, 48], sizes = [8, 8], strides = [1, 1]} : vector<8x96xf32> to vector<8x8xf32>
    %c6 = arith.constant 6 : index
    %c0_30 = arith.constant 0 : index
    %c0_31 = arith.constant 0 : index
    %61 = vector.load %arg15[%c6, %c0_30, %c0_31] : memref<12x8x8xf32, #tpu.memory_space<vmem>>, vector<1x8x8xf32>
    %62 = vector.shape_cast %61 : vector<1x8x8xf32> to vector<8x8xf32>
    %63 = vector.shape_cast %60 : vector<8x8xf32> to vector<1x8x8xf32>
    tpu.vector_store %arg15[%c6, %c0_30, %c0_31], %63 {strides = array<i32>} : memref<12x8x8xf32, #tpu.memory_space<vmem>>, vector<1x8x8xf32>,
    %64 = vector.extract_strided_slice %31 {offsets = [0, 80], sizes = [8, 8], strides = [1, 1]} : vector<8x96xf32> to vector<8x8xf32>
    %c10 = arith.constant 10 : index
    %c0_32 = arith.constant 0 : index
    %c0_33 = arith.constant 0 : index
    %65 = vector.load %arg15[%c10, %c0_32, %c0_33] : memref<12x8x8xf32, #tpu.memory_space<vmem>>, vector<1x8x8xf32>
    %66 = vector.shape_cast %65 : vector<1x8x8xf32> to vector<8x8xf32>
    %67 = vector.shape_cast %64 : vector<8x8xf32> to vector<1x8x8xf32>
    tpu.vector_store %arg15[%c10, %c0_32, %c0_33], %67 {strides = array<i32>} : memref<12x8x8xf32, #tpu.memory_space<vmem>>, vector<1x8x8xf32>,
    %68 = vector.extract_strided_slice %31 {offsets = [0, 24], sizes = [8, 8], strides = [1, 1]} : vector<8x96xf32> to vector<8x8xf32>
    %c3 = arith.constant 3 : index
    %c0_34 = arith.constant 0 : index
    %c0_35 = arith.constant 0 : index
    %69 = vector.load %arg15[%c3, %c0_34, %c0_35] : memref<12x8x8xf32, #tpu.memory_space<vmem>>, vector<1x8x8xf32>
    %70 = vector.shape_cast %69 : vector<1x8x8xf32> to vector<8x8xf32>
    %71 = vector.shape_cast %68 : vector<8x8xf32> to vector<1x8x8xf32>
    tpu.vector_store %arg15[%c3, %c0_34, %c0_35], %71 {strides = array<i32>} : memref<12x8x8xf32, #tpu.memory_space<vmem>>, vector<1x8x8xf32>,
    %72 = vector.extract_strided_slice %31 {offsets = [0, 56], sizes = [8, 8], strides = [1, 1]} : vector<8x96xf32> to vector<8x8xf32>
    %c7 = arith.constant 7 : index
    %c0_36 = arith.constant 0 : index
    %c0_37 = arith.constant 0 : index
    %73 = vector.load %arg15[%c7, %c0_36, %c0_37] : memref<12x8x8xf32, #tpu.memory_space<vmem>>, vector<1x8x8xf32>
    %74 = vector.shape_cast %73 : vector<1x8x8xf32> to vector<8x8xf32>
    %75 = vector.shape_cast %72 : vector<8x8xf32> to vector<1x8x8xf32>
    tpu.vector_store %arg15[%c7, %c0_36, %c0_37], %75 {strides = array<i32>} : memref<12x8x8xf32, #tpu.memory_space<vmem>>, vector<1x8x8xf32>,
    %76 = vector.extract_strided_slice %31 {offsets = [0, 88], sizes = [8, 8], strides = [1, 1]} : vector<8x96xf32> to vector<8x8xf32>
    %c11 = arith.constant 11 : index
    %c0_38 = arith.constant 0 : index
    %c0_39 = arith.constant 0 : index
    %77 = vector.load %arg15[%c11, %c0_38, %c0_39] : memref<12x8x8xf32, #tpu.memory_space<vmem>>, vector<1x8x8xf32>
    %78 = vector.shape_cast %77 : vector<1x8x8xf32> to vector<8x8xf32>
    %79 = vector.shape_cast %76 : vector<8x8xf32> to vector<1x8x8xf32>
    tpu.vector_store %arg15[%c11, %c0_38, %c0_39], %79 {strides = array<i32>} : memref<12x8x8xf32, #tpu.memory_space<vmem>>, vector<1x8x8xf32>,
    %c0_i32 = arith.constant 0 : i32
    %c4_i32 = arith.constant 4 : i32
    %80 = arith.addi %c0_i32, %c4_i32 : i32
    %c1_i32 = arith.constant 1 : i32
    scf.for %arg17 = %c0_i32 to %80 step %c1_i32  : i32 {
      %c1_i32_84 = arith.constant 1 : i32
      %150 = arith.muli %arg17, %c1_i32_84 : i32
      %c0_i32_85 = arith.constant 0 : i32
      %151 = arith.addi %c0_i32_85, %150 : i32
      %152 = arith.index_cast %151 : i32 to index
      %c0_86 = arith.constant 0 : index
      %c0_87 = arith.constant 0 : index
      %153 = vector.load %arg15[%152, %c0_86, %c0_87] : memref<12x8x8xf32, #tpu.memory_space<vmem>>, vector<1x8x8xf32>
      %154 = vector.shape_cast %153 : vector<1x8x8xf32> to vector<8x8xf32>
      %155 = arith.truncf %154 : vector<8x8xf32> to vector<8x8xbf16>
      %c4_i32_88 = arith.constant 4 : i32
      %156 = arith.addi %c4_i32_88, %151 : i32
      %157 = arith.index_cast %156 : i32 to index
      %c0_89 = arith.constant 0 : index
      %c0_90 = arith.constant 0 : index
      %158 = vector.load %arg15[%157, %c0_89, %c0_90] : memref<12x8x8xf32, #tpu.memory_space<vmem>>, vector<1x8x8xf32>
      %159 = vector.shape_cast %158 : vector<1x8x8xf32> to vector<8x8xf32>
      %160 = arith.truncf %159 : vector<8x8xf32> to vector<8x8xbf16>
      %c8_i32 = arith.constant 8 : i32
      %161 = arith.addi %c8_i32, %151 : i32
      %162 = arith.index_cast %161 : i32 to index
      %c0_91 = arith.constant 0 : index
      %c0_92 = arith.constant 0 : index
      %163 = vector.load %arg15[%162, %c0_91, %c0_92] : memref<12x8x8xf32, #tpu.memory_space<vmem>>, vector<1x8x8xf32>
      %164 = vector.shape_cast %163 : vector<1x8x8xf32> to vector<8x8xf32>
      %165 = arith.truncf %164 : vector<8x8xf32> to vector<8x8xbf16>
      %cst_93 = arith.constant dense<0.000000e+00> : vector<8x8xf32>
      %166 = tpu.matmul %155, %160, %cst_93 {dimension_numbers = #tpu.dot_dimension_numbers<[1], [1], [0], [0], [0, 0, 1, 0], [], []>} : vector<8x8xbf16>, vector<8x8xbf16>, vector<8x8xf32> -> vector<8x8xf32>
      %cst_94 = arith.constant dense<0xFF800000> : vector<8xf32>
      %167 = vector.multi_reduction <maximumf>, %166, %cst_94 [1] : vector<8x8xf32> to vector<8xf32>
      %168 = vector.shape_cast %167 : vector<8xf32> to vector<8x1xf32>
      %169 = vector.broadcast %168 : vector<8x1xf32> to vector<8x8xf32>
      %170 = arith.subf %166, %169 : vector<8x8xf32>
      %171 = math.exp %170 : vector<8x8xf32>
      %cst_95 = arith.constant dense<0.000000e+00> : vector<8xf32>
      %172 = vector.multi_reduction <add>, %171, %cst_95 [1] : vector<8x8xf32> to vector<8xf32>
      %173 = vector.shape_cast %172 : vector<8xf32> to vector<8x1xf32>
      %174 = tpu.reciprocal %173 {approx = true} : vector<8x1xf32> -> vector<8x1xf32>
      %175 = vector.broadcast %174 : vector<8x1xf32> to vector<8x8xf32>
      %176 = arith.mulf %171, %175 : vector<8x8xf32>
      %177 = arith.truncf %176 : vector<8x8xf32> to vector<8x8xbf16>
      %cst_96 = arith.constant dense<0.000000e+00> : vector<8x8xf32>
      %178 = tpu.matmul %177, %165, %cst_96 {dimension_numbers = #tpu.dot_dimension_numbers<[1], [0], [0], [1], [0, 0, 1, 1], [], []>} : vector<8x8xbf16>, vector<8x8xbf16>, vector<8x8xf32> -> vector<8x8xf32>
      %179 = arith.index_cast %151 : i32 to index
      %c0_97 = arith.constant 0 : index
      %c0_98 = arith.constant 0 : index
      %180 = vector.load %arg16[%179, %c0_97, %c0_98] : memref<4x8x8xf32, #tpu.memory_space<vmem>>, vector<1x8x8xf32>
      %181 = vector.shape_cast %180 : vector<1x8x8xf32> to vector<8x8xf32>
      %182 = vector.shape_cast %178 : vector<8x8xf32> to vector<1x8x8xf32>
      tpu.vector_store %arg16[%179, %c0_97, %c0_98], %182 {strides = array<i32>} : memref<4x8x8xf32, #tpu.memory_space<vmem>>, vector<1x8x8xf32>,
    }
    %c4_i32_40 = arith.constant 4 : i32
    %c0_41 = arith.constant 0 : index
    %c0_42 = arith.constant 0 : index
    %c0_43 = arith.constant 0 : index
    %81 = vector.load %arg16[%c0_41, %c0_42, %c0_43] : memref<4x8x8xf32, #tpu.memory_space<vmem>>, vector<1x8x8xf32>
    %82 = vector.shape_cast %81 : vector<1x8x8xf32> to vector<8x8xf32>
    %c1_44 = arith.constant 1 : index
    %c0_45 = arith.constant 0 : index
    %c0_46 = arith.constant 0 : index
    %83 = vector.load %arg16[%c1_44, %c0_45, %c0_46] : memref<4x8x8xf32, #tpu.memory_space<vmem>>, vector<1x8x8xf32>
    %84 = vector.shape_cast %83 : vector<1x8x8xf32> to vector<8x8xf32>
    %c2_47 = arith.constant 2 : index
    %c0_48 = arith.constant 0 : index
    %c0_49 = arith.constant 0 : index
    %85 = vector.load %arg16[%c2_47, %c0_48, %c0_49] : memref<4x8x8xf32, #tpu.memory_space<vmem>>, vector<1x8x8xf32>
    %86 = vector.shape_cast %85 : vector<1x8x8xf32> to vector<8x8xf32>
    %c3_50 = arith.constant 3 : index
    %c0_51 = arith.constant 0 : index
    %c0_52 = arith.constant 0 : index
    %87 = vector.load %arg16[%c3_50, %c0_51, %c0_52] : memref<4x8x8xf32, #tpu.memory_space<vmem>>, vector<1x8x8xf32>
    %88 = vector.shape_cast %87 : vector<1x8x8xf32> to vector<8x8xf32>
    %89 = tpu.concatenate %82, %84, %86, %88 in 1 : vector<8x8xf32>, vector<8x8xf32>, vector<8x8xf32>, vector<8x8xf32> -> vector<8x32xf32>
    %90 = arith.truncf %89 : vector<8x32xf32> to vector<8x32xbf16>
    %c0_53 = arith.constant 0 : index
    %c0_54 = arith.constant 0 : index
    %91 = vector.load %arg6[%c0_53, %c0_54] : memref<32x32xbf16, #tpu.memory_space<vmem>>, vector<32x32xbf16>
    %cst_55 = arith.constant dense<0.000000e+00> : vector<8x32xf32>
    %92 = tpu.matmul %90, %91, %cst_55 {dimension_numbers = #tpu.dot_dimension_numbers<[1], [0], [0], [1], [0, 0, 1, 1], [], []>} : vector<8x32xbf16>, vector<32x32xbf16>, vector<8x32xf32> -> vector<8x32xf32>
    %c0_56 = arith.constant 0 : index
    %c0_57 = arith.constant 0 : index
    %93 = vector.load %arg7[%c0_56, %c0_57] : memref<1x32xf32, #tpu.memory_space<vmem>>, vector<1x32xf32>
    %94 = vector.broadcast %93 : vector<1x32xf32> to vector<8x32xf32>
    %95 = arith.addf %92, %94 : vector<8x32xf32>
    %96 = arith.addf %1, %95 : vector<8x32xf32>
    %c0_58 = arith.constant 0 : index
    %c0_59 = arith.constant 0 : index
    %97 = vector.load %arg8[%c0_58, %c0_59] : memref<1x32xf32, #tpu.memory_space<vmem>>, vector<1x32xf32>
    %c0_60 = arith.constant 0 : index
    %c0_61 = arith.constant 0 : index
    %98 = vector.load %arg9[%c0_60, %c0_61] : memref<1x32xf32, #tpu.memory_space<vmem>>, vector<1x32xf32>
    %cst_62 = arith.constant dense<0.000000e+00> : vector<8xf32>
    %99 = vector.multi_reduction <add>, %96, %cst_62 [1] : vector<8x32xf32> to vector<8xf32>
    %100 = vector.shape_cast %99 : vector<8xf32> to vector<8x1xf32>
    %cst_63 = arith.constant 3.200000e+01 : f32
    %101 = vector.broadcast %cst_63 : f32 to vector<8x1xf32>
    %102 = arith.divf %100, %101 : vector<8x1xf32>
    %103 = vector.broadcast %102 : vector<8x1xf32> to vector<8x32xf32>
    %104 = arith.subf %96, %103 : vector<8x32xf32>
    %105 = arith.mulf %104, %104 : vector<8x32xf32>
    %cst_64 = arith.constant dense<0.000000e+00> : vector<8xf32>
    %106 = vector.multi_reduction <add>, %105, %cst_64 [1] : vector<8x32xf32> to vector<8xf32>
    %107 = vector.shape_cast %106 : vector<8xf32> to vector<8x1xf32>
    %cst_65 = arith.constant 3.200000e+01 : f32
    %108 = vector.broadcast %cst_65 : f32 to vector<8x1xf32>
    %109 = arith.divf %107, %108 : vector<8x1xf32>
    %110 = vector.broadcast %102 : vector<8x1xf32> to vector<8x32xf32>
    %111 = arith.subf %96, %110 : vector<8x32xf32>
    %cst_66 = arith.constant 9.99999997E-7 : f32
    %112 = vector.broadcast %cst_66 : f32 to vector<8x1xf32>
    %113 = arith.addf %109, %112 : vector<8x1xf32>
    %114 = math.rsqrt %113 : vector<8x1xf32>
    %115 = vector.broadcast %114 : vector<8x1xf32> to vector<8x32xf32>
    %116 = arith.mulf %111, %115 : vector<8x32xf32>
    %117 = vector.broadcast %97 : vector<1x32xf32> to vector<8x32xf32>
    %118 = arith.mulf %116, %117 : vector<8x32xf32>
    %119 = vector.broadcast %98 : vector<1x32xf32> to vector<8x32xf32>
    %120 = arith.addf %118, %119 : vector<8x32xf32>
    %121 = arith.truncf %120 : vector<8x32xf32> to vector<8x32xbf16>
    %c0_67 = arith.constant 0 : index
    %c0_68 = arith.constant 0 : index
    %122 = vector.load %arg10[%c0_67, %c0_68] : memref<32x64xbf16, #tpu.memory_space<vmem>>, vector<32x64xbf16>
    %cst_69 = arith.constant dense<0.000000e+00> : vector<8x64xf32>
    %123 = tpu.matmul %121, %122, %cst_69 {dimension_numbers = #tpu.dot_dimension_numbers<[1], [0], [0], [1], [0, 0, 1, 1], [], []>} : vector<8x32xbf16>, vector<32x64xbf16>, vector<8x64xf32> -> vector<8x64xf32>
    %c0_70 = arith.constant 0 : index
    %c0_71 = arith.constant 0 : index
    %124 = vector.load %arg11[%c0_70, %c0_71] : memref<1x64xf32, #tpu.memory_space<vmem>>, vector<1x64xf32>
    %125 = vector.broadcast %124 : vector<1x64xf32> to vector<8x64xf32>
    %126 = arith.addf %123, %125 : vector<8x64xf32>
    %cst_72 = arith.constant 5.000000e-01 : f32
    %127 = vector.broadcast %cst_72 : f32 to vector<8x64xf32>
    %128 = arith.mulf %127, %126 : vector<8x64xf32>
    %cst_73 = arith.constant 4.471500e-02 : f32
    %129 = vector.broadcast %cst_73 : f32 to vector<8x64xf32>
    %130 = arith.mulf %129, %126 : vector<8x64xf32>
    %131 = arith.mulf %130, %126 : vector<8x64xf32>
    %132 = arith.mulf %131, %126 : vector<8x64xf32>
    %133 = arith.addf %126, %132 : vector<8x64xf32>
    %cst_74 = arith.constant 0.797884583 : f32
    %134 = vector.broadcast %cst_74 : f32 to vector<8x64xf32>
    %135 = arith.mulf %134, %133 : vector<8x64xf32>
    %136 = math.tanh %135 : vector<8x64xf32>
    %cst_75 = arith.constant 1.000000e+00 : f32
    %137 = vector.broadcast %cst_75 : f32 to vector<8x64xf32>
    %138 = arith.addf %137, %136 : vector<8x64xf32>
    %139 = arith.mulf %128, %138 : vector<8x64xf32>
    %140 = arith.truncf %139 : vector<8x64xf32> to vector<8x64xbf16>
    %c0_76 = arith.constant 0 : index
    %c0_77 = arith.constant 0 : index
    %141 = vector.load %arg12[%c0_76, %c0_77] : memref<64x32xbf16, #tpu.memory_space<vmem>>, vector<64x32xbf16>
    %cst_78 = arith.constant dense<0.000000e+00> : vector<8x32xf32>
    %142 = tpu.matmul %140, %141, %cst_78 {dimension_numbers = #tpu.dot_dimension_numbers<[1], [0], [0], [1], [0, 0, 1, 1], [], []>} : vector<8x64xbf16>, vector<64x32xbf16>, vector<8x32xf32> -> vector<8x32xf32>
    %c0_79 = arith.constant 0 : index
    %c0_80 = arith.constant 0 : index
    %143 = vector.load %arg13[%c0_79, %c0_80] : memref<1x32xf32, #tpu.memory_space<vmem>>, vector<1x32xf32>
    %144 = vector.broadcast %143 : vector<1x32xf32> to vector<8x32xf32>
    %145 = arith.addf %142, %144 : vector<8x32xf32>
    %146 = arith.addf %96, %145 : vector<8x32xf32>
    %c0_81 = arith.constant 0 : index
    %c0_82 = arith.constant 0 : index
    %c0_83 = arith.constant 0 : index
    %147 = vector.load %arg14[%c0_81, %c0_82, %c0_83] : memref<1x8x32xf32, #tpu.memory_space<vmem>>, vector<1x8x32xf32>
    %148 = vector.shape_cast %147 : vector<1x8x32xf32> to vector<8x32xf32>
    %149 = vector.shape_cast %146 : vector<8x32xf32> to vector<1x8x32xf32>
    tpu.vector_store %arg14[%c0_81, %c0_82, %c0_83], %149 {strides = array<i32>} : memref<1x8x32xf32, #tpu.memory_space<vmem>>, vector<1x8x32xf32>,
    return
  }
  func.func @transform_0(%arg0: i32) -> (i32, i32, i32) {
    %c0_i32 = arith.constant 0 : i32
    %c0_i32_0 = arith.constant 0 : i32
    %c0_i32_1 = arith.constant 0 : i32
    return %arg0, %c0_i32, %c0_i32_0 : i32, i32, i32
  }
  func.func @transform_1(%arg0: i32) -> (i32, i32) {
    %c0_i32 = arith.constant 0 : i32
    %c0_i32_0 = arith.constant 0 : i32
    %c0_i32_1 = arith.constant 0 : i32
    return %c0_i32, %c0_i32_0 : i32, i32
  }
  func.func @transform_2(%arg0: i32) -> (i32, i32) {
    %c0_i32 = arith.constant 0 : i32
    %c0_i32_0 = arith.constant 0 : i32
    %c0_i32_1 = arith.constant 0 : i32
    return %c0_i32, %c0_i32_0 : i32, i32
  }
  func.func @transform_3(%arg0: i32) -> (i32, i32) {
    %c0_i32 = arith.constant 0 : i32
    %c0_i32_0 = arith.constant 0 : i32
    %c0_i32_1 = arith.constant 0 : i32
    return %c0_i32, %c0_i32_0 : i32, i32
  }
  func.func @transform_4(%arg0: i32) -> (i32, i32) {
    %c0_i32 = arith.constant 0 : i32
    %c0_i32_0 = arith.constant 0 : i32
    %c0_i32_1 = arith.constant 0 : i32
    return %c0_i32, %c0_i32_0 : i32, i32
  }
  func.func @transform_5(%arg0: i32) -> (i32, i32) {
    %c0_i32 = arith.constant 0 : i32
    %c0_i32_0 = arith.constant 0 : i32
    %c0_i32_1 = arith.constant 0 : i32
    return %c0_i32, %c0_i32_0 : i32, i32
  }
  func.func @transform_6(%arg0: i32) -> (i32, i32) {
    %c0_i32 = arith.constant 0 : i32
    %c0_i32_0 = arith.constant 0 : i32
    %c0_i32_1 = arith.constant 0 : i32
    return %c0_i32, %c0_i32_0 : i32, i32
  }
  func.func @transform_7(%arg0: i32) -> (i32, i32) {
    %c0_i32 = arith.constant 0 : i32
    %c0_i32_0 = arith.constant 0 : i32
    %c0_i32_1 = arith.constant 0 : i32
    return %c0_i32, %c0_i32_0 : i32, i32
  }
  func.func @transform_8(%arg0: i32) -> (i32, i32) {
    %c0_i32 = arith.constant 0 : i32
    %c0_i32_0 = arith.constant 0 : i32
    %c0_i32_1 = arith.constant 0 : i32
    return %c0_i32, %c0_i32_0 : i32, i32
  }
  func.func @transform_9(%arg0: i32) -> (i32, i32) {
    %c0_i32 = arith.constant 0 : i32
    %c0_i32_0 = arith.constant 0 : i32
    %c0_i32_1 = arith.constant 0 : i32
    return %c0_i32, %c0_i32_0 : i32, i32
  }
  func.func @transform_10(%arg0: i32) -> (i32, i32) {
    %c0_i32 = arith.constant 0 : i32
    %c0_i32_0 = arith.constant 0 : i32
    %c0_i32_1 = arith.constant 0 : i32
    return %c0_i32, %c0_i32_0 : i32, i32
  }
  func.func @transform_11(%arg0: i32) -> (i32, i32) {
    %c0_i32 = arith.constant 0 : i32
    %c0_i32_0 = arith.constant 0 : i32
    %c0_i32_1 = arith.constant 0 : i32
    return %c0_i32, %c0_i32_0 : i32, i32
  }
  func.func @transform_12(%arg0: i32) -> (i32, i32) {
    %c0_i32 = arith.constant 0 : i32
    %c0_i32_0 = arith.constant 0 : i32
    %c0_i32_1 = arith.constant 0 : i32
    return %c0_i32, %c0_i32_0 : i32, i32
  }
  func.func @transform_13(%arg0: i32) -> (i32, i32, i32) {
    %c0_i32 = arith.constant 0 : i32
    %c0_i32_0 = arith.constant 0 : i32
    %c0_i32_1 = arith.constant 0 : i32
    return %arg0, %c0_i32, %c0_i32_0 : i32, i32, i32
  }
}

</mosaic_0001>

<llo_original>
// kernel: tpu_custom_call.1
$region0: #{tpu_custom_call.1}
  #allocation0 [shape = 'u32[]', space=smem, size = 0x4, offset = 0x4, fixed_abs, tag = 'smem constant byte address 0x4 - core index']
  #allocation1 [shape = 'u32[144,128]{1,0:T(1,128)}', space=vmem, size = 0x12000, scoped, tag = 'internal scratch']
  #allocation2 [shape = 'f32[12,8,8]{2,1,0:T(8,128)}', space=vmem, size = 0xc000, scoped, tag = 'scratch operand']
  #allocation3 [shape = 'f32[4,8,8]{2,1,0:T(8,128)}', space=vmem, size = 0x4000, scoped, tag = 'scratch operand']
  %s0 = inlined_call_operand.vmem [shape: f32[2,8,32], index: 0, kind: input, shape index: {}]
  %s1 = inlined_call_operand.vmem [shape: f32[1,32], index: 1, kind: input, shape index: {}]
  %s2 = inlined_call_operand.vmem [shape: f32[1,32], index: 2, kind: input, shape index: {}]
  %s3 = inlined_call_operand.vmem [shape: bf16[32,96], index: 3, kind: input, shape index: {}]
  %s4 = inlined_call_operand.vmem [shape: f32[1,96], index: 4, kind: input, shape index: {}]
  %s5 = inlined_call_operand.vmem [shape: bf16[32,32], index: 5, kind: input, shape index: {}]
  %s6 = inlined_call_operand.vmem [shape: f32[1,32], index: 6, kind: input, shape index: {}]
  %s7 = inlined_call_operand.hbm [shape: f32[1,32], index: 7, kind: input, shape index: {}]
  %s8 = inlined_call_operand.hbm [shape: f32[1,32], index: 8, kind: input, shape index: {}]
  %s9 = inlined_call_operand.hbm [shape: bf16[32,64], index: 9, kind: input, shape index: {}]
  %s10 = inlined_call_operand.hbm [shape: f32[1,64], index: 10, kind: input, shape index: {}]
  %s11 = inlined_call_operand.vmem [shape: bf16[64,32], index: 11, kind: input, shape index: {}]
  %s12 = inlined_call_operand.vmem [shape: f32[1,32], index: 12, kind: input, shape index: {}]
  %s13 = inlined_call_operand.hbm [shape: f32[2,8,32], index: 13, kind: output, shape index: {}]
  %s14 = sld [smem:[#allocation0]]
  $region108: #{tpu_custom_call.1} parent=0
    _
  %s16 = ssub.s32 1, %s14
  %s17 = scalar_select 0, %s16, %s14
  $region1: #{tpu_custom_call.1} parent=0
    #allocation4 [shape = 'u8[512]{0}', space=vmem, size = 0x400, scoped, tag = 'input window, operand 7, single buffered']
    #allocation5 [shape = 's32[2]{0}', space=sflag, size = 0x8, scoped, tag = 'scoped memory for tpu_custom_call.1']
    #allocation6 [shape = 's32[2]{0}', space=sflag, size = 0x8, scoped, tag = 'scoped memory for tpu_custom_call.1']
    #allocation7 [shape = 'u8[512]{0}', space=vmem, size = 0x400, scoped, tag = 'input window, operand 8, single buffered']
    #allocation8 [shape = 's32[1]{0}', space=sflag, size = 0x4, scoped, tag = 'scoped memory for tpu_custom_call.1']
    #allocation9 [shape = 'u8[8192]{0}', space=vmem, size = 0x2000, scoped, tag = 'input window, operand 9, single buffered']
    #allocation10 [shape = 'u8[512]{0}', space=vmem, size = 0x400, scoped, tag = 'input window, operand 10, single buffered']
    #allocation11 [shape = 's32[1]{0}', space=sflag, size = 0x4, scoped, tag = 'scoped memory for tpu_custom_call.1']
    #allocation12 [shape = 'u8[8192]{0}', space=vmem, size = 0x2000, scoped, tag = 'output window, operand 0']
    %18 = vsyncpa [#allocation5], 0
    %19 = vsyncpa [#allocation8], 0
    %20 = vsyncpa [#allocation11], 0
    %21 = vsyncpa [#allocation6], 0
    %s22 = scalar_lea.sflag [#allocation6], 1
    %23 = vsyncpa %s22, 0
    loop: start=0, step=1, limit=4
    $region2: #{tpu_custom_call.1} parent=1 // loop_pre_header
      _
    $region3: #{tpu_custom_call.1} parent=1 // loop_header
      %s25 = sphi 0, %s29
      %p26 = scmp.ge.s32.totalorder %s25, 4
      %s35 = sphi 0, %s37
      %s38 = sphi 0, %s35
      %s39 = sphi 0, %s38
      %s55 = sphi 0, %s39
      %s59 = sphi 0, %s59
      %s61 = sphi 0, %s59
      %s62 = sphi 0, %s61
      %s76 = sphi 0, %s62
      %s80 = sphi 0, %s80
      %s82 = sphi 0, %s80
      %s83 = sphi 0, %s82
      %s97 = sphi 0, %s83
      %s101 = sphi 0, %s101
      %s103 = sphi 0, %s101
      %s104 = sphi 0, %s103
      %s118 = sphi 0, %s104
      %s122 = sphi 0, %s122
      %s124 = sphi 0, %s122
      %s125 = sphi 0, %s124
      %s139 = sphi 0, %s125
      %s143 = sphi 0, %s143
      %s145 = sphi 0, %s143
      %s146 = sphi 0, %s145
      %s160 = sphi 0, %s146
      %s164 = sphi 0, %s164
      %s166 = sphi 0, %s164
      %s167 = sphi 0, %s166
      %s181 = sphi 0, %s167
      %s185 = sphi 0, %s185
      %s187 = sphi 0, %s185
      %s188 = sphi 0, %s187
      %s202 = sphi 0, %s188
      %s206 = sphi 0, %s206
      %s208 = sphi 0, %s206
      %s209 = sphi 0, %s208
      %s223 = sphi 0, %s209
      %s227 = sphi 0, %s227
      %s229 = sphi 0, %s227
      %s230 = sphi 0, %s229
      %s244 = sphi 0, %s230
      %s248 = sphi 0, %s248
      %s250 = sphi 0, %s248
      %s251 = sphi 0, %s250
      %s265 = sphi 0, %s251
      %s269 = sphi 0, %s269
      %s271 = sphi 0, %s269
      %s272 = sphi 0, %s271
      %s286 = sphi 0, %s272
      %s290 = sphi 0, %s290
      %s292 = sphi 0, %s290
      %s293 = sphi 0, %s292
      %s307 = sphi 0, %s293
      %s313 = sphi 0, %s315
      %s316 = sphi 0, %s313
      %s317 = sphi 0, %s316
      %s333 = sphi 0, %s317
    $region4: #{tpu_custom_call.1} parent=1 // loop_header_branch
      %28 = sbr.rel (%p26) target = $region8
    $region5: #{tpu_custom_call.1} parent=1 // loop_body
      %s30 = ssub.s32 %s25, 1
      %s31 = ssub.s32 %s25, 2
      %s32 = sadd.s32 %s25, 1
      %s33 = ssub.s32 %s25, %s32
      %p34 = scmp.eq.s32.totalorder %s33, 0
      %s36 = sadd.s32 %s35, 1
      %s37 = scalar_select %p34, %s35, %s36
      %p40 = pneg %p34
      %p41 = scmp.eq.s32.totalorder %s25, 1
      %p42 = por %p40, %p41
      %p43 = scmp.ne.s32.totalorder %s35, %s38
      %p44 = scmp.eq.s32.totalorder %s25, 0
      %p45 = por %p43, %p44
      %p46 = scmp.ne.s32.totalorder %s35, %s38
      %p47 = scmp.eq.s32.totalorder %s30, 1
      %p48 = por %p46, %p47
      %p49 = scmp.ne.s32.totalorder %s38, %s39
      %p50 = scmp.eq.s32.totalorder %s30, 0
      %p51 = por %p49, %p50
      %p52 = scmp.ne.s32.totalorder %s38, %s39
      %p53 = scmp.eq.s32.totalorder %s31, 1
      %p54 = por %p52, %p53
      %p56 = scmp.ne.s32.totalorder %s39, %s55
      %p57 = scmp.eq.s32.totalorder %s31, 0
      %p58 = por %p56, %p57
      %s60 = sadd.s32 %s59, 1
      %p63 = scmp.eq.s32.totalorder %s25, 1
      %p64 = scmp.ne.s32.totalorder %s59, %s61
      %p65 = scmp.eq.s32.totalorder %s25, 0
      %p66 = por %p64, %p65
      %p67 = scmp.ne.s32.totalorder %s59, %s61
      %p68 = scmp.eq.s32.totalorder %s30, 1
      %p69 = por %p67, %p68
      %p70 = scmp.ne.s32.totalorder %s61, %s62
      %p71 = scmp.eq.s32.totalorder %s30, 0
      %p72 = por %p70, %p71
      %p73 = scmp.ne.s32.totalorder %s61, %s62
      %p74 = scmp.eq.s32.totalorder %s31, 1
      %p75 = por %p73, %p74
      %p77 = scmp.ne.s32.totalorder %s62, %s76
      %p78 = scmp.eq.s32.totalorder %s31, 0
      %p79 = por %p77, %p78
      %s81 = sadd.s32 %s80, 1
      %p84 = scmp.eq.s32.totalorder %s25, 1
      %p85 = scmp.ne.s32.totalorder %s80, %s82
      %p86 = scmp.eq.s32.totalorder %s25, 0
      %p87 = por %p85, %p86
      %p88 = scmp.ne.s32.totalorder %s80, %s82
      %p89 = scmp.eq.s32.totalorder %s30, 1
      %p90 = por %p88, %p89
      %p91 = scmp.ne.s32.totalorder %s82, %s83
      %p92 = scmp.eq.s32.totalorder %s30, 0
      %p93 = por %p91, %p92
      %p94 = scmp.ne.s32.totalorder %s82, %s83
      %p95 = scmp.eq.s32.totalorder %s31, 1
      %p96 = por %p94, %p95
      %p98 = scmp.ne.s32.totalorder %s83, %s97
      %p99 = scmp.eq.s32.totalorder %s31, 0
      %p100 = por %p98, %p99
      %s102 = sadd.s32 %s101, 1
      %p105 = scmp.eq.s32.totalorder %s25, 1
      %p106 = scmp.ne.s32.totalorder %s101, %s103
      %p107 = scmp.eq.s32.totalorder %s25, 0
      %p108 = por %p106, %p107
      %p109 = scmp.ne.s32.totalorder %s101, %s103
      %p110 = scmp.eq.s32.totalorder %s30, 1
      %p111 = por %p109, %p110
      %p112 = scmp.ne.s32.totalorder %s103, %s104
      %p113 = scmp.eq.s32.totalorder %s30, 0
      %p114 = por %p112, %p113
      %p115 = scmp.ne.s32.totalorder %s103, %s104
      %p116 = scmp.eq.s32.totalorder %s31, 1
      %p117 = por %p115, %p116
      %p119 = scmp.ne.s32.totalorder %s104, %s118
      %p120 = scmp.eq.s32.totalorder %s31, 0
      %p121 = por %p119, %p120
      %s123 = sadd.s32 %s122, 1
      %p126 = scmp.eq.s32.totalorder %s25, 1
      %p127 = scmp.ne.s32.totalorder %s122, %s124
      %p128 = scmp.eq.s32.totalorder %s25, 0
      %p129 = por %p127, %p128
      %p130 = scmp.ne.s32.totalorder %s122, %s124
      %p131 = scmp.eq.s32.totalorder %s30, 1
      %p132 = por %p130, %p131
      %p133 = scmp.ne.s32.totalorder %s124, %s125
      %p134 = scmp.eq.s32.totalorder %s30, 0
      %p135 = por %p133, %p134
      %p136 = scmp.ne.s32.totalorder %s124, %s125
      %p137 = scmp.eq.s32.totalorder %s31, 1
      %p138 = por %p136, %p137
      %p140 = scmp.ne.s32.totalorder %s125, %s139
      %p141 = scmp.eq.s32.totalorder %s31, 0
      %p142 = por %p140, %p141
      %s144 = sadd.s32 %s143, 1
      %p147 = scmp.eq.s32.totalorder %s25, 1
      %p148 = scmp.ne.s32.totalorder %s143, %s145
      %p149 = scmp.eq.s32.totalorder %s25, 0
      %p150 = por %p148, %p149
      %p151 = scmp.ne.s32.totalorder %s143, %s145
      %p152 = scmp.eq.s32.totalorder %s30, 1
      %p153 = por %p151, %p152
      %p154 = scmp.ne.s32.totalorder %s145, %s146
      %p155 = scmp.eq.s32.totalorder %s30, 0
      %p156 = por %p154, %p155
      %p157 = scmp.ne.s32.totalorder %s145, %s146
      %p158 = scmp.eq.s32.totalorder %s31, 1
      %p159 = por %p157, %p158
      %p161 = scmp.ne.s32.totalorder %s146, %s160
      %p162 = scmp.eq.s32.totalorder %s31, 0
      %p163 = por %p161, %p162
      %s165 = sadd.s32 %s164, 1
      %p168 = scmp.eq.s32.totalorder %s25, 1
      %p169 = scmp.ne.s32.totalorder %s164, %s166
      %p170 = scmp.eq.s32.totalorder %s25, 0
      %p171 = por %p169, %p170
      %p172 = scmp.ne.s32.totalorder %s164, %s166
      %p173 = scmp.eq.s32.totalorder %s30, 1
      %p174 = por %p172, %p173
      %p175 = scmp.ne.s32.totalorder %s166, %s167
      %p176 = scmp.eq.s32.totalorder %s30, 0
      %p177 = por %p175, %p176
      %p178 = scmp.ne.s32.totalorder %s166, %s167
      %p179 = scmp.eq.s32.totalorder %s31, 1
      %p180 = por %p178, %p179
      %p182 = scmp.ne.s32.totalorder %s167, %s181
      %p183 = scmp.eq.s32.totalorder %s31, 0
      %p184 = por %p182, %p183
      %s186 = sadd.s32 %s185, 1
      %p189 = scmp.eq.s32.totalorder %s25, 1
      %p190 = scmp.ne.s32.totalorder %s185, %s187
      %p191 = scmp.eq.s32.totalorder %s25, 0
      %p192 = por %p190, %p191
      %p193 = scmp.ne.s32.totalorder %s185, %s187
      %p194 = scmp.eq.s32.totalorder %s30, 1
      %p195 = por %p193, %p194
      %p196 = scmp.ne.s32.totalorder %s187, %s188
      %p197 = scmp.eq.s32.totalorder %s30, 0
      %p198 = por %p196, %p197
      %p199 = scmp.ne.s32.totalorder %s187, %s188
      %p200 = scmp.eq.s32.totalorder %s31, 1
      %p201 = por %p199, %p200
      %p203 = scmp.ne.s32.totalorder %s188, %s202
      %p204 = scmp.eq.s32.totalorder %s31, 0
      %p205 = por %p203, %p204
      %s207 = sadd.s32 %s206, 1
      %p210 = scmp.eq.s32.totalorder %s25, 1
      %p211 = scmp.ne.s32.totalorder %s206, %s208
      %p212 = scmp.eq.s32.totalorder %s25, 0
      %p213 = por %p211, %p212
      %p214 = scmp.ne.s32.totalorder %s206, %s208
      %p215 = scmp.eq.s32.totalorder %s30, 1
      %p216 = por %p214, %p215
      %p217 = scmp.ne.s32.totalorder %s208, %s209
      %p218 = scmp.eq.s32.totalorder %s30, 0
      %p219 = por %p217, %p218
      %p220 = scmp.ne.s32.totalorder %s208, %s209
      %p221 = scmp.eq.s32.totalorder %s31, 1
      %p222 = por %p220, %p221
      %p224 = scmp.ne.s32.totalorder %s209, %s223
      %p225 = scmp.eq.s32.totalorder %s31, 0
      %p226 = por %p224, %p225
      %s228 = sadd.s32 %s227, 1
      %p231 = scmp.eq.s32.totalorder %s25, 1
      %p232 = scmp.ne.s32.totalorder %s227, %s229
      %p233 = scmp.eq.s32.totalorder %s25, 0
      %p234 = por %p232, %p233
      %p235 = scmp.ne.s32.totalorder %s227, %s229
      %p236 = scmp.eq.s32.totalorder %s30, 1
      %p237 = por %p235, %p236
      %p238 = scmp.ne.s32.totalorder %s229, %s230
      %p239 = scmp.eq.s32.totalorder %s30, 0
      %p240 = por %p238, %p239
      %p241 = scmp.ne.s32.totalorder %s229, %s230
      %p242 = scmp.eq.s32.totalorder %s31, 1
      %p243 = por %p241, %p242
      %p245 = scmp.ne.s32.totalorder %s230, %s244
      %p246 = scmp.eq.s32.totalorder %s31, 0
      %p247 = por %p245, %p246
      %s249 = sadd.s32 %s248, 1
      %p252 = scmp.eq.s32.totalorder %s25, 1
      %p253 = scmp.ne.s32.totalorder %s248, %s250
      %p254 = scmp.eq.s32.totalorder %s25, 0
      %p255 = por %p253, %p254
      %p256 = scmp.ne.s32.totalorder %s248, %s250
      %p257 = scmp.eq.s32.totalorder %s30, 1
      %p258 = por %p256, %p257
      %p259 = scmp.ne.s32.totalorder %s250, %s251
      %p260 = scmp.eq.s32.totalorder %s30, 0
      %p261 = por %p259, %p260
      %p262 = scmp.ne.s32.totalorder %s250, %s251
      %p263 = scmp.eq.s32.totalorder %s31, 1
      %p264 = por %p262, %p263
      %p266 = scmp.ne.s32.totalorder %s251, %s265
      %p267 = scmp.eq.s32.totalorder %s31, 0
      %p268 = por %p266, %p267
      %s270 = sadd.s32 %s269, 1
      %p273 = scmp.eq.s32.totalorder %s25, 1
      %p274 = scmp.ne.s32.totalorder %s269, %s271
      %p275 = scmp.eq.s32.totalorder %s25, 0
      %p276 = por %p274, %p275
      %p277 = scmp.ne.s32.totalorder %s269, %s271
      %p278 = scmp.eq.s32.totalorder %s30, 1
      %p279 = por %p277, %p278
      %p280 = scmp.ne.s32.totalorder %s271, %s272
      %p281 = scmp.eq.s32.totalorder %s30, 0
      %p282 = por %p280, %p281
      %p283 = scmp.ne.s32.totalorder %s271, %s272
      %p284 = scmp.eq.s32.totalorder %s31, 1
      %p285 = por %p283, %p284
      %p287 = scmp.ne.s32.totalorder %s272, %s286
      %p288 = scmp.eq.s32.totalorder %s31, 0
      %p289 = por %p287, %p288
      %s291 = sadd.s32 %s290, 1
      %p294 = scmp.eq.s32.totalorder %s25, 1
      %p295 = scmp.ne.s32.totalorder %s290, %s292
      %p296 = scmp.eq.s32.totalorder %s25, 0
      %p297 = por %p295, %p296
      %p298 = scmp.ne.s32.totalorder %s290, %s292
      %p299 = scmp.eq.s32.totalorder %s30, 1
      %p300 = por %p298, %p299
      %p301 = scmp.ne.s32.totalorder %s292, %s293
      %p302 = scmp.eq.s32.totalorder %s30, 0
      %p303 = por %p301, %p302
      %p304 = scmp.ne.s32.totalorder %s292, %s293
      %p305 = scmp.eq.s32.totalorder %s31, 1
      %p306 = por %p304, %p305
      %p308 = scmp.ne.s32.totalorder %s293, %s307
      %p309 = scmp.eq.s32.totalorder %s31, 0
      %p310 = por %p308, %p309
      %s311 = ssub.s32 %s25, %s32
      %p312 = scmp.eq.s32.totalorder %s311, 0
      %s314 = sadd.s32 %s313, 1
      %s315 = scalar_select %p312, %s313, %s314
      %p318 = pneg %p312
      %p319 = scmp.eq.s32.totalorder %s25, 1
      %p320 = por %p318, %p319
      %p321 = scmp.ne.s32.totalorder %s313, %s316
      %p322 = scmp.eq.s32.totalorder %s25, 0
      %p323 = por %p321, %p322
      %p324 = scmp.ne.s32.totalorder %s313, %s316
      %p325 = scmp.eq.s32.totalorder %s30, 1
      %p326 = por %p324, %p325
      %p327 = scmp.ne.s32.totalorder %s316, %s317
      %p328 = scmp.eq.s32.totalorder %s30, 0
      %p329 = por %p327, %p328
      %p330 = scmp.ne.s32.totalorder %s316, %s317
      %p331 = scmp.eq.s32.totalorder %s31, 1
      %p332 = por %p330, %p331
      %p334 = scmp.ne.s32.totalorder %s317, %s333
      %p335 = scmp.eq.s32.totalorder %s31, 0
      %p336 = por %p334, %p335
      %p337 = scmp.le.s32.totalorder 1, %s25
      %p338 = scmp.lt.s32.totalorder %s25, 3
      %p339 = pnand %p337, %p338
      %p340 = pneg %p339
      // Predicated region
      $region9: #{tpu_custom_call.1} parent=5 // pred_check
        _
      $region10: #{tpu_custom_call.1} parent=5 // pred_check_branch
        %342 = sbr.rel (%p339) target = $region12
      $region11: #{tpu_custom_call.1} parent=5 // pred_region
        %s343 = ssub.s32 %s25, 1
        // Predicated region
        $region13: #{tpu_custom_call.1} parent=11 // pred_check
          %p344 = pneg %p72
        $region14: #{tpu_custom_call.1} parent=11 // pred_check_branch
          %346 = sbr.rel (%p344) target = $region16
        $region15: #{tpu_custom_call.1} parent=11 // pred_region
          _
        $region16: #{tpu_custom_call.1} parent=11 // pred_fallthru
          _
        // Predicated region
        $region17: #{tpu_custom_call.1} parent=11 // pred_check
          %p347 = pneg %p93
        $region18: #{tpu_custom_call.1} parent=11 // pred_check_branch
          %349 = sbr.rel (%p347) target = $region20
        $region19: #{tpu_custom_call.1} parent=11 // pred_region
          _
        $region20: #{tpu_custom_call.1} parent=11 // pred_fallthru
          _
        // Predicated region
        $region21: #{tpu_custom_call.1} parent=11 // pred_check
          %p350 = pneg %p114
        $region22: #{tpu_custom_call.1} parent=11 // pred_check_branch
          %352 = sbr.rel (%p350) target = $region24
        $region23: #{tpu_custom_call.1} parent=11 // pred_region
          _
        $region24: #{tpu_custom_call.1} parent=11 // pred_fallthru
          _
        // Predicated region
        $region25: #{tpu_custom_call.1} parent=11 // pred_check
          %p353 = pneg %p135
        $region26: #{tpu_custom_call.1} parent=11 // pred_check_branch
          %355 = sbr.rel (%p353) target = $region28
        $region27: #{tpu_custom_call.1} parent=11 // pred_region
          _
        $region28: #{tpu_custom_call.1} parent=11 // pred_fallthru
          _
        // Predicated region
        $region29: #{tpu_custom_call.1} parent=11 // pred_check
          %p356 = pneg %p156
        $region30: #{tpu_custom_call.1} parent=11 // pred_check_branch
          %358 = sbr.rel (%p356) target = $region32
        $region31: #{tpu_custom_call.1} parent=11 // pred_region
          _
        $region32: #{tpu_custom_call.1} parent=11 // pred_fallthru
          _
        // Predicated region
        $region33: #{tpu_custom_call.1} parent=11 // pred_check
          %p359 = pneg %p177
        $region34: #{tpu_custom_call.1} parent=11 // pred_check_branch
          %361 = sbr.rel (%p359) target = $region36
        $region35: #{tpu_custom_call.1} parent=11 // pred_region
          _
        $region36: #{tpu_custom_call.1} parent=11 // pred_fallthru
          _
        // Predicated region
        $region37: #{tpu_custom_call.1} parent=11 // pred_check
          %p362 = pneg %p198
        $region38: #{tpu_custom_call.1} parent=11 // pred_check_branch
          %364 = sbr.rel (%p362) target = $region40
        $region39: #{tpu_custom_call.1} parent=11 // pred_region
          %s366 = ssub.s32 16, 16
          %367 = vsyncadd [#allocation5], %s366
          %s369 = sshll.u32 [#allocation4], 4
          %s370 = int_to_ptr.vmem [resolvable:$true] %s369
          %372 = dma.hbm_to_vmem [thread:$0]  %s7, 16, %s370, [#allocation5]
        $region40: #{tpu_custom_call.1} parent=11 // pred_fallthru
          _
        // Predicated region
        $region41: #{tpu_custom_call.1} parent=11 // pred_check
          %p373 = pneg %p219
        $region42: #{tpu_custom_call.1} parent=11 // pred_check_branch
          %375 = sbr.rel (%p373) target = $region44
        $region43: #{tpu_custom_call.1} parent=11 // pred_region
          %s377 = ssub.s32 16, 16
          %378 = vsyncadd [#allocation8], %s377
          %s380 = sshll.u32 [#allocation7], 4
          %s381 = int_to_ptr.vmem [resolvable:$true] %s380
          %383 = dma.hbm_to_vmem [thread:$0]  %s8, 16, %s381, [#allocation8]
        $region44: #{tpu_custom_call.1} parent=11 // pred_fallthru
          _
        // Predicated region
        $region45: #{tpu_custom_call.1} parent=11 // pred_check
          %p384 = pneg %p240
        $region46: #{tpu_custom_call.1} parent=11 // pred_check_branch
          %386 = sbr.rel (%p384) target = $region48
        $region47: #{tpu_custom_call.1} parent=11 // pred_region
          %s388 = ssub.s32 256, 256
          %389 = vsyncadd [#allocation8], %s388
          %s390 = sshll.u32 [#allocation9], 4
          %s391 = int_to_ptr.vmem [resolvable:$true] %s390
          %396 = dma.hbm_to_vmem [thread:$0]  %s9, 256, %s391, [#allocation8], 64, 64, 4
        $region48: #{tpu_custom_call.1} parent=11 // pred_fallthru
          _
        // Predicated region
        $region49: #{tpu_custom_call.1} parent=11 // pred_check
          %p397 = pneg %p261
        $region50: #{tpu_custom_call.1} parent=11 // pred_check_branch
          %399 = sbr.rel (%p397) target = $region52
        $region51: #{tpu_custom_call.1} parent=11 // pred_region
          %s401 = ssub.s32 16, 16
          %402 = vsyncadd [#allocation11], %s401
          %s404 = sshll.u32 [#allocation10], 4
          %s405 = int_to_ptr.vmem [resolvable:$true] %s404
          %407 = dma.hbm_to_vmem [thread:$0]  %s10, 16, %s405, [#allocation11]
        $region52: #{tpu_custom_call.1} parent=11 // pred_fallthru
          _
        // Predicated region
        $region53: #{tpu_custom_call.1} parent=11 // pred_check
          %p408 = pneg %p282
        $region54: #{tpu_custom_call.1} parent=11 // pred_check_branch
          %410 = sbr.rel (%p408) target = $region56
        $region55: #{tpu_custom_call.1} parent=11 // pred_region
          _
        $region56: #{tpu_custom_call.1} parent=11 // pred_fallthru
          _
        // Predicated region
        $region57: #{tpu_custom_call.1} parent=11 // pred_check
          %p411 = pneg %p303
        $region58: #{tpu_custom_call.1} parent=11 // pred_check_branch
          %413 = sbr.rel (%p411) target = $region60
        $region59: #{tpu_custom_call.1} parent=11 // pred_region
          _
        $region60: #{tpu_custom_call.1} parent=11 // pred_fallthru
          _
      $region12: #{tpu_custom_call.1} parent=5 // pred_fallthru
        _
      %p414 = scmp.lt.s32.totalorder %s25, 2
      // Predicated region
      $region61: #{tpu_custom_call.1} parent=5 // pred_check
        %p415 = pneg %p414
      $region62: #{tpu_custom_call.1} parent=5 // pred_check_branch
        %417 = sbr.rel (%p415) target = $region64
      $region63: #{tpu_custom_call.1} parent=5 // pred_region
        // Predicated region
        $region65: #{tpu_custom_call.1} parent=63 // pred_check
          %p418 = pneg %p45
        $region66: #{tpu_custom_call.1} parent=63 // pred_check_branch
          %420 = sbr.rel (%p418) target = $region68
        $region67: #{tpu_custom_call.1} parent=63 // pred_region
          %p421 = scmp.lt.s32.totalorder %s25, 1
          %s422 = scalar_select %p421, %s25, 1
          %s423 = smul.addr %s422, 8
          %s424 = scalar_lea.vmem %s0, %s423
        $region68: #{tpu_custom_call.1} parent=63 // pred_fallthru
          _
      $region64: #{tpu_custom_call.1} parent=5 // pred_fallthru
        _
      %p425 = scmp.le.s32.totalorder 1, %s25
      %p426 = scmp.lt.s32.totalorder %s25, 3
      %p427 = pnand %p425, %p426
      %p428 = pneg %p427
      // Predicated region
      $region69: #{tpu_custom_call.1} parent=5 // pred_check
        _
      $region70: #{tpu_custom_call.1} parent=5 // pred_check_branch
        %430 = sbr.rel (%p427) target = $region72
      $region71: #{tpu_custom_call.1} parent=5 // pred_region
        %s431 = ssub.s32 %s25, 1
        // Predicated region
        $region73: #{tpu_custom_call.1} parent=71 // pred_check
          %p432 = pneg %p198
        $region74: #{tpu_custom_call.1} parent=71 // pred_check_branch
          %434 = sbr.rel (%p432) target = $region76
        $region75: #{tpu_custom_call.1} parent=71 // pred_region
          %435 = dma.done [#allocation5], 16
        $region76: #{tpu_custom_call.1} parent=71 // pred_fallthru
          _
        // Predicated region
        $region77: #{tpu_custom_call.1} parent=71 // pred_check
          %p436 = pneg %p219
        $region78: #{tpu_custom_call.1} parent=71 // pred_check_branch
          %438 = sbr.rel (%p436) target = $region80
        $region79: #{tpu_custom_call.1} parent=71 // pred_region
          %439 = dma.done [#allocation8], 16
        $region80: #{tpu_custom_call.1} parent=71 // pred_fallthru
          _
        // Predicated region
        $region81: #{tpu_custom_call.1} parent=71 // pred_check
          %p440 = pneg %p240
        $region82: #{tpu_custom_call.1} parent=71 // pred_check_branch
          %442 = sbr.rel (%p440) target = $region84
        $region83: #{tpu_custom_call.1} parent=71 // pred_region
          %443 = dma.done [#allocation8], 256
        $region84: #{tpu_custom_call.1} parent=71 // pred_fallthru
          _
        // Predicated region
        $region85: #{tpu_custom_call.1} parent=71 // pred_check
          %p444 = pneg %p261
        $region86: #{tpu_custom_call.1} parent=71 // pred_check_branch
          %446 = sbr.rel (%p444) target = $region88
        $region87: #{tpu_custom_call.1} parent=71 // pred_region
          %447 = dma.done [#allocation11], 16
        $region88: #{tpu_custom_call.1} parent=71 // pred_fallthru
          _
        %p448 = scmp.lt.s32.totalorder %s30, 1
        %s449 = scalar_select %p448, %s30, 1
        %s450 = smul.addr %s449, 8
        %s451 = scalar_lea.vmem %s0, %s450
        %p452 = pneg %p51
        %p453 = pneg %p48
        %p454 = pneg %p72
        %p455 = pneg %p69
        %p456 = pneg %p93
        %p457 = pneg %p90
        %p458 = pneg %p114
        %p459 = pneg %p111
        %p460 = pneg %p135
        %p461 = pneg %p132
        %p462 = pneg %p156
        %p463 = pneg %p153
        %p464 = pneg %p177
        %p465 = pneg %p174
        %p466 = pneg %p198
        %p467 = pneg %p195
        %p468 = pneg %p219
        %p469 = pneg %p216
        %p470 = pneg %p240
        %p471 = pneg %p237
        %p472 = pneg %p261
        %p473 = pneg %p258
        %p474 = pneg %p282
        %p475 = pneg %p279
        %p476 = pneg %p303
        %p477 = pneg %p300
        %p478 = pneg %p329
        %p479 = pneg %p326
        %s480 = sand.u32 %s316, 1
        %s481 = scalar_lea.sflag [#allocation6], %s480
        %s482 = sand.u32 %s316, 1
        %s483 = smul.addr %s482, 8
        %s484 = scalar_lea.vmem [#allocation12], %s483
        %p485 = scmp.lt.s32.totalorder %s30, 1
        %s486 = scalar_select %p485, %s30, 1
        %s487 = smul.addr %s486, 8
        %s488 = scalar_lea.vmem %s0, %s487
        %v490 = vld [vmem:[%s488] sm:$0xff]
        %v491 = vld [vmem:[%s1] sm:$0x1]
        %v492 = vld [vmem:[%s2] sm:$0x1]
        %vm493 = vcmask 261120
        %v494 = vsel %vm493, %v490, 0.0
        %495 = vadd.xlane.f32.xlu0 %v494
        %v496 = vpop.xlane.xlu0 %495
        %v497 = vrcp.pop 32.0
        %v498 = vmul.f32 %v496, %v497
        %v499 = vsub.f32 %v490, %v498
        %v500 = vmul.f32 %v499, %v499
        %v501 = vsel %vm493, %v500, 0.0
        %502 = vadd.xlane.f32.xlu0 %v501
        %v503 = vpop.xlane.xlu0 %502
        %v504 = vmul.f32 %v503, %v497
        %v505 = vadd.f32 %v504, 1e-06
        %v506 = vrsqrt.pop %v505
        %v507 = vmul.f32 %v499, %v506
        %v509 = vlaneseq
        %v510 = vshrl.u32 %v509, 7
        %v511 = vsub.s32 0, %v510
        %v512 = vrot.slane %v491, %v511
        %v514 = vmul.f32 %v507, %v512
        %v516 = vlaneseq
        %v517 = vshrl.u32 %v516, 7
        %v518 = vsub.s32 0, %v517
        %v519 = vrot.slane %v492, %v518
        %v521 = vadd.f32 %v514, %v519
        %v522 = vpack.c.bf16 %v521, %v521
        %v523 = vld [vmem:[%s3] sm:$0xf]
        %v524 = vld [vmem:[%s3 + $0x4] sm:$0xf]
        %v525 = vld [vmem:[%s3 + $0x8] sm:$0xf]
        %v526 = vld [vmem:[%s3 + $0xc] sm:$0xf]
        %v527 = vld [vmem:[%s4] sm:$0x1]
        %v529 = vlaneseq
        %v530 = vshrl.u32 %v529, 7
        %v531 = vsub.s32 0, %v530
        %v532 = vrot.slane %v527, %v531
        %v538 = vunpack.c.l.b16 %v523
        %v539 = vunpack.c.l.b16 %v524
        %v540 = vunpack.c.l.b16 %v525
        %v541 = vunpack.c.l.b16 %v526
        %v542 = vpack.c.b16 %v539, %v538
        %v543 = vpack.c.b16 %v541, %v540
        %v547 = vsel %vm493, %v522, 0
        %549 = vmatprep.subr.bf16.mxu0 0
        %550 = vmatpush1.bf16.msra.mxu0 0
        %551 = vmatprep.subr.bf16.mxu0 0
        %552 = vmatpush1.bf16.msra.mxu0 0
        %553 = vmatprep.subr.bf16.mxu0 0
        %554 = vmatpush1.bf16.msra.mxu0 0
        %555 = vmatprep.subr.bf16.mxu0 0
        %556 = vmatpush1.bf16.msra.mxu0 0
        %557 = vmatprep.subr.bf16.mxu0 0
        %558 = vmatpush1.bf16.msra.mxu0 0
        %559 = vmatprep.subr.bf16.mxu0 0
        %560 = vmatpush1.bf16.msra.mxu0 0
        %561 = vmatprep.subr.bf16.mxu0 0
        %562 = vmatpush1.bf16.msra.mxu0 %v543
        %563 = vmatprep.subr.bf16.mxu0 0
        %564 = vmatpush1.bf16.msra.mxu0 %v542
        %565 = vmatprep.subr.bf16.mxu0 0
        %566 = vmatpush2.bf16.msra.mxu0 0
        %567 = vmatprep.subr.bf16.mxu0 0
        %568 = vmatpush2.bf16.msra.mxu0 0
        %569 = vmatprep.subr.bf16.mxu0 0
        %570 = vmatpush2.bf16.msra.mxu0 0
        %571 = vmatprep.subr.bf16.mxu0 0
        %572 = vmatpush2.bf16.msra.mxu0 0
        %573 = vmatprep.subr.bf16.mxu0 0
        %574 = vmatpush2.bf16.msra.mxu0 0
        %575 = vmatprep.subr.bf16.mxu0 0
        %576 = vmatpush2.bf16.msra.mxu0 0
        %577 = vmatprep.subr.bf16.mxu0 0
        %578 = vmatpush2.bf16.msra.mxu0 0
        %579 = vmatprep.subr.bf16.mxu0 0
        %580 = vmatpush2.bf16.msra.mxu0 0
        %581 = vmatprep.mubr.bf16.mxu0 0
        %582 = vmatmul.mubr.bf16.gmra.mxu0 %v547
        %v583 = vpop.f32.mrf.mxu0
        %v584 = vadd.f32 %v532, %v583
        %v585 = vpop.f32.mrf.mxu0
        %v586 = vpop.f32.mrf.mxu0
        %v587 = vpop.f32.mrf.mxu0
        %588 = vdwg.mxu0
        %vm589 = vcmask 64512
        %590 = vst.msk [vmem:[#allocation2] sm:$0xff] %vm589, %v584
        %592 = vrot.lane.b32.xlu0 %v584, 96
        %v593 = vpop.permute.xlu0 %592
        %s595 = scalar_lea.vmem [#allocation2], 32
        %596 = vst.msk [vmem:[%s595] sm:$0xff] %vm589, %v593
        %597 = vrot.lane.b32.xlu0 %v584, 64
        %v598 = vpop.permute.xlu0 %597
        %s600 = scalar_lea.vmem [#allocation2], 64
        %601 = vst.msk [vmem:[%s600] sm:$0xff] %vm589, %v598
        %602 = vrot.lane.b32.xlu0 %v584, 120
        %v603 = vpop.permute.xlu0 %602
        %s605 = scalar_lea.vmem [#allocation2], 8
        %606 = vst.msk [vmem:[%s605] sm:$0xff] %vm589, %v603
        %607 = vrot.lane.b32.xlu0 %v584, 88
        %v608 = vpop.permute.xlu0 %607
        %s610 = scalar_lea.vmem [#allocation2], 40
        %611 = vst.msk [vmem:[%s610] sm:$0xff] %vm589, %v608
        %612 = vrot.lane.b32.xlu0 %v584, 56
        %v613 = vpop.permute.xlu0 %612
        %s615 = scalar_lea.vmem [#allocation2], 72
        %616 = vst.msk [vmem:[%s615] sm:$0xff] %vm589, %v613
        %617 = vrot.lane.b32.xlu0 %v584, 112
        %v618 = vpop.permute.xlu0 %617
        %s620 = scalar_lea.vmem [#allocation2], 16
        %621 = vst.msk [vmem:[%s620] sm:$0xff] %vm589, %v618
        %622 = vrot.lane.b32.xlu0 %v584, 80
        %v623 = vpop.permute.xlu0 %622
        %s625 = scalar_lea.vmem [#allocation2], 48
        %626 = vst.msk [vmem:[%s625] sm:$0xff] %vm589, %v623
        %627 = vrot.lane.b32.xlu0 %v584, 48
        %v628 = vpop.permute.xlu0 %627
        %s630 = scalar_lea.vmem [#allocation2], 80
        %631 = vst.msk [vmem:[%s630] sm:$0xff] %vm589, %v628
        %632 = vrot.lane.b32.xlu0 %v584, 104
        %v633 = vpop.permute.xlu0 %632
        %s635 = scalar_lea.vmem [#allocation2], 24
        %636 = vst.msk [vmem:[%s635] sm:$0xff] %vm589, %v633
        %637 = vrot.lane.b32.xlu0 %v584, 72
        %v638 = vpop.permute.xlu0 %637
        %s640 = scalar_lea.vmem [#allocation2], 56
        %641 = vst.msk [vmem:[%s640] sm:$0xff] %vm589, %v638
        %642 = vrot.lane.b32.xlu0 %v584, 40
        %v643 = vpop.permute.xlu0 %642
        %s645 = scalar_lea.vmem [#allocation2], 88
        %646 = vst.msk [vmem:[%s645] sm:$0xff] %vm589, %v643
        loop: start=0, step=1, limit=4
        $region89: #{tpu_custom_call.1} parent=71 // loop_pre_header
          _
        $region90: #{tpu_custom_call.1} parent=71 // loop_header
          %s648 = sphi 0, %s652
          %p649 = scmp.ge.s32.totalorder %s648, 4
        $region91: #{tpu_custom_call.1} parent=71 // loop_header_branch
          %651 = sbr.rel (%p649) target = $region95
        $region92: #{tpu_custom_call.1} parent=71 // loop_body
          %s653 = smul.u32 %s648, 8
          %s654 = scalar_lea.vmem [#allocation2], %s653
          %v655 = vld [vmem:[%s654] sm:$0xff]
          %v656 = vpack.c.bf16 %v655, %v655
          %s657 = sadd.s32 %s648, 4
          %s658 = smul.u32 %s657, 8
          %s659 = scalar_lea.vmem [#allocation2], %s658
          %v660 = vld [vmem:[%s659] sm:$0xff]
          %v661 = vpack.c.bf16 %v660, %v660
          %s662 = sadd.s32 %s648, 8
          %s663 = smul.u32 %s662, 8
          %s664 = scalar_lea.vmem [#allocation2], %s663
          %v665 = vld [vmem:[%s664] sm:$0xff]
          %v666 = vpack.c.bf16 %v665, %v665
          %v668 = vsel %vm589, %v656, 0
          %v671 = vsel %vm589, %v661, 0
          %673 = vmatprep.subr.bf16.mxu0 0
          %674 = vmatpush1.bf16.xpose.msra.mxu0 0
          %675 = vmatprep.subr.bf16.mxu0 0
          %676 = vmatpush1.bf16.xpose.msra.mxu0 0
          %677 = vmatprep.subr.bf16.mxu0 0
          %678 = vmatpush1.bf16.xpose.msra.mxu0 0
          %679 = vmatprep.subr.bf16.mxu0 0
          %680 = vmatpush1.bf16.xpose.msra.mxu0 0
          %681 = vmatprep.subr.bf16.mxu0 0
          %682 = vmatpush1.bf16.xpose.msra.mxu0 0
          %683 = vmatprep.subr.bf16.mxu0 0
          %684 = vmatpush1.bf16.xpose.msra.mxu0 0
          %685 = vmatprep.subr.bf16.mxu0 0
          %686 = vmatpush1.bf16.xpose.msra.mxu0 0
          %687 = vmatprep.subr.bf16.mxu0 0
          %688 = vmatpush1.bf16.xpose.msra.mxu0 %v671
          %689 = vmatprep.subr.bf16.mxu0 0
          %690 = vmatpush2.bf16.xpose.msra.mxu0 0
          %691 = vmatprep.subr.bf16.mxu0 0
          %692 = vmatpush2.bf16.xpose.msra.mxu0 0
          %693 = vmatprep.subr.bf16.mxu0 0
          %694 = vmatpush2.bf16.xpose.msra.mxu0 0
          %695 = vmatprep.subr.bf16.mxu0 0
          %696 = vmatpush2.bf16.xpose.msra.mxu0 0
          %697 = vmatprep.subr.bf16.mxu0 0
          %698 = vmatpush2.bf16.xpose.msra.mxu0 0
          %699 = vmatprep.subr.bf16.mxu0 0
          %700 = vmatpush2.bf16.xpose.msra.mxu0 0
          %701 = vmatprep.subr.bf16.mxu0 0
          %702 = vmatpush2.bf16.xpose.msra.mxu0 0
          %703 = vmatprep.subr.bf16.mxu0 0
          %704 = vmatpush2.bf16.xpose.msra.mxu0 0
          %705 = vmatprep.mubr.bf16.mxu0 0
          %706 = vmatmul.mubr.bf16.gmra.mxu0 %v668
          %v707 = vpop.f32.mrf.mxu0
          %v708 = vadd.f32 0.0, %v707
          %v709 = vpop.f32.mrf.mxu0
          %v710 = vpop.f32.mrf.mxu0
          %v711 = vpop.f32.mrf.mxu0
          %712 = vdwg.mxu0
          %v713 = vsel %vm589, %v708, -inf
          %714 = vmax.xlane.f32.xlu0 %v713
          %v715 = vpop.xlane.xlu0 %714
          %v716 = vsub.f32 %v708, %v715
          %v717 = vmul.f32 %v716, 1.442695
          %v718 = vpow.pop %v717
          %v719 = vsel %vm589, %v718, 0.0
          %720 = vadd.xlane.f32.xlu0 %v719
          %v721 = vpop.xlane.xlu0 %720
          %v722 = vrcp.pop %v721
          %v723 = vmul.f32 %v718, %v722
          %v724 = vpack.c.bf16 %v723, %v723
          %v726 = vsel %vm589, %v724, 0
          %vm728 = vcmask 1043456
          %v730 = vsel %vm728, %v666, 0
          %732 = vmatprep.subr.bf16.mxu0 0
          %733 = vmatpush1.bf16.msra.mxu0 0
          %734 = vmatprep.subr.bf16.mxu0 0
          %735 = vmatpush1.bf16.msra.mxu0 0
          %736 = vmatprep.subr.bf16.mxu0 0
          %737 = vmatpush1.bf16.msra.mxu0 0
          %738 = vmatprep.subr.bf16.mxu0 0
          %739 = vmatpush1.bf16.msra.mxu0 0
          %740 = vmatprep.subr.bf16.mxu0 0
          %741 = vmatpush1.bf16.msra.mxu0 0
          %742 = vmatprep.subr.bf16.mxu0 0
          %743 = vmatpush1.bf16.msra.mxu0 0
          %744 = vmatprep.subr.bf16.mxu0 0
          %745 = vmatpush1.bf16.msra.mxu0 0
          %746 = vmatprep.subr.bf16.mxu0 0
          %747 = vmatpush1.bf16.msra.mxu0 %v730
          %748 = vmatprep.subr.bf16.mxu0 0
          %749 = vmatpush2.bf16.msra.mxu0 0
          %750 = vmatprep.subr.bf16.mxu0 0
          %751 = vmatpush2.bf16.msra.mxu0 0
          %752 = vmatprep.subr.bf16.mxu0 0
          %753 = vmatpush2.bf16.msra.mxu0 0
          %754 = vmatprep.subr.bf16.mxu0 0
          %755 = vmatpush2.bf16.msra.mxu0 0
          %756 = vmatprep.subr.bf16.mxu0 0
          %757 = vmatpush2.bf16.msra.mxu0 0
          %758 = vmatprep.subr.bf16.mxu0 0
          %759 = vmatpush2.bf16.msra.mxu0 0
          %760 = vmatprep.subr.bf16.mxu0 0
          %761 = vmatpush2.bf16.msra.mxu0 0
          %762 = vmatprep.subr.bf16.mxu0 0
          %763 = vmatpush2.bf16.msra.mxu0 0
          %764 = vmatprep.mubr.bf16.mxu0 0
          %765 = vmatmul.mubr.bf16.gmra.mxu0 %v726
          %v766 = vpop.f32.mrf.mxu0
          %v767 = vadd.f32 0.0, %v766
          %v768 = vpop.f32.mrf.mxu0
          %v769 = vpop.f32.mrf.mxu0
          %v770 = vpop.f32.mrf.mxu0
          %771 = vdwg.mxu0
          %s772 = scalar_lea.vmem [#allocation3], %s653
          %773 = vst.msk [vmem:[%s772] sm:$0xff] %vm589, %v767
        $region93: #{tpu_custom_call.1} parent=71 // loop_footer
          %s652 = sadd.s32 1, %s648
        $region94: #{tpu_custom_call.1} parent=71 // loop_footer_branch
          %647 = sbr.rel target = $region90
        $region95: #{tpu_custom_call.1} parent=71 // loop_exit
          _
        %v774 = vld [vmem:[#allocation3] sm:$0xff]
        %s775 = scalar_lea.vmem [#allocation3], 8
        %v776 = vld [vmem:[%s775] sm:$0xff]
        %s777 = scalar_lea.vmem [#allocation3], 16
        %v778 = vld [vmem:[%s777] sm:$0xff]
        %s779 = scalar_lea.vmem [#allocation3], 24
        %v780 = vld [vmem:[%s779] sm:$0xff]
        %782 = vrot.lane.b32.xlu0 %v776, 8
        %v783 = vpop.permute.xlu0 %782
        %786 = vrot.lane.b32.xlu0 %v778, 16
        %v787 = vpop.permute.xlu0 %786
        %790 = vrot.lane.b32.xlu0 %v780, 24
        %v791 = vpop.permute.xlu0 %790
        %v793 = vsel %vm589, %v774, %v783
        %vm794 = vcmask 130048
        %v795 = vsel %vm794, %v793, %v787
        %vm796 = vcmask 195584
        %v797 = vsel %vm796, %v795, %v791
        %v798 = vpack.c.bf16 %v797, %v797
        %v799 = vld [vmem:[%s5] sm:$0xf]
        %v800 = vld [vmem:[%s5 + $0x4] sm:$0xf]
        %v801 = vld [vmem:[%s5 + $0x8] sm:$0xf]
        %v802 = vld [vmem:[%s5 + $0xc] sm:$0xf]
        %v803 = vld [vmem:[%s6] sm:$0x1]
        %v805 = vlaneseq
        %v806 = vshrl.u32 %v805, 7
        %v807 = vsub.s32 0, %v806
        %v808 = vrot.slane %v803, %v807
        %v814 = vunpack.c.l.b16 %v799
        %v815 = vunpack.c.l.b16 %v800
        %v816 = vunpack.c.l.b16 %v801
        %v817 = vunpack.c.l.b16 %v802
        %v818 = vpack.c.b16 %v815, %v814
        %v819 = vpack.c.b16 %v817, %v816
        %v823 = vsel %vm493, %v798, 0
        %825 = vmatprep.subr.bf16.mxu0 0
        %826 = vmatpush1.bf16.msra.mxu0 0
        %827 = vmatprep.subr.bf16.mxu0 0
        %828 = vmatpush1.bf16.msra.mxu0 0
        %829 = vmatprep.subr.bf16.mxu0 0
        %830 = vmatpush1.bf16.msra.mxu0 0
        %831 = vmatprep.subr.bf16.mxu0 0
        %832 = vmatpush1.bf16.msra.mxu0 0
        %833 = vmatprep.subr.bf16.mxu0 0
        %834 = vmatpush1.bf16.msra.mxu0 0
        %835 = vmatprep.subr.bf16.mxu0 0
        %836 = vmatpush1.bf16.msra.mxu0 0
        %837 = vmatprep.subr.bf16.mxu0 0
        %838 = vmatpush1.bf16.msra.mxu0 %v819
        %839 = vmatprep.subr.bf16.mxu0 0
        %840 = vmatpush1.bf16.msra.mxu0 %v818
        %841 = vmatprep.subr.bf16.mxu0 0
        %842 = vmatpush2.bf16.msra.mxu0 0
        %843 = vmatprep.subr.bf16.mxu0 0
        %844 = vmatpush2.bf16.msra.mxu0 0
        %845 = vmatprep.subr.bf16.mxu0 0
        %846 = vmatpush2.bf16.msra.mxu0 0
        %847 = vmatprep.subr.bf16.mxu0 0
        %848 = vmatpush2.bf16.msra.mxu0 0
        %849 = vmatprep.subr.bf16.mxu0 0
        %850 = vmatpush2.bf16.msra.mxu0 0
        %851 = vmatprep.subr.bf16.mxu0 0
        %852 = vmatpush2.bf16.msra.mxu0 0
        %853 = vmatprep.subr.bf16.mxu0 0
        %854 = vmatpush2.bf16.msra.mxu0 0
        %855 = vmatprep.subr.bf16.mxu0 0
        %856 = vmatpush2.bf16.msra.mxu0 0
        %857 = vmatprep.mubr.bf16.mxu0 0
        %858 = vmatmul.mubr.bf16.gmra.mxu0 %v823
        %v859 = vpop.f32.mrf.mxu0
        %v860 = vadd.f32 %v808, %v859
        %v861 = vpop.f32.mrf.mxu0
        %v862 = vpop.f32.mrf.mxu0
        %v863 = vpop.f32.mrf.mxu0
        %864 = vdwg.mxu0
        %v865 = vadd.f32 %v490, %v860
        %v866 = vld [vmem:[#allocation4] sm:$0x1]
        %v867 = vld [vmem:[#allocation7] sm:$0x1]
        %v868 = vsel %vm493, %v865, 0.0
        %869 = vadd.xlane.f32.xlu0 %v868
        %v870 = vpop.xlane.xlu0 %869
        %v871 = vmul.f32 %v870, %v497
        %v872 = vsub.f32 %v865, %v871
        %v873 = vmul.f32 %v872, %v872
        %v874 = vsel %vm493, %v873, 0.0
        %875 = vadd.xlane.f32.xlu0 %v874
        %v876 = vpop.xlane.xlu0 %875
        %v877 = vmul.f32 %v876, %v497
        %v878 = vadd.f32 %v877, 1e-06
        %v879 = vrsqrt.pop %v878
        %v880 = vmul.f32 %v872, %v879
        %v882 = vlaneseq
        %v883 = vshrl.u32 %v882, 7
        %v884 = vsub.s32 0, %v883
        %v885 = vrot.slane %v866, %v884
        %v887 = vmul.f32 %v880, %v885
        %v889 = vlaneseq
        %v890 = vshrl.u32 %v889, 7
        %v891 = vsub.s32 0, %v890
        %v892 = vrot.slane %v867, %v891
        %v894 = vadd.f32 %v887, %v892
        %v895 = vpack.c.bf16 %v894, %v894
        %v896 = vld [vmem:[#allocation9] sm:$0xf]
        %v897 = vld [vmem:[#allocation9 + $0x4] sm:$0xf]
        %v898 = vld [vmem:[#allocation9 + $0x8] sm:$0xf]
        %v899 = vld [vmem:[#allocation9 + $0xc] sm:$0xf]
        %v900 = vld [vmem:[#allocation10] sm:$0x1]
        %v902 = vlaneseq
        %v903 = vshrl.u32 %v902, 7
        %v904 = vsub.s32 0, %v903
        %v905 = vrot.slane %v900, %v904
        %v911 = vunpack.c.l.b16 %v896
        %v912 = vunpack.c.l.b16 %v897
        %v913 = vunpack.c.l.b16 %v898
        %v914 = vunpack.c.l.b16 %v899
        %v915 = vpack.c.b16 %v912, %v911
        %v916 = vpack.c.b16 %v914, %v913
        %v920 = vsel %vm493, %v895, 0
        %922 = vmatprep.subr.bf16.mxu0 0
        %923 = vmatpush1.bf16.msra.mxu0 0
        %924 = vmatprep.subr.bf16.mxu0 0
        %925 = vmatpush1.bf16.msra.mxu0 0
        %926 = vmatprep.subr.bf16.mxu0 0
        %927 = vmatpush1.bf16.msra.mxu0 0
        %928 = vmatprep.subr.bf16.mxu0 0
        %929 = vmatpush1.bf16.msra.mxu0 0
        %930 = vmatprep.subr.bf16.mxu0 0
        %931 = vmatpush1.bf16.msra.mxu0 0
        %932 = vmatprep.subr.bf16.mxu0 0
        %933 = vmatpush1.bf16.msra.mxu0 0
        %934 = vmatprep.subr.bf16.mxu0 0
        %935 = vmatpush1.bf16.msra.mxu0 %v916
        %936 = vmatprep.subr.bf16.mxu0 0
        %937 = vmatpush1.bf16.msra.mxu0 %v915
        %938 = vmatprep.subr.bf16.mxu0 0
        %939 = vmatpush2.bf16.msra.mxu0 0
        %940 = vmatprep.subr.bf16.mxu0 0
        %941 = vmatpush2.bf16.msra.mxu0 0
        %942 = vmatprep.subr.bf16.mxu0 0
        %943 = vmatpush2.bf16.msra.mxu0 0
        %944 = vmatprep.subr.bf16.mxu0 0
        %945 = vmatpush2.bf16.msra.mxu0 0
        %946 = vmatprep.subr.bf16.mxu0 0
        %947 = vmatpush2.bf16.msra.mxu0 0
        %948 = vmatprep.subr.bf16.mxu0 0
        %949 = vmatpush2.bf16.msra.mxu0 0
        %950 = vmatprep.subr.bf16.mxu0 0
        %951 = vmatpush2.bf16.msra.mxu0 0
        %952 = vmatprep.subr.bf16.mxu0 0
        %953 = vmatpush2.bf16.msra.mxu0 0
        %954 = vmatprep.mubr.bf16.mxu0 0
        %955 = vmatmul.mubr.bf16.gmra.mxu0 %v920
        %v956 = vpop.f32.mrf.mxu0
        %v957 = vadd.f32 %v905, %v956
        %v958 = vpop.f32.mrf.mxu0
        %v959 = vpop.f32.mrf.mxu0
        %v960 = vpop.f32.mrf.mxu0
        %961 = vdwg.mxu0
        %v962 = vmul.f32 %v957, 0.5
        %v963 = vmul.f32 %v957, 0.044715
        %v964 = vmul.f32 %v963, %v957
        %v965 = vmul.f32 %v964, %v957
        %v966 = vadd.f32 %v957, %v965
        %v967 = vmul.f32 %v966, 0.7978846
        %v968 = vtanh.pop %v967
        %v969 = vadd.f32 %v968, 1.0
        %v970 = vmul.f32 %v962, %v969
        %v971 = vpack.c.bf16 %v970, %v970
        %v972 = vld [vmem:[%s11] sm:$0xf]
        %v973 = vld [vmem:[%s11 + $0x4] sm:$0xf]
        %v974 = vld [vmem:[%s11 + $0x8] sm:$0xf]
        %v975 = vld [vmem:[%s11 + $0xc] sm:$0xf]
        %v976 = vld [vmem:[%s11 + $0x10] sm:$0xf]
        %v977 = vld [vmem:[%s11 + $0x14] sm:$0xf]
        %v978 = vld [vmem:[%s11 + $0x18] sm:$0xf]
        %v979 = vld [vmem:[%s11 + $0x1c] sm:$0xf]
        %v980 = vld [vmem:[%s12] sm:$0x1]
        %v982 = vlaneseq
        %v983 = vshrl.u32 %v982, 7
        %v984 = vsub.s32 0, %v983
        %v985 = vrot.slane %v980, %v984
        %v995 = vunpack.c.l.b16 %v972
        %v996 = vunpack.c.l.b16 %v973
        %v997 = vunpack.c.l.b16 %v974
        %v998 = vunpack.c.l.b16 %v975
        %v999 = vunpack.c.l.b16 %v976
        %v1000 = vunpack.c.l.b16 %v977
        %v1001 = vunpack.c.l.b16 %v978
        %v1002 = vunpack.c.l.b16 %v979
        %v1003 = vpack.c.b16 %v996, %v995
        %v1004 = vpack.c.b16 %v998, %v997
        %v1005 = vpack.c.b16 %v1000, %v999
        %v1006 = vpack.c.b16 %v1002, %v1001
        %vm1011 = vcmask 523264
        %v1013 = vsel %vm1011, %v971, 0
        %1015 = vmatprep.subr.bf16.mxu0 0
        %1016 = vmatpush1.bf16.msra.mxu0 0
        %1017 = vmatprep.subr.bf16.mxu0 0
        %1018 = vmatpush1.bf16.msra.mxu0 0
        %1019 = vmatprep.subr.bf16.mxu0 0
        %1020 = vmatpush1.bf16.msra.mxu0 0
        %1021 = vmatprep.subr.bf16.mxu0 0
        %1022 = vmatpush1.bf16.msra.mxu0 0
        %1023 = vmatprep.subr.bf16.mxu0 0
        %1024 = vmatpush1.bf16.msra.mxu0 %v1006
        %1025 = vmatprep.subr.bf16.mxu0 0
        %1026 = vmatpush1.bf16.msra.mxu0 %v1005
        %1027 = vmatprep.subr.bf16.mxu0 0
        %1028 = vmatpush1.bf16.msra.mxu0 %v1004
        %1029 = vmatprep.subr.bf16.mxu0 0
        %1030 = vmatpush1.bf16.msra.mxu0 %v1003
        %1031 = vmatprep.subr.bf16.mxu0 0
        %1032 = vmatpush2.bf16.msra.mxu0 0
        %1033 = vmatprep.subr.bf16.mxu0 0
        %1034 = vmatpush2.bf16.msra.mxu0 0
        %1035 = vmatprep.subr.bf16.mxu0 0
        %1036 = vmatpush2.bf16.msra.mxu0 0
        %1037 = vmatprep.subr.bf16.mxu0 0
        %1038 = vmatpush2.bf16.msra.mxu0 0
        %1039 = vmatprep.subr.bf16.mxu0 0
        %1040 = vmatpush2.bf16.msra.mxu0 0
        %1041 = vmatprep.subr.bf16.mxu0 0
        %1042 = vmatpush2.bf16.msra.mxu0 0
        %1043 = vmatprep.subr.bf16.mxu0 0
        %1044 = vmatpush2.bf16.msra.mxu0 0
        %1045 = vmatprep.subr.bf16.mxu0 0
        %1046 = vmatpush2.bf16.msra.mxu0 0
        %1047 = vmatprep.mubr.bf16.mxu0 0
        %1048 = vmatmul.mubr.bf16.gmra.mxu0 %v1013
        %v1049 = vpop.f32.mrf.mxu0
        %v1050 = vadd.f32 %v985, %v1049
        %v1051 = vpop.f32.mrf.mxu0
        %v1052 = vpop.f32.mrf.mxu0
        %v1053 = vpop.f32.mrf.mxu0
        %1054 = vdwg.mxu0
        %v1055 = vadd.f32 %v865, %v1050
        %1056 = vst.msk [vmem:[%s484] sm:$0xff] %vm493, %v1055
        %s1057 = sand.u32 %s316, 1
        %s1058 = scalar_lea.sflag [#allocation6], %s1057
        %s1059 = sand.u32 %s316, 1
        %s1060 = smul.addr %s1059, 8
        %s1061 = scalar_lea.vmem [#allocation12], %s1060
        // Predicated region
        $region96: #{tpu_custom_call.1} parent=71 // pred_check
          %p1062 = pneg %p326
        $region97: #{tpu_custom_call.1} parent=71 // pred_check_branch
          %1064 = sbr.rel (%p1062) target = $region99
        $region98: #{tpu_custom_call.1} parent=71 // pred_region
          %s1066 = ssub.s32 128, 128
          %1067 = vsyncadd %s1058, %s1066
          %s1068 = smul.addr %s30, 128
          %s1069 = scalar_lea.hbm %s13, %s1068
          %s1071 = sshll.u32 %s1061, 4
          %s1072 = int_to_ptr.vmem [resolvable:$true] %s1071
          %1074 = dma.vmem_to_hbm [thread:$0]  %s1072, 128, %s1069, %s1058
        $region99: #{tpu_custom_call.1} parent=71 // pred_fallthru
          _
      $region72: #{tpu_custom_call.1} parent=5 // pred_fallthru
        _
      %p1075 = scmp.le.s32.totalorder 2, %s25
      // Predicated region
      $region100: #{tpu_custom_call.1} parent=5 // pred_check
        %p1076 = pneg %p1075
      $region101: #{tpu_custom_call.1} parent=5 // pred_check_branch
        %1078 = sbr.rel (%p1076) target = $region103
      $region102: #{tpu_custom_call.1} parent=5 // pred_region
        %s1079 = ssub.s32 %s25, 2
        // Predicated region
        $region104: #{tpu_custom_call.1} parent=102 // pred_check
          %p1080 = pneg %p332
        $region105: #{tpu_custom_call.1} parent=102 // pred_check_branch
          %1082 = sbr.rel (%p1080) target = $region107
        $region106: #{tpu_custom_call.1} parent=102 // pred_region
          %s1083 = sand.u32 %s317, 1
          %s1084 = scalar_lea.sflag [#allocation6], %s1083
          %s1085 = sand.u32 %s317, 1
          %s1086 = smul.addr %s1085, 8
          %s1087 = scalar_lea.vmem [#allocation12], %s1086
          %1088 = dma.done %s1084, 128
        $region107: #{tpu_custom_call.1} parent=102 // pred_fallthru
          _
      $region103: #{tpu_custom_call.1} parent=5 // pred_fallthru
        _
    $region6: #{tpu_custom_call.1} parent=1 // loop_footer
      %s29 = sadd.s32 1, %s25
    $region7: #{tpu_custom_call.1} parent=1 // loop_footer_branch
      %24 = sbr.rel target = $region3
    $region8: #{tpu_custom_call.1} parent=1 // loop_exit
      _
    %1089 = vsyncpa [#allocation5], 1
    %s1090 = scalar_lea.sflag [#allocation5], 1
    %1091 = vsyncpa %s1090, 1
    %1092 = vsyncpa [#allocation8], 1
    %1093 = vsyncpa [#allocation11], 1
    %1094 = vsyncpa [#allocation6], 1
    %s1095 = scalar_lea.sflag [#allocation6], 1
    %1096 = vsyncpa %s1095, 1

// kernel: tpu_custom_call.1
$region0: #{tpu_custom_call.1}
  #allocation0 [shape = 'u32[]', space=smem, size = 0x4, offset = 0x4, fixed_abs, tag = 'smem constant byte address 0x4 - core index']
  #allocation1 [shape = 'u32[144,128]{1,0:T(1,128)}', space=vmem, size = 0x12000, scoped, tag = 'internal scratch']
  #allocation2 [shape = 'f32[12,8,8]{2,1,0:T(8,128)}', space=vmem, size = 0xc000, scoped, tag = 'scratch operand']
  #allocation3 [shape = 'f32[4,8,8]{2,1,0:T(8,128)}', space=vmem, size = 0x4000, scoped, tag = 'scratch operand']
  %s0 = inlined_call_operand.vmem [shape: f32[2,8,32], index: 0, kind: input, shape index: {}]
  %s1 = inlined_call_operand.vmem [shape: f32[1,32], index: 1, kind: input, shape index: {}]
  %s2 = inlined_call_operand.vmem [shape: f32[1,32], index: 2, kind: input, shape index: {}]
  %s3 = inlined_call_operand.vmem [shape: bf16[32,96], index: 3, kind: input, shape index: {}]
  %s4 = inlined_call_operand.vmem [shape: f32[1,96], index: 4, kind: input, shape index: {}]
  %s5 = inlined_call_operand.vmem [shape: bf16[32,32], index: 5, kind: input, shape index: {}]
  %s6 = inlined_call_operand.vmem [shape: f32[1,32], index: 6, kind: input, shape index: {}]
  %s7 = inlined_call_operand.hbm [shape: f32[1,32], index: 7, kind: input, shape index: {}]
  %s8 = inlined_call_operand.hbm [shape: f32[1,32], index: 8, kind: input, shape index: {}]
  %s9 = inlined_call_operand.hbm [shape: bf16[32,64], index: 9, kind: input, shape index: {}]
  %s10 = inlined_call_operand.hbm [shape: f32[1,64], index: 10, kind: input, shape index: {}]
  %s11 = inlined_call_operand.vmem [shape: bf16[64,32], index: 11, kind: input, shape index: {}]
  %s12 = inlined_call_operand.vmem [shape: f32[1,32], index: 12, kind: input, shape index: {}]
  %s13 = inlined_call_operand.hbm [shape: f32[2,8,32], index: 13, kind: output, shape index: {}]
  %s14 = sld [smem:[#allocation0]]
  $region108: #{tpu_custom_call.1} parent=0
    _
  %s16 = ssub.s32 1, %s14
  %s17 = scalar_select 0, %s16, %s14
  $region1: #{tpu_custom_call.1} parent=0
    #allocation4 [shape = 'u8[512]{0}', space=vmem, size = 0x400, scoped, tag = 'input window, operand 7, single buffered']
    #allocation5 [shape = 's32[2]{0}', space=sflag, size = 0x8, scoped, tag = 'scoped memory for tpu_custom_call.1']
    #allocation6 [shape = 's32[2]{0}', space=sflag, size = 0x8, scoped, tag = 'scoped memory for tpu_custom_call.1']
    #allocation7 [shape = 'u8[512]{0}', space=vmem, size = 0x400, scoped, tag = 'input window, operand 8, single buffered']
    #allocation8 [shape = 's32[1]{0}', space=sflag, size = 0x4, scoped, tag = 'scoped memory for tpu_custom_call.1']
    #allocation9 [shape = 'u8[8192]{0}', space=vmem, size = 0x2000, scoped, tag = 'input window, operand 9, single buffered']
    #allocation10 [shape = 'u8[512]{0}', space=vmem, size = 0x400, scoped, tag = 'input window, operand 10, single buffered']
    #allocation11 [shape = 's32[1]{0}', space=sflag, size = 0x4, scoped, tag = 'scoped memory for tpu_custom_call.1']
    #allocation12 [shape = 'u8[8192]{0}', space=vmem, size = 0x2000, scoped, tag = 'output window, operand 0']
    %18 = vsyncpa [#allocation5], 0
    %19 = vsyncpa [#allocation8], 0
    %20 = vsyncpa [#allocation11], 0
    %21 = vsyncpa [#allocation6], 0
    %s22 = scalar_lea.sflag [#allocation6], 1
    %23 = vsyncpa %s22, 0
    loop: start=0, step=1, limit=4
    $region2: #{tpu_custom_call.1} parent=1 // loop_pre_header
      _
    $region3: #{tpu_custom_call.1} parent=1 // loop_header
      %s25 = sphi 0, %s29
      %p26 = scmp.ge.s32.totalorder %s25, 4
      %s35 = sphi 0, %s37
      %s38 = sphi 0, %s35
      %s39 = sphi 0, %s38
      %s55 = sphi 0, %s39
      %s59 = sphi 0, %s59
      %s61 = sphi 0, %s59
      %s62 = sphi 0, %s61
      %s76 = sphi 0, %s62
      %s80 = sphi 0, %s80
      %s82 = sphi 0, %s80
      %s83 = sphi 0, %s82
      %s97 = sphi 0, %s83
      %s101 = sphi 0, %s101
      %s103 = sphi 0, %s101
      %s104 = sphi 0, %s103
      %s118 = sphi 0, %s104
      %s122 = sphi 0, %s122
      %s124 = sphi 0, %s122
      %s125 = sphi 0, %s124
      %s139 = sphi 0, %s125
      %s143 = sphi 0, %s143
      %s145 = sphi 0, %s143
      %s146 = sphi 0, %s145
      %s160 = sphi 0, %s146
      %s164 = sphi 0, %s164
      %s166 = sphi 0, %s164
      %s167 = sphi 0, %s166
      %s181 = sphi 0, %s167
      %s185 = sphi 0, %s185
      %s187 = sphi 0, %s185
      %s188 = sphi 0, %s187
      %s202 = sphi 0, %s188
      %s206 = sphi 0, %s206
      %s208 = sphi 0, %s206
      %s209 = sphi 0, %s208
      %s223 = sphi 0, %s209
      %s227 = sphi 0, %s227
      %s229 = sphi 0, %s227
      %s230 = sphi 0, %s229
      %s244 = sphi 0, %s230
      %s248 = sphi 0, %s248
      %s250 = sphi 0, %s248
      %s251 = sphi 0, %s250
      %s265 = sphi 0, %s251
      %s269 = sphi 0, %s269
      %s271 = sphi 0, %s269
      %s272 = sphi 0, %s271
      %s286 = sphi 0, %s272
      %s290 = sphi 0, %s290
      %s292 = sphi 0, %s290
      %s293 = sphi 0, %s292
      %s307 = sphi 0, %s293
      %s313 = sphi 0, %s315
      %s316 = sphi 0, %s313
      %s317 = sphi 0, %s316
      %s333 = sphi 0, %s317
    $region4: #{tpu_custom_call.1} parent=1 // loop_header_branch
      %28 = sbr.rel (%p26) target = $region8
    $region5: #{tpu_custom_call.1} parent=1 // loop_body
      %s30 = ssub.s32 %s25, 1
      %s31 = ssub.s32 %s25, 2
      %s32 = sadd.s32 %s25, 1
      %s33 = ssub.s32 %s25, %s32
      %p34 = scmp.eq.s32.totalorder %s33, 0
      %s36 = sadd.s32 %s35, 1
      %s37 = scalar_select %p34, %s35, %s36
      %p40 = pneg %p34
      %p41 = scmp.eq.s32.totalorder %s25, 1
      %p42 = por %p40, %p41
      %p43 = scmp.ne.s32.totalorder %s35, %s38
      %p44 = scmp.eq.s32.totalorder %s25, 0
      %p45 = por %p43, %p44
      %p46 = scmp.ne.s32.totalorder %s35, %s38
      %p47 = scmp.eq.s32.totalorder %s30, 1
      %p48 = por %p46, %p47
      %p49 = scmp.ne.s32.totalorder %s38, %s39
      %p50 = scmp.eq.s32.totalorder %s30, 0
      %p51 = por %p49, %p50
      %p52 = scmp.ne.s32.totalorder %s38, %s39
      %p53 = scmp.eq.s32.totalorder %s31, 1
      %p54 = por %p52, %p53
      %p56 = scmp.ne.s32.totalorder %s39, %s55
      %p57 = scmp.eq.s32.totalorder %s31, 0
      %p58 = por %p56, %p57
      %s60 = sadd.s32 %s59, 1
      %p63 = scmp.eq.s32.totalorder %s25, 1
      %p64 = scmp.ne.s32.totalorder %s59, %s61
      %p65 = scmp.eq.s32.totalorder %s25, 0
      %p66 = por %p64, %p65
      %p67 = scmp.ne.s32.totalorder %s59, %s61
      %p68 = scmp.eq.s32.totalorder %s30, 1
      %p69 = por %p67, %p68
      %p70 = scmp.ne.s32.totalorder %s61, %s62
      %p71 = scmp.eq.s32.totalorder %s30, 0
      %p72 = por %p70, %p71
      %p73 = scmp.ne.s32.totalorder %s61, %s62
      %p74 = scmp.eq.s32.totalorder %s31, 1
      %p75 = por %p73, %p74
      %p77 = scmp.ne.s32.totalorder %s62, %s76
      %p78 = scmp.eq.s32.totalorder %s31, 0
      %p79 = por %p77, %p78
      %s81 = sadd.s32 %s80, 1
      %p84 = scmp.eq.s32.totalorder %s25, 1
      %p85 = scmp.ne.s32.totalorder %s80, %s82
      %p86 = scmp.eq.s32.totalorder %s25, 0
      %p87 = por %p85, %p86
      %p88 = scmp.ne.s32.totalorder %s80, %s82
      %p89 = scmp.eq.s32.totalorder %s30, 1
      %p90 = por %p88, %p89
      %p91 = scmp.ne.s32.totalorder %s82, %s83
      %p92 = scmp.eq.s32.totalorder %s30, 0
      %p93 = por %p91, %p92
      %p94 = scmp.ne.s32.totalorder %s82, %s83
      %p95 = scmp.eq.s32.totalorder %s31, 1
      %p96 = por %p94, %p95
      %p98 = scmp.ne.s32.totalorder %s83, %s97
      %p99 = scmp.eq.s32.totalorder %s31, 0
      %p100 = por %p98, %p99
      %s102 = sadd.s32 %s101, 1
      %p105 = scmp.eq.s32.totalorder %s25, 1
      %p106 = scmp.ne.s32.totalorder %s101, %s103
      %p107 = scmp.eq.s32.totalorder %s25, 0
      %p108 = por %p106, %p107
      %p109 = scmp.ne.s32.totalorder %s101, %s103
      %p110 = scmp.eq.s32.totalorder %s30, 1
      %p111 = por %p109, %p110
      %p112 = scmp.ne.s32.totalorder %s103, %s104
      %p113 = scmp.eq.s32.totalorder %s30, 0
      %p114 = por %p112, %p113
      %p115 = scmp.ne.s32.totalorder %s103, %s104
      %p116 = scmp.eq.s32.totalorder %s31, 1
      %p117 = por %p115, %p116
      %p119 = scmp.ne.s32.totalorder %s104, %s118
      %p120 = scmp.eq.s32.totalorder %s31, 0
      %p121 = por %p119, %p120
      %s123 = sadd.s32 %s122, 1
      %p126 = scmp.eq.s32.totalorder %s25, 1
      %p127 = scmp.ne.s32.totalorder %s122, %s124
      %p128 = scmp.eq.s32.totalorder %s25, 0
      %p129 = por %p127, %p128
      %p130 = scmp.ne.s32.totalorder %s122, %s124
      %p131 = scmp.eq.s32.totalorder %s30, 1
      %p132 = por %p130, %p131
      %p133 = scmp.ne.s32.totalorder %s124, %s125
      %p134 = scmp.eq.s32.totalorder %s30, 0
      %p135 = por %p133, %p134
      %p136 = scmp.ne.s32.totalorder %s124, %s125
      %p137 = scmp.eq.s32.totalorder %s31, 1
      %p138 = por %p136, %p137
      %p140 = scmp.ne.s32.totalorder %s125, %s139
      %p141 = scmp.eq.s32.totalorder %s31, 0
      %p142 = por %p140, %p141
      %s144 = sadd.s32 %s143, 1
      %p147 = scmp.eq.s32.totalorder %s25, 1
      %p148 = scmp.ne.s32.totalorder %s143, %s145
      %p149 = scmp.eq.s32.totalorder %s25, 0
      %p150 = por %p148, %p149
      %p151 = scmp.ne.s32.totalorder %s143, %s145
      %p152 = scmp.eq.s32.totalorder %s30, 1
      %p153 = por %p151, %p152
      %p154 = scmp.ne.s32.totalorder %s145, %s146
      %p155 = scmp.eq.s32.totalorder %s30, 0
      %p156 = por %p154, %p155
      %p157 = scmp.ne.s32.totalorder %s145, %s146
      %p158 = scmp.eq.s32.totalorder %s31, 1
      %p159 = por %p157, %p158
      %p161 = scmp.ne.s32.totalorder %s146, %s160
      %p162 = scmp.eq.s32.totalorder %s31, 0
      %p163 = por %p161, %p162
      %s165 = sadd.s32 %s164, 1
      %p168 = scmp.eq.s32.totalorder %s25, 1
      %p169 = scmp.ne.s32.totalorder %s164, %s166
      %p170 = scmp.eq.s32.totalorder %s25, 0
      %p171 = por %p169, %p170
      %p172 = scmp.ne.s32.totalorder %s164, %s166
      %p173 = scmp.eq.s32.totalorder %s30, 1
      %p174 = por %p172, %p173
      %p175 = scmp.ne.s32.totalorder %s166, %s167
      %p176 = scmp.eq.s32.totalorder %s30, 0
      %p177 = por %p175, %p176
      %p178 = scmp.ne.s32.totalorder %s166, %s167
      %p179 = scmp.eq.s32.totalorder %s31, 1
      %p180 = por %p178, %p179
      %p182 = scmp.ne.s32.totalorder %s167, %s181
      %p183 = scmp.eq.s32.totalorder %s31, 0
      %p184 = por %p182, %p183
      %s186 = sadd.s32 %s185, 1
      %p189 = scmp.eq.s32.totalorder %s25, 1
      %p190 = scmp.ne.s32.totalorder %s185, %s187
      %p191 = scmp.eq.s32.totalorder %s25, 0
      %p192 = por %p190, %p191
      %p193 = scmp.ne.s32.totalorder %s185, %s187
      %p194 = scmp.eq.s32.totalorder %s30, 1
      %p195 = por %p193, %p194
      %p196 = scmp.ne.s32.totalorder %s187, %s188
      %p197 = scmp.eq.s32.totalorder %s30, 0
      %p198 = por %p196, %p197
      %p199 = scmp.ne.s32.totalorder %s187, %s188
      %p200 = scmp.eq.s32.totalorder %s31, 1
      %p201 = por %p199, %p200
      %p203 = scmp.ne.s32.totalorder %s188, %s202
      %p204 = scmp.eq.s32.totalorder %s31, 0
      %p205 = por %p203, %p204
      %s207 = sadd.s32 %s206, 1
      %p210 = scmp.eq.s32.totalorder %s25, 1
      %p211 = scmp.ne.s32.totalorder %s206, %s208
      %p212 = scmp.eq.s32.totalorder %s25, 0
      %p213 = por %p211, %p212
      %p214 = scmp.ne.s32.totalorder %s206, %s208
      %p215 = scmp.eq.s32.totalorder %s30, 1
      %p216 = por %p214, %p215
      %p217 = scmp.ne.s32.totalorder %s208, %s209
      %p218 = scmp.eq.s32.totalorder %s30, 0
      %p219 = por %p217, %p218
      %p220 = scmp.ne.s32.totalorder %s208, %s209
      %p221 = scmp.eq.s32.totalorder %s31, 1
      %p222 = por %p220, %p221
      %p224 = scmp.ne.s32.totalorder %s209, %s223
      %p225 = scmp.eq.s32.totalorder %s31, 0
      %p226 = por %p224, %p225
      %s228 = sadd.s32 %s227, 1
      %p231 = scmp.eq.s32.totalorder %s25, 1
      %p232 = scmp.ne.s32.totalorder %s227, %s229
      %p233 = scmp.eq.s32.totalorder %s25, 0
      %p234 = por %p232, %p233
      %p235 = scmp.ne.s32.totalorder %s227, %s229
      %p236 = scmp.eq.s32.totalorder %s30, 1
      %p237 = por %p235, %p236
      %p238 = scmp.ne.s32.totalorder %s229, %s230
      %p239 = scmp.eq.s32.totalorder %s30, 0
      %p240 = por %p238, %p239
      %p241 = scmp.ne.s32.totalorder %s229, %s230
      %p242 = scmp.eq.s32.totalorder %s31, 1
      %p243 = por %p241, %p242
      %p245 = scmp.ne.s32.totalorder %s230, %s244
      %p246 = scmp.eq.s32.totalorder %s31, 0
      %p247 = por %p245, %p246
      %s249 = sadd.s32 %s248, 1
      %p252 = scmp.eq.s32.totalorder %s25, 1
      %p253 = scmp.ne.s32.totalorder %s248, %s250
      %p254 = scmp.eq.s32.totalorder %s25, 0
      %p255 = por %p253, %p254
      %p256 = scmp.ne.s32.totalorder %s248, %s250
      %p257 = scmp.eq.s32.totalorder %s30, 1
      %p258 = por %p256, %p257
      %p259 = scmp.ne.s32.totalorder %s250, %s251
      %p260 = scmp.eq.s32.totalorder %s30, 0
      %p261 = por %p259, %p260
      %p262 = scmp.ne.s32.totalorder %s250, %s251
      %p263 = scmp.eq.s32.totalorder %s31, 1
      %p264 = por %p262, %p263
      %p266 = scmp.ne.s32.totalorder %s251, %s265
      %p267 = scmp.eq.s32.totalorder %s31, 0
      %p268 = por %p266, %p267
      %s270 = sadd.s32 %s269, 1
      %p273 = scmp.eq.s32.totalorder %s25, 1
      %p274 = scmp.ne.s32.totalorder %s269, %s271
      %p275 = scmp.eq.s32.totalorder %s25, 0
      %p276 = por %p274, %p275
      %p277 = scmp.ne.s32.totalorder %s269, %s271
      %p278 = scmp.eq.s32.totalorder %s30, 1
      %p279 = por %p277, %p278
      %p280 = scmp.ne.s32.totalorder %s271, %s272
      %p281 = scmp.eq.s32.totalorder %s30, 0
      %p282 = por %p280, %p281
      %p283 = scmp.ne.s32.totalorder %s271, %s272
      %p284 = scmp.eq.s32.totalorder %s31, 1
      %p285 = por %p283, %p284
      %p287 = scmp.ne.s32.totalorder %s272, %s286
      %p288 = scmp.eq.s32.totalorder %s31, 0
      %p289 = por %p287, %p288
      %s291 = sadd.s32 %s290, 1
      %p294 = scmp.eq.s32.totalorder %s25, 1
      %p295 = scmp.ne.s32.totalorder %s290, %s292
      %p296 = scmp.eq.s32.totalorder %s25, 0
      %p297 = por %p295, %p296
      %p298 = scmp.ne.s32.totalorder %s290, %s292
      %p299 = scmp.eq.s32.totalorder %s30, 1
      %p300 = por %p298, %p299
      %p301 = scmp.ne.s32.totalorder %s292, %s293
      %p302 = scmp.eq.s32.totalorder %s30, 0
      %p303 = por %p301, %p302
      %p304 = scmp.ne.s32.totalorder %s292, %s293
      %p305 = scmp.eq.s32.totalorder %s31, 1
      %p306 = por %p304, %p305
      %p308 = scmp.ne.s32.totalorder %s293, %s307
      %p309 = scmp.eq.s32.totalorder %s31, 0
      %p310 = por %p308, %p309
      %s311 = ssub.s32 %s25, %s32
      %p312 = scmp.eq.s32.totalorder %s311, 0
      %s314 = sadd.s32 %s313, 1
      %s315 = scalar_select %p312, %s313, %s314
      %p318 = pneg %p312
      %p319 = scmp.eq.s32.totalorder %s25, 1
      %p320 = por %p318, %p319
      %p321 = scmp.ne.s32.totalorder %s313, %s316
      %p322 = scmp.eq.s32.totalorder %s25, 0
      %p323 = por %p321, %p322
      %p324 = scmp.ne.s32.totalorder %s313, %s316
      %p325 = scmp.eq.s32.totalorder %s30, 1
      %p326 = por %p324, %p325
      %p327 = scmp.ne.s32.totalorder %s316, %s317
      %p328 = scmp.eq.s32.totalorder %s30, 0
      %p329 = por %p327, %p328
      %p330 = scmp.ne.s32.totalorder %s316, %s317
      %p331 = scmp.eq.s32.totalorder %s31, 1
      %p332 = por %p330, %p331
      %p334 = scmp.ne.s32.totalorder %s317, %s333
      %p335 = scmp.eq.s32.totalorder %s31, 0
      %p336 = por %p334, %p335
      %p337 = scmp.le.s32.totalorder 1, %s25
      %p338 = scmp.lt.s32.totalorder %s25, 3
      %p339 = pnand %p337, %p338
      %p340 = pneg %p339
      // Predicated region
      $region9: #{tpu_custom_call.1} parent=5 // pred_check
        _
      $region10: #{tpu_custom_call.1} parent=5 // pred_check_branch
        %342 = sbr.rel (%p339) target = $region12
      $region11: #{tpu_custom_call.1} parent=5 // pred_region
        %s343 = ssub.s32 %s25, 1
        // Predicated region
        $region13: #{tpu_custom_call.1} parent=11 // pred_check
          %p344 = pneg %p72
        $region14: #{tpu_custom_call.1} parent=11 // pred_check_branch
          %346 = sbr.rel (%p344) target = $region16
        $region15: #{tpu_custom_call.1} parent=11 // pred_region
          _
        $region16: #{tpu_custom_call.1} parent=11 // pred_fallthru
          _
        // Predicated region
        $region17: #{tpu_custom_call.1} parent=11 // pred_check
          %p347 = pneg %p93
        $region18: #{tpu_custom_call.1} parent=11 // pred_check_branch
          %349 = sbr.rel (%p347) target = $region20
        $region19: #{tpu_custom_call.1} parent=11 // pred_region
          _
        $region20: #{tpu_custom_call.1} parent=11 // pred_fallthru
          _
        // Predicated region
        $region21: #{tpu_custom_call.1} parent=11 // pred_check
          %p350 = pneg %p114
        $region22: #{tpu_custom_call.1} parent=11 // pred_check_branch
          %352 = sbr.rel (%p350) target = $region24
        $region23: #{tpu_custom_call.1} parent=11 // pred_region
          _
        $region24: #{tpu_custom_call.1} parent=11 // pred_fallthru
          _
        // Predicated region
        $region25: #{tpu_custom_call.1} parent=11 // pred_check
          %p353 = pneg %p135
        $region26: #{tpu_custom_call.1} parent=11 // pred_check_branch
          %355 = sbr.rel (%p353) target = $region28
        $region27: #{tpu_custom_call.1} parent=11 // pred_region
          _
        $region28: #{tpu_custom_call.1} parent=11 // pred_fallthru
          _
        // Predicated region
        $region29: #{tpu_custom_call.1} parent=11 // pred_check
          %p356 = pneg %p156
        $region30: #{tpu_custom_call.1} parent=11 // pred_check_branch
          %358 = sbr.rel (%p356) target = $region32
        $region31: #{tpu_custom_call.1} parent=11 // pred_region
          _
        $region32: #{tpu_custom_call.1} parent=11 // pred_fallthru
          _
        // Predicated region
        $region33: #{tpu_custom_call.1} parent=11 // pred_check
          %p359 = pneg %p177
        $region34: #{tpu_custom_call.1} parent=11 // pred_check_branch
          %361 = sbr.rel (%p359) target = $region36
        $region35: #{tpu_custom_call.1} parent=11 // pred_region
          _
        $region36: #{tpu_custom_call.1} parent=11 // pred_fallthru
          _
        // Predicated region
        $region37: #{tpu_custom_call.1} parent=11 // pred_check
          %p362 = pneg %p198
        $region38: #{tpu_custom_call.1} parent=11 // pred_check_branch
          %364 = sbr.rel (%p362) target = $region40
        $region39: #{tpu_custom_call.1} parent=11 // pred_region
          %s366 = ssub.s32 16, 16
          %367 = vsyncadd [#allocation5], %s366
          %s369 = sshll.u32 [#allocation4], 4
          %s370 = int_to_ptr.vmem [resolvable:$true] %s369
          %372 = dma.hbm_to_vmem [thread:$0]  %s7, 16, %s370, [#allocation5]
        $region40: #{tpu_custom_call.1} parent=11 // pred_fallthru
          _
        // Predicated region
        $region41: #{tpu_custom_call.1} parent=11 // pred_check
          %p373 = pneg %p219
        $region42: #{tpu_custom_call.1} parent=11 // pred_check_branch
          %375 = sbr.rel (%p373) target = $region44
        $region43: #{tpu_custom_call.1} parent=11 // pred_region
          %s377 = ssub.s32 16, 16
          %378 = vsyncadd [#allocation8], %s377
          %s380 = sshll.u32 [#allocation7], 4
          %s381 = int_to_ptr.vmem [resolvable:$true] %s380
          %383 = dma.hbm_to_vmem [thread:$0]  %s8, 16, %s381, [#allocation8]
        $region44: #{tpu_custom_call.1} parent=11 // pred_fallthru
          _
        // Predicated region
        $region45: #{tpu_custom_call.1} parent=11 // pred_check
          %p384 = pneg %p240
        $region46: #{tpu_custom_call.1} parent=11 // pred_check_branch
          %386 = sbr.rel (%p384) target = $region48
        $region47: #{tpu_custom_call.1} parent=11 // pred_region
          %s388 = ssub.s32 256, 256
          %389 = vsyncadd [#allocation8], %s388
          %s390 = sshll.u32 [#allocation9], 4
          %s391 = int_to_ptr.vmem [resolvable:$true] %s390
          %396 = dma.hbm_to_vmem [thread:$0]  %s9, 256, %s391, [#allocation8], 64, 64, 4
        $region48: #{tpu_custom_call.1} parent=11 // pred_fallthru
          _
        // Predicated region
        $region49: #{tpu_custom_call.1} parent=11 // pred_check
          %p397 = pneg %p261
        $region50: #{tpu_custom_call.1} parent=11 // pred_check_branch
          %399 = sbr.rel (%p397) target = $region52
        $region51: #{tpu_custom_call.1} parent=11 // pred_region
          %s401 = ssub.s32 16, 16
          %402 = vsyncadd [#allocation11], %s401
          %s404 = sshll.u32 [#allocation10], 4
          %s405 = int_to_ptr.vmem [resolvable:$true] %s404
          %407 = dma.hbm_to_vmem [thread:$0]  %s10, 16, %s405, [#allocation11]
        $region52: #{tpu_custom_call.1} parent=11 // pred_fallthru
          _
        // Predicated region
        $region53: #{tpu_custom_call.1} parent=11 // pred_check
          %p408 = pneg %p282
        $region54: #{tpu_custom_call.1} parent=11 // pred_check_branch
          %410 = sbr.rel (%p408) target = $region56
        $region55: #{tpu_custom_call.1} parent=11 // pred_region
          _
        $region56: #{tpu_custom_call.1} parent=11 // pred_fallthru
          _
        // Predicated region
        $region57: #{tpu_custom_call.1} parent=11 // pred_check
          %p411 = pneg %p303
        $region58: #{tpu_custom_call.1} parent=11 // pred_check_branch
          %413 = sbr.rel (%p411) target = $region60
        $region59: #{tpu_custom_call.1} parent=11 // pred_region
          _
        $region60: #{tpu_custom_call.1} parent=11 // pred_fallthru
          _
      $region12: #{tpu_custom_call.1} parent=5 // pred_fallthru
        _
      %p414 = scmp.lt.s32.totalorder %s25, 2
      // Predicated region
      $region61: #{tpu_custom_call.1} parent=5 // pred_check
        %p415 = pneg %p414
      $region62: #{tpu_custom_call.1} parent=5 // pred_check_branch
        %417 = sbr.rel (%p415) target = $region64
      $region63: #{tpu_custom_call.1} parent=5 // pred_region
        // Predicated region
        $region65: #{tpu_custom_call.1} parent=63 // pred_check
          %p418 = pneg %p45
        $region66: #{tpu_custom_call.1} parent=63 // pred_check_branch
          %420 = sbr.rel (%p418) target = $region68
        $region67: #{tpu_custom_call.1} parent=63 // pred_region
          %p421 = scmp.lt.s32.totalorder %s25, 1
          %s422 = scalar_select %p421, %s25, 1
          %s423 = smul.addr %s422, 8
          %s424 = scalar_lea.vmem %s0, %s423
        $region68: #{tpu_custom_call.1} parent=63 // pred_fallthru
          _
      $region64: #{tpu_custom_call.1} parent=5 // pred_fallthru
        _
      %p425 = scmp.le.s32.totalorder 1, %s25
      %p426 = scmp.lt.s32.totalorder %s25, 3
      %p427 = pnand %p425, %p426
      %p428 = pneg %p427
      // Predicated region
      $region69: #{tpu_custom_call.1} parent=5 // pred_check
        _
      $region70: #{tpu_custom_call.1} parent=5 // pred_check_branch
        %430 = sbr.rel (%p427) target = $region72
      $region71: #{tpu_custom_call.1} parent=5 // pred_region
        %s431 = ssub.s32 %s25, 1
        // Predicated region
        $region73: #{tpu_custom_call.1} parent=71 // pred_check
          %p432 = pneg %p198
        $region74: #{tpu_custom_call.1} parent=71 // pred_check_branch
          %434 = sbr.rel (%p432) target = $region76
        $region75: #{tpu_custom_call.1} parent=71 // pred_region
          %435 = dma.done [#allocation5], 16
        $region76: #{tpu_custom_call.1} parent=71 // pred_fallthru
          _
        // Predicated region
        $region77: #{tpu_custom_call.1} parent=71 // pred_check
          %p436 = pneg %p219
        $region78: #{tpu_custom_call.1} parent=71 // pred_check_branch
          %438 = sbr.rel (%p436) target = $region80
        $region79: #{tpu_custom_call.1} parent=71 // pred_region
          %439 = dma.done [#allocation8], 16
        $region80: #{tpu_custom_call.1} parent=71 // pred_fallthru
          _
        // Predicated region
        $region81: #{tpu_custom_call.1} parent=71 // pred_check
          %p440 = pneg %p240
        $region82: #{tpu_custom_call.1} parent=71 // pred_check_branch
          %442 = sbr.rel (%p440) target = $region84
        $region83: #{tpu_custom_call.1} parent=71 // pred_region
          %443 = dma.done [#allocation8], 256
        $region84: #{tpu_custom_call.1} parent=71 // pred_fallthru
          _
        // Predicated region
        $region85: #{tpu_custom_call.1} parent=71 // pred_check
          %p444 = pneg %p261
        $region86: #{tpu_custom_call.1} parent=71 // pred_check_branch
          %446 = sbr.rel (%p444) target = $region88
        $region87: #{tpu_custom_call.1} parent=71 // pred_region
          %447 = dma.done [#allocation11], 16
        $region88: #{tpu_custom_call.1} parent=71 // pred_fallthru
          _
        %p448 = scmp.lt.s32.totalorder %s30, 1
        %s449 = scalar_select %p448, %s30, 1
        %s450 = smul.addr %s449, 8
        %s451 = scalar_lea.vmem %s0, %s450
        %p452 = pneg %p51
        %p453 = pneg %p48
        %p454 = pneg %p72
        %p455 = pneg %p69
        %p456 = pneg %p93
        %p457 = pneg %p90
        %p458 = pneg %p114
        %p459 = pneg %p111
        %p460 = pneg %p135
        %p461 = pneg %p132
        %p462 = pneg %p156
        %p463 = pneg %p153
        %p464 = pneg %p177
        %p465 = pneg %p174
        %p466 = pneg %p198
        %p467 = pneg %p195
        %p468 = pneg %p219
        %p469 = pneg %p216
        %p470 = pneg %p240
        %p471 = pneg %p237
        %p472 = pneg %p261
        %p473 = pneg %p258
        %p474 = pneg %p282
        %p475 = pneg %p279
        %p476 = pneg %p303
        %p477 = pneg %p300
        %p478 = pneg %p329
        %p479 = pneg %p326
        %s480 = sand.u32 %s316, 1
        %s481 = scalar_lea.sflag [#allocation6], %s480
        %s482 = sand.u32 %s316, 1
        %s483 = smul.addr %s482, 8
        %s484 = scalar_lea.vmem [#allocation12], %s483
        %p485 = scmp.lt.s32.totalorder %s30, 1
        %s486 = scalar_select %p485, %s30, 1
        %s487 = smul.addr %s486, 8
        %s488 = scalar_lea.vmem %s0, %s487
        %v490 = vld [vmem:[%s488] sm:$0xff]
        %v491 = vld [vmem:[%s1] sm:$0x1]
        %v492 = vld [vmem:[%s2] sm:$0x1]
        %vm493 = vcmask 261120
        %v494 = vsel %vm493, %v490, 0.0
        %495 = vadd.xlane.f32.xlu0 %v494
        %v496 = vpop.xlane.xlu0 %495
        %v497 = vrcp.pop 32.0
        %v498 = vmul.f32 %v496, %v497
        %v499 = vsub.f32 %v490, %v498
        %v500 = vmul.f32 %v499, %v499
        %v501 = vsel %vm493, %v500, 0.0
        %502 = vadd.xlane.f32.xlu0 %v501
        %v503 = vpop.xlane.xlu0 %502
        %v504 = vmul.f32 %v503, %v497
        %v505 = vadd.f32 %v504, 1e-06
        %v506 = vrsqrt.pop %v505
        %v507 = vmul.f32 %v499, %v506
        %v509 = vlaneseq
        %v510 = vshrl.u32 %v509, 7
        %v511 = vsub.s32 0, %v510
        %v512 = vrot.slane %v491, %v511
        %v514 = vmul.f32 %v507, %v512
        %v516 = vlaneseq
        %v517 = vshrl.u32 %v516, 7
        %v518 = vsub.s32 0, %v517
        %v519 = vrot.slane %v492, %v518
        %v521 = vadd.f32 %v514, %v519
        %v522 = vpack.c.bf16 %v521, %v521
        %v523 = vld [vmem:[%s3] sm:$0xf]
        %v524 = vld [vmem:[%s3 + $0x4] sm:$0xf]
        %v525 = vld [vmem:[%s3 + $0x8] sm:$0xf]
        %v526 = vld [vmem:[%s3 + $0xc] sm:$0xf]
        %v527 = vld [vmem:[%s4] sm:$0x1]
        %v529 = vlaneseq
        %v530 = vshrl.u32 %v529, 7
        %v531 = vsub.s32 0, %v530
        %v532 = vrot.slane %v527, %v531
        %v538 = vunpack.c.l.b16 %v523
        %v539 = vunpack.c.l.b16 %v524
        %v540 = vunpack.c.l.b16 %v525
        %v541 = vunpack.c.l.b16 %v526
        %v542 = vpack.c.b16 %v539, %v538
        %v543 = vpack.c.b16 %v541, %v540
        %v547 = vsel %vm493, %v522, 0
        %549 = vmatprep.subr.bf16.mxu0 0
        %550 = vmatpush1.bf16.msra.mxu0 0
        %551 = vmatprep.subr.bf16.mxu0 0
        %552 = vmatpush1.bf16.msra.mxu0 0
        %553 = vmatprep.subr.bf16.mxu0 0
        %554 = vmatpush1.bf16.msra.mxu0 0
        %555 = vmatprep.subr.bf16.mxu0 0
        %556 = vmatpush1.bf16.msra.mxu0 0
        %557 = vmatprep.subr.bf16.mxu0 0
        %558 = vmatpush1.bf16.msra.mxu0 0
        %559 = vmatprep.subr.bf16.mxu0 0
        %560 = vmatpush1.bf16.msra.mxu0 0
        %561 = vmatprep.subr.bf16.mxu0 0
        %562 = vmatpush1.bf16.msra.mxu0 %v543
        %563 = vmatprep.subr.bf16.mxu0 0
        %564 = vmatpush1.bf16.msra.mxu0 %v542
        %565 = vmatprep.subr.bf16.mxu0 0
        %566 = vmatpush2.bf16.msra.mxu0 0
        %567 = vmatprep.subr.bf16.mxu0 0
        %568 = vmatpush2.bf16.msra.mxu0 0
        %569 = vmatprep.subr.bf16.mxu0 0
        %570 = vmatpush2.bf16.msra.mxu0 0
        %571 = vmatprep.subr.bf16.mxu0 0
        %572 = vmatpush2.bf16.msra.mxu0 0
        %573 = vmatprep.subr.bf16.mxu0 0
        %574 = vmatpush2.bf16.msra.mxu0 0
        %575 = vmatprep.subr.bf16.mxu0 0
        %576 = vmatpush2.bf16.msra.mxu0 0
        %577 = vmatprep.subr.bf16.mxu0 0
        %578 = vmatpush2.bf16.msra.mxu0 0
        %579 = vmatprep.subr.bf16.mxu0 0
        %580 = vmatpush2.bf16.msra.mxu0 0
        %581 = vmatprep.mubr.bf16.mxu0 0
        %582 = vmatmul.mubr.bf16.gmra.mxu0 %v547
        %v583 = vpop.f32.mrf.mxu0
        %v584 = vadd.f32 %v532, %v583
        %v585 = vpop.f32.mrf.mxu0
        %v586 = vpop.f32.mrf.mxu0
        %v587 = vpop.f32.mrf.mxu0
        %588 = vdwg.mxu0
        %vm589 = vcmask 64512
        %590 = vst.msk [vmem:[#allocation2] sm:$0xff] %vm589, %v584
        %592 = vrot.lane.b32.xlu0 %v584, 96
        %v593 = vpop.permute.xlu0 %592
        %s595 = scalar_lea.vmem [#allocation2], 32
        %596 = vst.msk [vmem:[%s595] sm:$0xff] %vm589, %v593
        %597 = vrot.lane.b32.xlu0 %v584, 64
        %v598 = vpop.permute.xlu0 %597
        %s600 = scalar_lea.vmem [#allocation2], 64
        %601 = vst.msk [vmem:[%s600] sm:$0xff] %vm589, %v598
        %602 = vrot.lane.b32.xlu0 %v584, 120
        %v603 = vpop.permute.xlu0 %602
        %s605 = scalar_lea.vmem [#allocation2], 8
        %606 = vst.msk [vmem:[%s605] sm:$0xff] %vm589, %v603
        %607 = vrot.lane.b32.xlu0 %v584, 88
        %v608 = vpop.permute.xlu0 %607
        %s610 = scalar_lea.vmem [#allocation2], 40
        %611 = vst.msk [vmem:[%s610] sm:$0xff] %vm589, %v608
        %612 = vrot.lane.b32.xlu0 %v584, 56
        %v613 = vpop.permute.xlu0 %612
        %s615 = scalar_lea.vmem [#allocation2], 72
        %616 = vst.msk [vmem:[%s615] sm:$0xff] %vm589, %v613
        %617 = vrot.lane.b32.xlu0 %v584, 112
        %v618 = vpop.permute.xlu0 %617
        %s620 = scalar_lea.vmem [#allocation2], 16
        %621 = vst.msk [vmem:[%s620] sm:$0xff] %vm589, %v618
        %622 = vrot.lane.b32.xlu0 %v584, 80
        %v623 = vpop.permute.xlu0 %622
        %s625 = scalar_lea.vmem [#allocation2], 48
        %626 = vst.msk [vmem:[%s625] sm:$0xff] %vm589, %v623
        %627 = vrot.lane.b32.xlu0 %v584, 48
        %v628 = vpop.permute.xlu0 %627
        %s630 = scalar_lea.vmem [#allocation2], 80
        %631 = vst.msk [vmem:[%s630] sm:$0xff] %vm589, %v628
        %632 = vrot.lane.b32.xlu0 %v584, 104
        %v633 = vpop.permute.xlu0 %632
        %s635 = scalar_lea.vmem [#allocation2], 24
        %636 = vst.msk [vmem:[%s635] sm:$0xff] %vm589, %v633
        %637 = vrot.lane.b32.xlu0 %v584, 72
        %v638 = vpop.permute.xlu0 %637
        %s640 = scalar_lea.vmem [#allocation2], 56
        %641 = vst.msk [vmem:[%s640] sm:$0xff] %vm589, %v638
        %642 = vrot.lane.b32.xlu0 %v584, 40
        %v643 = vpop.permute.xlu0 %642
        %s645 = scalar_lea.vmem [#allocation2], 88
        %646 = vst.msk [vmem:[%s645] sm:$0xff] %vm589, %v643
        loop: start=0, step=1, limit=4
        $region89: #{tpu_custom_call.1} parent=71 // loop_pre_header
          _
        $region90: #{tpu_custom_call.1} parent=71 // loop_header
          %s648 = sphi 0, %s652
          %p649 = scmp.ge.s32.totalorder %s648, 4
        $region91: #{tpu_custom_call.1} parent=71 // loop_header_branch
          %651 = sbr.rel (%p649) target = $region95
        $region92: #{tpu_custom_call.1} parent=71 // loop_body
          %s653 = smul.u32 %s648, 8
          %s654 = scalar_lea.vmem [#allocation2], %s653
          %v655 = vld [vmem:[%s654] sm:$0xff]
          %v656 = vpack.c.bf16 %v655, %v655
          %s657 = sadd.s32 %s648, 4
          %s658 = smul.u32 %s657, 8
          %s659 = scalar_lea.vmem [#allocation2], %s658
          %v660 = vld [vmem:[%s659] sm:$0xff]
          %v661 = vpack.c.bf16 %v660, %v660
          %s662 = sadd.s32 %s648, 8
          %s663 = smul.u32 %s662, 8
          %s664 = scalar_lea.vmem [#allocation2], %s663
          %v665 = vld [vmem:[%s664] sm:$0xff]
          %v666 = vpack.c.bf16 %v665, %v665
          %v668 = vsel %vm589, %v656, 0
          %v671 = vsel %vm589, %v661, 0
          %673 = vmatprep.subr.bf16.mxu0 0
          %674 = vmatpush1.bf16.xpose.msra.mxu0 0
          %675 = vmatprep.subr.bf16.mxu0 0
          %676 = vmatpush1.bf16.xpose.msra.mxu0 0
          %677 = vmatprep.subr.bf16.mxu0 0
          %678 = vmatpush1.bf16.xpose.msra.mxu0 0
          %679 = vmatprep.subr.bf16.mxu0 0
          %680 = vmatpush1.bf16.xpose.msra.mxu0 0
          %681 = vmatprep.subr.bf16.mxu0 0
          %682 = vmatpush1.bf16.xpose.msra.mxu0 0
          %683 = vmatprep.subr.bf16.mxu0 0
          %684 = vmatpush1.bf16.xpose.msra.mxu0 0
          %685 = vmatprep.subr.bf16.mxu0 0
          %686 = vmatpush1.bf16.xpose.msra.mxu0 0
          %687 = vmatprep.subr.bf16.mxu0 0
          %688 = vmatpush1.bf16.xpose.msra.mxu0 %v671
          %689 = vmatprep.subr.bf16.mxu0 0
          %690 = vmatpush2.bf16.xpose.msra.mxu0 0
          %691 = vmatprep.subr.bf16.mxu0 0
          %692 = vmatpush2.bf16.xpose.msra.mxu0 0
          %693 = vmatprep.subr.bf16.mxu0 0
          %694 = vmatpush2.bf16.xpose.msra.mxu0 0
          %695 = vmatprep.subr.bf16.mxu0 0
          %696 = vmatpush2.bf16.xpose.msra.mxu0 0
          %697 = vmatprep.subr.bf16.mxu0 0
          %698 = vmatpush2.bf16.xpose.msra.mxu0 0
          %699 = vmatprep.subr.bf16.mxu0 0
          %700 = vmatpush2.bf16.xpose.msra.mxu0 0
          %701 = vmatprep.subr.bf16.mxu0 0
          %702 = vmatpush2.bf16.xpose.msra.mxu0 0
          %703 = vmatprep.subr.bf16.mxu0 0
          %704 = vmatpush2.bf16.xpose.msra.mxu0 0
          %705 = vmatprep.mubr.bf16.mxu0 0
          %706 = vmatmul.mubr.bf16.gmra.mxu0 %v668
          %v707 = vpop.f32.mrf.mxu0
          %v708 = vadd.f32 0.0, %v707
          %v709 = vpop.f32.mrf.mxu0
          %v710 = vpop.f32.mrf.mxu0
          %v711 = vpop.f32.mrf.mxu0
          %712 = vdwg.mxu0
          %v713 = vsel %vm589, %v708, -inf
          %714 = vmax.xlane.f32.xlu0 %v713
          %v715 = vpop.xlane.xlu0 %714
          %v716 = vsub.f32 %v708, %v715
          %v717 = vmul.f32 %v716, 1.442695
          %v718 = vpow.pop %v717
          %v719 = vsel %vm589, %v718, 0.0
          %720 = vadd.xlane.f32.xlu0 %v719
          %v721 = vpop.xlane.xlu0 %720
          %v722 = vrcp.pop %v721
          %v723 = vmul.f32 %v718, %v722
          %v724 = vpack.c.bf16 %v723, %v723
          %v726 = vsel %vm589, %v724, 0
          %vm728 = vcmask 1043456
          %v730 = vsel %vm728, %v666, 0
          %732 = vmatprep.subr.bf16.mxu0 0
          %733 = vmatpush1.bf16.msra.mxu0 0
          %734 = vmatprep.subr.bf16.mxu0 0
          %735 = vmatpush1.bf16.msra.mxu0 0
          %736 = vmatprep.subr.bf16.mxu0 0
          %737 = vmatpush1.bf16.msra.mxu0 0
          %738 = vmatprep.subr.bf16.mxu0 0
          %739 = vmatpush1.bf16.msra.mxu0 0
          %740 = vmatprep.subr.bf16.mxu0 0
          %741 = vmatpush1.bf16.msra.mxu0 0
          %742 = vmatprep.subr.bf16.mxu0 0
          %743 = vmatpush1.bf16.msra.mxu0 0
          %744 = vmatprep.subr.bf16.mxu0 0
          %745 = vmatpush1.bf16.msra.mxu0 0
          %746 = vmatprep.subr.bf16.mxu0 0
          %747 = vmatpush1.bf16.msra.mxu0 %v730
          %748 = vmatprep.subr.bf16.mxu0 0
          %749 = vmatpush2.bf16.msra.mxu0 0
          %750 = vmatprep.subr.bf16.mxu0 0
          %751 = vmatpush2.bf16.msra.mxu0 0
          %752 = vmatprep.subr.bf16.mxu0 0
          %753 = vmatpush2.bf16.msra.mxu0 0
          %754 = vmatprep.subr.bf16.mxu0 0
          %755 = vmatpush2.bf16.msra.mxu0 0
          %756 = vmatprep.subr.bf16.mxu0 0
          %757 = vmatpush2.bf16.msra.mxu0 0
          %758 = vmatprep.subr.bf16.mxu0 0
          %759 = vmatpush2.bf16.msra.mxu0 0
          %760 = vmatprep.subr.bf16.mxu0 0
          %761 = vmatpush2.bf16.msra.mxu0 0
          %762 = vmatprep.subr.bf16.mxu0 0
          %763 = vmatpush2.bf16.msra.mxu0 0
          %764 = vmatprep.mubr.bf16.mxu0 0
          %765 = vmatmul.mubr.bf16.gmra.mxu0 %v726
          %v766 = vpop.f32.mrf.mxu0
          %v767 = vadd.f32 0.0, %v766
          %v768 = vpop.f32.mrf.mxu0
          %v769 = vpop.f32.mrf.mxu0
          %v770 = vpop.f32.mrf.mxu0
          %771 = vdwg.mxu0
          %s772 = scalar_lea.vmem [#allocation3], %s653
          %773 = vst.msk [vmem:[%s772] sm:$0xff] %vm589, %v767
        $region93: #{tpu_custom_call.1} parent=71 // loop_footer
          %s652 = sadd.s32 1, %s648
        $region94: #{tpu_custom_call.1} parent=71 // loop_footer_branch
          %647 = sbr.rel target = $region90
        $region95: #{tpu_custom_call.1} parent=71 // loop_exit
          _
        %v774 = vld [vmem:[#allocation3] sm:$0xff]
        %s775 = scalar_lea.vmem [#allocation3], 8
        %v776 = vld [vmem:[%s775] sm:$0xff]
        %s777 = scalar_lea.vmem [#allocation3], 16
        %v778 = vld [vmem:[%s777] sm:$0xff]
        %s779 = scalar_lea.vmem [#allocation3], 24
        %v780 = vld [vmem:[%s779] sm:$0xff]
        %782 = vrot.lane.b32.xlu0 %v776, 8
        %v783 = vpop.permute.xlu0 %782
        %786 = vrot.lane.b32.xlu0 %v778, 16
        %v787 = vpop.permute.xlu0 %786
        %790 = vrot.lane.b32.xlu0 %v780, 24
        %v791 = vpop.permute.xlu0 %790
        %v793 = vsel %vm589, %v774, %v783
        %vm794 = vcmask 130048
        %v795 = vsel %vm794, %v793, %v787
        %vm796 = vcmask 195584
        %v797 = vsel %vm796, %v795, %v791
        %v798 = vpack.c.bf16 %v797, %v797
        %v799 = vld [vmem:[%s5] sm:$0xf]
        %v800 = vld [vmem:[%s5 + $0x4] sm:$0xf]
        %v801 = vld [vmem:[%s5 + $0x8] sm:$0xf]
        %v802 = vld [vmem:[%s5 + $0xc] sm:$0xf]
        %v803 = vld [vmem:[%s6] sm:$0x1]
        %v805 = vlaneseq
        %v806 = vshrl.u32 %v805, 7
        %v807 = vsub.s32 0, %v806
        %v808 = vrot.slane %v803, %v807
        %v814 = vunpack.c.l.b16 %v799
        %v815 = vunpack.c.l.b16 %v800
        %v816 = vunpack.c.l.b16 %v801
        %v817 = vunpack.c.l.b16 %v802
        %v818 = vpack.c.b16 %v815, %v814
        %v819 = vpack.c.b16 %v817, %v816
        %v823 = vsel %vm493, %v798, 0
        %825 = vmatprep.subr.bf16.mxu0 0
        %826 = vmatpush1.bf16.msra.mxu0 0
        %827 = vmatprep.subr.bf16.mxu0 0
        %828 = vmatpush1.bf16.msra.mxu0 0
        %829 = vmatprep.subr.bf16.mxu0 0
        %830 = vmatpush1.bf16.msra.mxu0 0
        %831 = vmatprep.subr.bf16.mxu0 0
        %832 = vmatpush1.bf16.msra.mxu0 0
        %833 = vmatprep.subr.bf16.mxu0 0
        %834 = vmatpush1.bf16.msra.mxu0 0
        %835 = vmatprep.subr.bf16.mxu0 0
        %836 = vmatpush1.bf16.msra.mxu0 0
        %837 = vmatprep.subr.bf16.mxu0 0
        %838 = vmatpush1.bf16.msra.mxu0 %v819
        %839 = vmatprep.subr.bf16.mxu0 0
        %840 = vmatpush1.bf16.msra.mxu0 %v818
        %841 = vmatprep.subr.bf16.mxu0 0
        %842 = vmatpush2.bf16.msra.mxu0 0
        %843 = vmatprep.subr.bf16.mxu0 0
        %844 = vmatpush2.bf16.msra.mxu0 0
        %845 = vmatprep.subr.bf16.mxu0 0
        %846 = vmatpush2.bf16.msra.mxu0 0
        %847 = vmatprep.subr.bf16.mxu0 0
        %848 = vmatpush2.bf16.msra.mxu0 0
        %849 = vmatprep.subr.bf16.mxu0 0
        %850 = vmatpush2.bf16.msra.mxu0 0
        %851 = vmatprep.subr.bf16.mxu0 0
        %852 = vmatpush2.bf16.msra.mxu0 0
        %853 = vmatprep.subr.bf16.mxu0 0
        %854 = vmatpush2.bf16.msra.mxu0 0
        %855 = vmatprep.subr.bf16.mxu0 0
        %856 = vmatpush2.bf16.msra.mxu0 0
        %857 = vmatprep.mubr.bf16.mxu0 0
        %858 = vmatmul.mubr.bf16.gmra.mxu0 %v823
        %v859 = vpop.f32.mrf.mxu0
        %v860 = vadd.f32 %v808, %v859
        %v861 = vpop.f32.mrf.mxu0
        %v862 = vpop.f32.mrf.mxu0
        %v863 = vpop.f32.mrf.mxu0
        %864 = vdwg.mxu0
        %v865 = vadd.f32 %v490, %v860
        %v866 = vld [vmem:[#allocation4] sm:$0x1]
        %v867 = vld [vmem:[#allocation7] sm:$0x1]
        %v868 = vsel %vm493, %v865, 0.0
        %869 = vadd.xlane.f32.xlu0 %v868
        %v870 = vpop.xlane.xlu0 %869
        %v871 = vmul.f32 %v870, %v497
        %v872 = vsub.f32 %v865, %v871
        %v873 = vmul.f32 %v872, %v872
        %v874 = vsel %vm493, %v873, 0.0
        %875 = vadd.xlane.f32.xlu0 %v874
        %v876 = vpop.xlane.xlu0 %875
        %v877 = vmul.f32 %v876, %v497
        %v878 = vadd.f32 %v877, 1e-06
        %v879 = vrsqrt.pop %v878
        %v880 = vmul.f32 %v872, %v879
        %v882 = vlaneseq
        %v883 = vshrl.u32 %v882, 7
        %v884 = vsub.s32 0, %v883
        %v885 = vrot.slane %v866, %v884
        %v887 = vmul.f32 %v880, %v885
        %v889 = vlaneseq
        %v890 = vshrl.u32 %v889, 7
        %v891 = vsub.s32 0, %v890
        %v892 = vrot.slane %v867, %v891
        %v894 = vadd.f32 %v887, %v892
        %v895 = vpack.c.bf16 %v894, %v894
        %v896 = vld [vmem:[#allocation9] sm:$0xf]
        %v897 = vld [vmem:[#allocation9 + $0x4] sm:$0xf]
        %v898 = vld [vmem:[#allocation9 + $0x8] sm:$0xf]
        %v899 = vld [vmem:[#allocation9 + $0xc] sm:$0xf]
        %v900 = vld [vmem:[#allocation10] sm:$0x1]
        %v902 = vlaneseq
        %v903 = vshrl.u32 %v902, 7
        %v904 = vsub.s32 0, %v903
        %v905 = vrot.slane %v900, %v904
        %v911 = vunpack.c.l.b16 %v896
        %v912 = vunpack.c.l.b16 %v897
        %v913 = vunpack.c.l.b16 %v898
        %v914 = vunpack.c.l.b16 %v899
        %v915 = vpack.c.b16 %v912, %v911
        %v916 = vpack.c.b16 %v914, %v913
        %v920 = vsel %vm493, %v895, 0
        %922 = vmatprep.subr.bf16.mxu0 0
        %923 = vmatpush1.bf16.msra.mxu0 0
        %924 = vmatprep.subr.bf16.mxu0 0
        %925 = vmatpush1.bf16.msra.mxu0 0
        %926 = vmatprep.subr.bf16.mxu0 0
        %927 = vmatpush1.bf16.msra.mxu0 0
        %928 = vmatprep.subr.bf16.mxu0 0
        %929 = vmatpush1.bf16.msra.mxu0 0
        %930 = vmatprep.subr.bf16.mxu0 0
        %931 = vmatpush1.bf16.msra.mxu0 0
        %932 = vmatprep.subr.bf16.mxu0 0
        %933 = vmatpush1.bf16.msra.mxu0 0
        %934 = vmatprep.subr.bf16.mxu0 0
        %935 = vmatpush1.bf16.msra.mxu0 %v916
        %936 = vmatprep.subr.bf16.mxu0 0
        %937 = vmatpush1.bf16.msra.mxu0 %v915
        %938 = vmatprep.subr.bf16.mxu0 0
        %939 = vmatpush2.bf16.msra.mxu0 0
        %940 = vmatprep.subr.bf16.mxu0 0
        %941 = vmatpush2.bf16.msra.mxu0 0
        %942 = vmatprep.subr.bf16.mxu0 0
        %943 = vmatpush2.bf16.msra.mxu0 0
        %944 = vmatprep.subr.bf16.mxu0 0
        %945 = vmatpush2.bf16.msra.mxu0 0
        %946 = vmatprep.subr.bf16.mxu0 0
        %947 = vmatpush2.bf16.msra.mxu0 0
        %948 = vmatprep.subr.bf16.mxu0 0
        %949 = vmatpush2.bf16.msra.mxu0 0
        %950 = vmatprep.subr.bf16.mxu0 0
        %951 = vmatpush2.bf16.msra.mxu0 0
        %952 = vmatprep.subr.bf16.mxu0 0
        %953 = vmatpush2.bf16.msra.mxu0 0
        %954 = vmatprep.mubr.bf16.mxu0 0
        %955 = vmatmul.mubr.bf16.gmra.mxu0 %v920
        %v956 = vpop.f32.mrf.mxu0
        %v957 = vadd.f32 %v905, %v956
        %v958 = vpop.f32.mrf.mxu0
        %v959 = vpop.f32.mrf.mxu0
        %v960 = vpop.f32.mrf.mxu0
        %961 = vdwg.mxu0
        %v962 = vmul.f32 %v957, 0.5
        %v963 = vmul.f32 %v957, 0.044715
        %v964 = vmul.f32 %v963, %v957
        %v965 = vmul.f32 %v964, %v957
        %v966 = vadd.f32 %v957, %v965
        %v967 = vmul.f32 %v966, 0.7978846
        %v968 = vtanh.pop %v967
        %v969 = vadd.f32 %v968, 1.0
        %v970 = vmul.f32 %v962, %v969
        %v971 = vpack.c.bf16 %v970, %v970
        %v972 = vld [vmem:[%s11] sm:$0xf]
        %v973 = vld [vmem:[%s11 + $0x4] sm:$0xf]
        %v974 = vld [vmem:[%s11 + $0x8] sm:$0xf]
        %v975 = vld [vmem:[%s11 + $0xc] sm:$0xf]
        %v976 = vld [vmem:[%s11 + $0x10] sm:$0xf]
        %v977 = vld [vmem:[%s11 + $0x14] sm:$0xf]
        %v978 = vld [vmem:[%s11 + $0x18] sm:$0xf]
        %v979 = vld [vmem:[%s11 + $0x1c] sm:$0xf]
        %v980 = vld [vmem:[%s12] sm:$0x1]
        %v982 = vlaneseq
        %v983 = vshrl.u32 %v982, 7
        %v984 = vsub.s32 0, %v983
        %v985 = vrot.slane %v980, %v984
        %v995 = vunpack.c.l.b16 %v972
        %v996 = vunpack.c.l.b16 %v973
        %v997 = vunpack.c.l.b16 %v974
        %v998 = vunpack.c.l.b16 %v975
        %v999 = vunpack.c.l.b16 %v976
        %v1000 = vunpack.c.l.b16 %v977
        %v1001 = vunpack.c.l.b16 %v978
        %v1002 = vunpack.c.l.b16 %v979
        %v1003 = vpack.c.b16 %v996, %v995
        %v1004 = vpack.c.b16 %v998, %v997
        %v1005 = vpack.c.b16 %v1000, %v999
        %v1006 = vpack.c.b16 %v1002, %v1001
        %vm1011 = vcmask 523264
        %v1013 = vsel %vm1011, %v971, 0
        %1015 = vmatprep.subr.bf16.mxu0 0
        %1016 = vmatpush1.bf16.msra.mxu0 0
        %1017 = vmatprep.subr.bf16.mxu0 0
        %1018 = vmatpush1.bf16.msra.mxu0 0
        %1019 = vmatprep.subr.bf16.mxu0 0
        %1020 = vmatpush1.bf16.msra.mxu0 0
        %1021 = vmatprep.subr.bf16.mxu0 0
        %1022 = vmatpush1.bf16.msra.mxu0 0
        %1023 = vmatprep.subr.bf16.mxu0 0
        %1024 = vmatpush1.bf16.msra.mxu0 %v1006
        %1025 = vmatprep.subr.bf16.mxu0 0
        %1026 = vmatpush1.bf16.msra.mxu0 %v1005
        %1027 = vmatprep.subr.bf16.mxu0 0
        %1028 = vmatpush1.bf16.msra.mxu0 %v1004
        %1029 = vmatprep.subr.bf16.mxu0 0
        %1030 = vmatpush1.bf16.msra.mxu0 %v1003
        %1031 = vmatprep.subr.bf16.mxu0 0
        %1032 = vmatpush2.bf16.msra.mxu0 0
        %1033 = vmatprep.subr.bf16.mxu0 0
        %1034 = vmatpush2.bf16.msra.mxu0 0
        %1035 = vmatprep.subr.bf16.mxu0 0
        %1036 = vmatpush2.bf16.msra.mxu0 0
        %1037 = vmatprep.subr.bf16.mxu0 0
        %1038 = vmatpush2.bf16.msra.mxu0 0
        %1039 = vmatprep.subr.bf16.mxu0 0
        %1040 = vmatpush2.bf16.msra.mxu0 0
        %1041 = vmatprep.subr.bf16.mxu0 0
        %1042 = vmatpush2.bf16.msra.mxu0 0
        %1043 = vmatprep.subr.bf16.mxu0 0
        %1044 = vmatpush2.bf16.msra.mxu0 0
        %1045 = vmatprep.subr.bf16.mxu0 0
        %1046 = vmatpush2.bf16.msra.mxu0 0
        %1047 = vmatprep.mubr.bf16.mxu0 0
        %1048 = vmatmul.mubr.bf16.gmra.mxu0 %v1013
        %v1049 = vpop.f32.mrf.mxu0
        %v1050 = vadd.f32 %v985, %v1049
        %v1051 = vpop.f32.mrf.mxu0
        %v1052 = vpop.f32.mrf.mxu0
        %v1053 = vpop.f32.mrf.mxu0
        %1054 = vdwg.mxu0
        %v1055 = vadd.f32 %v865, %v1050
        %1056 = vst.msk [vmem:[%s484] sm:$0xff] %vm493, %v1055
        %s1057 = sand.u32 %s316, 1
        %s1058 = scalar_lea.sflag [#allocation6], %s1057
        %s1059 = sand.u32 %s316, 1
        %s1060 = smul.addr %s1059, 8
        %s1061 = scalar_lea.vmem [#allocation12], %s1060
        // Predicated region
        $region96: #{tpu_custom_call.1} parent=71 // pred_check
          %p1062 = pneg %p326
        $region97: #{tpu_custom_call.1} parent=71 // pred_check_branch
          %1064 = sbr.rel (%p1062) target = $region99
        $region98: #{tpu_custom_call.1} parent=71 // pred_region
          %s1066 = ssub.s32 128, 128
          %1067 = vsyncadd %s1058, %s1066
          %s1068 = smul.addr %s30, 128
          %s1069 = scalar_lea.hbm %s13, %s1068
          %s1071 = sshll.u32 %s1061, 4
          %s1072 = int_to_ptr.vmem [resolvable:$true] %s1071
          %1074 = dma.vmem_to_hbm [thread:$0]  %s1072, 128, %s1069, %s1058
        $region99: #{tpu_custom_call.1} parent=71 // pred_fallthru
          _
      $region72: #{tpu_custom_call.1} parent=5 // pred_fallthru
        _
      %p1075 = scmp.le.s32.totalorder 2, %s25
      // Predicated region
      $region100: #{tpu_custom_call.1} parent=5 // pred_check
        %p1076 = pneg %p1075
      $region101: #{tpu_custom_call.1} parent=5 // pred_check_branch
        %1078 = sbr.rel (%p1076) target = $region103
      $region102: #{tpu_custom_call.1} parent=5 // pred_region
        %s1079 = ssub.s32 %s25, 2
        // Predicated region
        $region104: #{tpu_custom_call.1} parent=102 // pred_check
          %p1080 = pneg %p332
        $region105: #{tpu_custom_call.1} parent=102 // pred_check_branch
          %1082 = sbr.rel (%p1080) target = $region107
        $region106: #{tpu_custom_call.1} parent=102 // pred_region
          %s1083 = sand.u32 %s317, 1
          %s1084 = scalar_lea.sflag [#allocation6], %s1083
          %s1085 = sand.u32 %s317, 1
          %s1086 = smul.addr %s1085, 8
          %s1087 = scalar_lea.vmem [#allocation12], %s1086
          %1088 = dma.done %s1084, 128
        $region107: #{tpu_custom_call.1} parent=102 // pred_fallthru
          _
      $region103: #{tpu_custom_call.1} parent=5 // pred_fallthru
        _
    $region6: #{tpu_custom_call.1} parent=1 // loop_footer
      %s29 = sadd.s32 1, %s25
    $region7: #{tpu_custom_call.1} parent=1 // loop_footer_branch
      %24 = sbr.rel target = $region3
    $region8: #{tpu_custom_call.1} parent=1 // loop_exit
      _
    %1089 = vsyncpa [#allocation5], 1
    %s1090 = scalar_lea.sflag [#allocation5], 1
    %1091 = vsyncpa %s1090, 1
    %1092 = vsyncpa [#allocation8], 1
    %1093 = vsyncpa [#allocation11], 1
    %1094 = vsyncpa [#allocation6], 1
    %s1095 = scalar_lea.sflag [#allocation6], 1
    %1096 = vsyncpa %s1095, 1

</llo_original>
